<compile_context>
chip_gen: v7x
topology: tpu7x:2x2x1
jax: 0.10.0
libtpu: 0.0.40
codegen_flags: <defaults>
</compile_context>

<pallas_src>
import math

import jax
import jax.numpy as jnp
from jax.experimental import pallas as pl
from jax.experimental.pallas import tpu as pltpu


# ----------------------------------------------------------------------------
# Fused kernel: linear1(full width) -> per-(a,c) LayerNorm -> linear2
# ----------------------------------------------------------------------------
def _upsample_fused_kernel(x_ref, w1_ref, g2_ref, b2_ref, w2_ref, o_ref):
    # x_ref : (TM, C)          flattened (r, w2) input token rows, C = 2*dim
    # w1_ref: (C, 2*C)         full linear1 weight, columns ordered (a, c, d)
    # g2_ref: (1, C)           LayerNorm gamma tiled over the two c-halves
    # b2_ref: (1, C)           LayerNorm beta  tiled over the two c-halves
    # w2_ref: (dim, dim)       if dim % 128 == 0 (zero-free split path), else
    #         (C, C)           block_diag(w2, w2)
    # o_ref : (TR, 2, W2, C)   output slab for this row-block (both a-halves)
    C = x_ref.shape[-1]
    dim = C // 2
    TR, _, W2, _ = o_ref.shape

    x = x_ref[...]
    # linear1, full output width: native-dtype operands on the MXU, f32 acc.
    y = jnp.dot(x, w1_ref[...], preferred_element_type=jnp.float32)
    # Match torch: linear1 output materialized in the model dtype before LN,
    # while the LN statistics themselves stay in f32.
    y = y.astype(x.dtype).astype(jnp.float32)

    gamma = g2_ref[...].astype(jnp.float32)
    beta = b2_ref[...].astype(jnp.float32)

    split_groups = (w2_ref.shape[0] == dim)      # static (shape-based) branch
    if split_groups:
        g1 = gamma[:, :dim]
        b1 = beta[:, :dim]
    else:
        lane = jax.lax.broadcasted_iota(jnp.int32, (1, C), 1)
        is_c0 = lane < dim
        inv_d = 1.0 / dim

    # Static 2-iteration loop over the output-row parity `a`; each half is a
    # lane slice of width C (128-aligned whenever dim >= 64).
    for a in range(2):
        ya = y[:, a * C:(a + 1) * C]

        if split_groups:
            # dim % 128 == 0: aligned lane slices, plain per-group LayerNorm,
            # two zero-free (TM, dim) x (dim, dim) matmuls (no wasted MXU work).
            zs = []
            for c in range(2):
                yc = ya[:, c * dim:(c + 1) * dim]
                mu = jnp.mean(yc, axis=-1, keepdims=True)
                cen = yc - mu
                var = jnp.mean(cen * cen, axis=-1, keepdims=True)
                yn = cen * jax.lax.rsqrt(var + 1e-5)
                yn = yn * g1 + b1
                zs.append(jnp.dot(yn.astype(w2_ref.dtype), w2_ref[...],
                                  preferred_element_type=jnp.float32))
            z = jnp.concatenate(zs, axis=-1)
        else:
            # Masked two-group LayerNorm; derive the group-1 sums as
            # (total - group-0) so only half of the where-temporaries /
            # masked reductions remain.
            s_tot = jnp.sum(ya, axis=-1, keepdims=True)
            s0 = jnp.sum(jnp.where(is_c0, ya, 0.0), axis=-1, keepdims=True)
            mu = jnp.where(is_c0, s0, s_tot - s0) * inv_d
            cen = ya - mu
            sq = cen * cen
            q_tot = jnp.sum(sq, axis=-1, keepdims=True)
            q0 = jnp.sum(jnp.where(is_c0, sq, 0.0), axis=-1, keepdims=True)
            var = jnp.where(is_c0, q0, q_tot - q0) * inv_d   # biased var, eps=1e-5
            yn = cen * jax.lax.rsqrt(var + 1e-5)
            yn = yn * gamma + beta
            # Both c-halves at once through the block-diagonal linear2 weight.
            z = jnp.dot(yn.astype(w2_ref.dtype), w2_ref[...],
                        preferred_element_type=jnp.float32)

        # (TM, C) -> (TR, W2, C): split of the leading (sublane-major) axis
        # only; the lane dim is untouched.  Store this a-half of the slab.
        o_ref[:, a, :, :] = z.reshape(TR, W2, C).astype(o_ref.dtype)


# ----------------------------------------------------------------------------
# Sizing helpers (generation-aware VMEM budget)
# ----------------------------------------------------------------------------
def _vmem_limit_bytes():
    """Generation-aware VMEM ceiling: ~3/4 of physical, capped at 96 MiB.

    v5e/v6e (128 MiB physical) -> 96 MiB; v7x (64 MiB per core) -> 48 MiB.
    Conservative 32 MiB fallback if the hardware query is unavailable.
    """
    try:
        cap = int(pltpu.get_tpu_info().vmem_capacity_bytes)
    except Exception:
        cap = 0
    if cap <= 0:
        return 32 * 1024 * 1024
    return int(min(96 * 1024 * 1024, (cap * 3) // 4))


def _choose_row_block(nr, w2_extent, c, itemsize, target_rows, vmem_limit,
                      fixed_bytes):
    """TR = number of (b, z, h2) super-rows per grid step.

    Targets TM = TR * (W//2) token rows near `target_rows` (amortizes the
    ~0.35us/step overhead; ~85% of the HBM roofline vs ~29% at 128-row tiles),
    keeps TM a multiple of 8 (sublane alignment of the 2-D input block), and
    budgets the double-buffered input/output tiles, the f32 temporaries AND
    the (double-buffered) weight tiles against the chip's VMEM ceiling.
    """
    # per token row: input tile + output tile (both double-buffered) + f32 temps
    bytes_per_row = 6 * c * itemsize + 32 * c
    budget = max(vmem_limit - fixed_bytes - (4 << 20), 4 << 20)
    rows_cap = max(8, budget // bytes_per_row)
    rows = int(min(target_rows, rows_cap))

    g = 8 // math.gcd(w2_extent, 8)        # TR multiple of g => (TR*W2) % 8 == 0
    tr = max(1, rows // w2_extent)
    tr = max(g, (tr // g) * g)
    if tr >= nr:
        tr = nr                            # full extent is always a legal block
    return tr


# ----------------------------------------------------------------------------
# One-time parameter preprocessing (hoisted out of the forward call)
# ----------------------------------------------------------------------------
def prepare_params(params, dim):
    """Reshuffle weights once at load time instead of every forward call."""
    C = 2 * dim
    w2 = params["w2"]
    if dim % 128 == 0:
        w2_k = w2                                            # zero-free split path
    else:
        zero = jnp.zeros((dim, dim), w2.dtype)
        w2_k = jnp.block([[w2, zero], [zero, w2]])           # block_diag(w2, w2)
    return {
        "w1": params["w1"],                                  # (C, 2*C), (a,c,d)-ordered
        "gamma2": jnp.tile(params["ln_gamma"], 2).reshape(1, C),
        "beta2": jnp.tile(params["ln_beta"], 2).reshape(1, C),
        "w2_k": w2_k,
    }


# ----------------------------------------------------------------------------
# UpSample forward
# ----------------------------------------------------------------------------
def upsample_forward(x, prepared, output_shape, dim, *, target_rows=1024):
    """x: (B, Z * H//2 * W//2, 2*dim)  ->  (B, Z*H*W, dim)"""
    Z, H, W = output_shape
    B, L, C = x.shape
    H2, W2 = H // 2, W // 2
    assert H % 2 == 0 and W % 2 == 0
    assert C == 2 * dim and L == Z * H2 * W2
    # TODO(synk): if W2 % 8 != 0 (e.g. Swin-224 stages) the per-tile
    # (TM,C)->(TR,W2,C) reshape becomes a sublane re-tiling copy and stores get
    # partially masked; pad W2 to a multiple of 8 upstream if profiles show it.

    NR = B * Z * H2                     # super-rows: one per (b, z, h2)
    M = NR * W2                         # = B * L input token rows
    x_flat = x.reshape(M, C)

    w1 = prepared["w1"]
    gamma2 = prepared["gamma2"]
    beta2 = prepared["beta2"]
    w2_k = prepared["w2_k"]

    vmem_limit = _vmem_limit_bytes()
    # Weight tiles counted as double-buffered (constant index maps; the
    # compiler may still allocate two buffers, so budget for the worst case).
    fixed_bytes = (2 * w1.size * w1.dtype.itemsize
                   + 2 * w2_k.size * w2_k.dtype.itemsize
                   + 2 * (gamma2.size + beta2.size) * gamma2.dtype.itemsize)
    TR = _choose_row_block(NR, W2, C, x.dtype.itemsize, target_rows,
                           vmem_limit, fixed_bytes)
    TM = TR * W2
    grid = (pl.cdiv(NR, TR),)

    out4 = pl.pallas_call(
        _upsample_fused_kernel,
        out_shape=jax.ShapeDtypeStruct((NR, 2, W2, C), x.dtype),
        grid_spec=pltpu.PrefetchScalarGridSpec(
            num_scalar_prefetch=0,
            grid=grid,
            in_specs=[
                pl.BlockSpec((TM, C), lambda i: (i, 0)),        # x rows (read once)
                pl.BlockSpec(w1.shape, lambda i: (0, 0)),       # full linear1 weight
                pl.BlockSpec((1, C), lambda i: (0, 0)),         # gamma (tiled x2)
                pl.BlockSpec((1, C), lambda i: (0, 0)),         # beta  (tiled x2)
                pl.BlockSpec(w2_k.shape, lambda i: (0, 0)),     # linear2 weight
            ],
            # Drop each row-block slab (both a-halves) at its shuffled position.
            out_specs=pl.BlockSpec((TR, 2, W2, C), lambda i: (i, 0, 0, 0)),
        ),
        compiler_params=pltpu.CompilerParams(
            dimension_semantics=("parallel",),
            vmem_limit_bytes=vmem_limit,
        ),
    )(x_flat, w1, gamma2, beta2, w2_k)

    # (NR, 2, W2, 2*dim) == (B, Z, H//2, 2, W//2, 2, dim) is already laid out in
    # (B, Z, H, W, dim) memory order -> final reshape is metadata-only.
    return out4.reshape(B, Z * H * W, dim)


# pure-JAX reference for sanity checking
def upsample_reference(x, params, output_shape, dim):
    Z, H, W = output_shape
    B, L, C = x.shape
    y = x @ params["w1"]
    y = y.reshape(B, Z, H // 2, W // 2, 2, 2, dim)
    y = jnp.transpose(y, (0, 1, 2, 4, 3, 5, 6))
    y = y.reshape(B, Z * H * W, dim)
    mu = jnp.mean(y, axis=-1, keepdims=True)
    var = jnp.mean((y - mu) ** 2, axis=-1, keepdims=True)
    yn = (y - mu) / jnp.sqrt(var + 1e-5)
    yn = yn * params["ln_gamma"] + params["ln_beta"]
    return yn @ params["w2"]


if __name__ == "__main__":
    # Small shapes consistent with the module (W//2 = 8 keeps the toy test
    # sublane-aligned).
    B, Z, H, W, dim = 2, 2, 16, 16, 16
    L = Z * (H // 2) * (W // 2)          # 128
    C = 2 * dim                          # 32

    key = jax.random.PRNGKey(0)
    k_x, k_w1, k_w2, k_g, k_b = jax.random.split(key, 5)

    x = jax.random.normal(k_x, (B, L, C), dtype=jnp.float32)

    # Deterministic synthetic parameters (stored already transposed: x @ w)
    params = {
        "w1": jax.random.normal(k_w1, (2 * dim, 4 * dim), dtype=jnp.float32) * 0.05,
        "w2": jax.random.normal(k_w2, (dim, dim), dtype=jnp.float32) * 0.1,
        "ln_gamma": jax.random.normal(k_g, (dim,), dtype=jnp.float32) * 0.1 + 1.0,
        "ln_beta": jax.random.normal(k_b, (dim,), dtype=jnp.float32) * 0.1,
    }

    prepared = prepare_params(params, dim)

    # f32 path: strict check against the pure-JAX reference.
    out = upsample_forward(x, prepared, (Z, H, W), dim)
    out = jax.block_until_ready(out)
    ref = upsample_reference(x, params, (Z, H, W), dim)
    assert out.shape == (B, Z * H * W, dim)
    assert jnp.allclose(out, ref, atol=1e-4, rtol=1e-4), "f32 mismatch vs reference"

    # bf16 path: exercises the model-dtype re-quantization before LayerNorm.
    # Loose bound only (bf16 rounding); a shuffle/mapping bug would be O(1) off.
    x_bf = x.astype(jnp.bfloat16)
    params_bf = {k: v.astype(jnp.bfloat16) for k, v in params.items()}
    prepared_bf = prepare_params(params_bf, dim)
    out_bf = jax.block_until_ready(
        upsample_forward(x_bf, prepared_bf, (Z, H, W), dim))
    out_bf32 = out_bf.astype(jnp.float32)
    assert out_bf.shape == (B, Z * H * W, dim)
    assert bool(jnp.isfinite(out_bf32).all()), "bf16 path produced non-finite values"
    assert float(jnp.max(jnp.abs(out_bf32 - ref))) < 0.25, "bf16 path grossly off"

    print("KERNEL_OK")
</pallas_src>

<mosaic_0001>
module attributes {stable_mosaic.version = 11 : i64} {
  func.func @_upsample_fused_kernel(%arg0: i32, %arg1: memref<256x32xf32, #tpu.memory_space<vmem>>, %arg2: memref<32x64xf32, #tpu.memory_space<vmem>>, %arg3: memref<1x32xf32, #tpu.memory_space<vmem>>, %arg4: memref<1x32xf32, #tpu.memory_space<vmem>>, %arg5: memref<32x32xf32, #tpu.memory_space<vmem>>, %arg6: memref<32x2x8x32xf32, #tpu.memory_space<vmem>>) attributes {dimension_semantics = [#tpu.dimension_semantics<parallel>], iteration_bounds = array<i64: 1>, scalar_prefetch = 0 : i64, scratch_operands = 0 : i64, tpu.core_type = #tpu.core_type<tc>, window_params = [{transform_indices = @transform_0, window_bounds = array<i64: 256, 32>}, {pipeline_mode = #tpu.pipeline_mode<synchronous>, transform_indices = @transform_1, window_bounds = array<i64: 32, 64>}, {pipeline_mode = #tpu.pipeline_mode<synchronous>, transform_indices = @transform_2, window_bounds = array<i64: 1, 32>}, {pipeline_mode = #tpu.pipeline_mode<synchronous>, transform_indices = @transform_3, window_bounds = array<i64: 1, 32>}, {pipeline_mode = #tpu.pipeline_mode<synchronous>, transform_indices = @transform_4, window_bounds = array<i64: 32, 32>}, {transform_indices = @transform_5, window_bounds = array<i64: 32, 2, 8, 32>}]} {
    %c0 = arith.constant 0 : index
    %c0_0 = arith.constant 0 : index
    %0 = vector.load %arg1[%c0, %c0_0] : memref<256x32xf32, #tpu.memory_space<vmem>>, vector<256x32xf32>
    %c0_1 = arith.constant 0 : index
    %c0_2 = arith.constant 0 : index
    %1 = vector.load %arg2[%c0_1, %c0_2] : memref<32x64xf32, #tpu.memory_space<vmem>>, vector<32x64xf32>
    %cst = arith.constant dense<0.000000e+00> : vector<256x64xf32>
    %2 = tpu.matmul %0, %1, %cst {dimension_numbers = #tpu.dot_dimension_numbers<[1], [0], [0], [1], [0, 0, 1, 1], [], []>} : vector<256x32xf32>, vector<32x64xf32>, vector<256x64xf32> -> vector<256x64xf32>
    %c0_3 = arith.constant 0 : index
    %c0_4 = arith.constant 0 : index
    %3 = vector.load %arg3[%c0_3, %c0_4] : memref<1x32xf32, #tpu.memory_space<vmem>>, vector<1x32xf32>
    %c0_5 = arith.constant 0 : index
    %c0_6 = arith.constant 0 : index
    %4 = vector.load %arg4[%c0_5, %c0_6] : memref<1x32xf32, #tpu.memory_space<vmem>>, vector<1x32xf32>
    %5 = tpu.iota {dimensions = array<i32: 1>} : vector<1x32xi32>
    %c16_i32 = arith.constant 16 : i32
    %6 = vector.broadcast %c16_i32 : i32 to vector<1x32xi32>
    %7 = arith.cmpi slt, %5, %6 : vector<1x32xi32>
    %8 = vector.extract_strided_slice %2 {offsets = [0, 0], sizes = [256, 32], strides = [1, 1]} : vector<256x64xf32> to vector<256x32xf32>
    %cst_7 = arith.constant dense<0.000000e+00> : vector<256xf32>
    %9 = vector.multi_reduction <add>, %8, %cst_7 [1] : vector<256x32xf32> to vector<256xf32>
    %10 = vector.shape_cast %9 : vector<256xf32> to vector<256x1xf32>
    %cst_8 = arith.constant 0.000000e+00 : f32
    %11 = vector.shape_cast %7 : vector<1x32xi1> to vector<1x32xi1>
    %12 = vector.broadcast %11 : vector<1x32xi1> to vector<256x32xi1>
    %13 = vector.broadcast %cst_8 : f32 to vector<256x32xf32>
    %14 = arith.select %12, %8, %13 : vector<256x32xi1>, vector<256x32xf32>
    %cst_9 = arith.constant dense<0.000000e+00> : vector<256xf32>
    %15 = vector.multi_reduction <add>, %14, %cst_9 [1] : vector<256x32xf32> to vector<256xf32>
    %16 = vector.shape_cast %15 : vector<256xf32> to vector<256x1xf32>
    %17 = arith.subf %10, %16 : vector<256x1xf32>
    %18 = vector.shape_cast %7 : vector<1x32xi1> to vector<1x32xi1>
    %19 = vector.broadcast %18 : vector<1x32xi1> to vector<256x32xi1>
    %20 = vector.shape_cast %16 : vector<256x1xf32> to vector<256x1xf32>
    %21 = vector.broadcast %20 : vector<256x1xf32> to vector<256x32xf32>
    %22 = vector.shape_cast %17 : vector<256x1xf32> to vector<256x1xf32>
    %23 = vector.broadcast %22 : vector<256x1xf32> to vector<256x32xf32>
    %24 = arith.select %19, %21, %23 : vector<256x32xi1>, vector<256x32xf32>
    %cst_10 = arith.constant 6.250000e-02 : f32
    %25 = vector.broadcast %cst_10 : f32 to vector<256x32xf32>
    %26 = arith.mulf %24, %25 : vector<256x32xf32>
    %27 = arith.subf %8, %26 : vector<256x32xf32>
    %28 = arith.mulf %27, %27 : vector<256x32xf32>
    %cst_11 = arith.constant dense<0.000000e+00> : vector<256xf32>
    %29 = vector.multi_reduction <add>, %28, %cst_11 [1] : vector<256x32xf32> to vector<256xf32>
    %30 = vector.shape_cast %29 : vector<256xf32> to vector<256x1xf32>
    %cst_12 = arith.constant 0.000000e+00 : f32
    %31 = vector.shape_cast %7 : vector<1x32xi1> to vector<1x32xi1>
    %32 = vector.broadcast %31 : vector<1x32xi1> to vector<256x32xi1>
    %33 = vector.broadcast %cst_12 : f32 to vector<256x32xf32>
    %34 = arith.select %32, %28, %33 : vector<256x32xi1>, vector<256x32xf32>
    %cst_13 = arith.constant dense<0.000000e+00> : vector<256xf32>
    %35 = vector.multi_reduction <add>, %34, %cst_13 [1] : vector<256x32xf32> to vector<256xf32>
    %36 = vector.shape_cast %35 : vector<256xf32> to vector<256x1xf32>
    %37 = arith.subf %30, %36 : vector<256x1xf32>
    %38 = vector.shape_cast %7 : vector<1x32xi1> to vector<1x32xi1>
    %39 = vector.broadcast %38 : vector<1x32xi1> to vector<256x32xi1>
    %40 = vector.shape_cast %36 : vector<256x1xf32> to vector<256x1xf32>
    %41 = vector.broadcast %40 : vector<256x1xf32> to vector<256x32xf32>
    %42 = vector.shape_cast %37 : vector<256x1xf32> to vector<256x1xf32>
    %43 = vector.broadcast %42 : vector<256x1xf32> to vector<256x32xf32>
    %44 = arith.select %39, %41, %43 : vector<256x32xi1>, vector<256x32xf32>
    %cst_14 = arith.constant 6.250000e-02 : f32
    %45 = vector.broadcast %cst_14 : f32 to vector<256x32xf32>
    %46 = arith.mulf %44, %45 : vector<256x32xf32>
    %cst_15 = arith.constant 9.99999974E-6 : f32
    %47 = vector.broadcast %cst_15 : f32 to vector<256x32xf32>
    %48 = arith.addf %46, %47 : vector<256x32xf32>
    %49 = math.rsqrt %48 : vector<256x32xf32>
    %50 = arith.mulf %27, %49 : vector<256x32xf32>
    %51 = vector.broadcast %3 : vector<1x32xf32> to vector<256x32xf32>
    %52 = arith.mulf %50, %51 : vector<256x32xf32>
    %53 = vector.broadcast %4 : vector<1x32xf32> to vector<256x32xf32>
    %54 = arith.addf %52, %53 : vector<256x32xf32>
    %c0_16 = arith.constant 0 : index
    %c0_17 = arith.constant 0 : index
    %55 = vector.load %arg5[%c0_16, %c0_17] : memref<32x32xf32, #tpu.memory_space<vmem>>, vector<32x32xf32>
    %cst_18 = arith.constant dense<0.000000e+00> : vector<256x32xf32>
    %56 = tpu.matmul %54, %55, %cst_18 {dimension_numbers = #tpu.dot_dimension_numbers<[1], [0], [0], [1], [0, 0, 1, 1], [], []>} : vector<256x32xf32>, vector<32x32xf32>, vector<256x32xf32> -> vector<256x32xf32>
    %57 = vector.shape_cast %56 : vector<256x32xf32> to vector<32x8x32xf32>
    %c0_19 = arith.constant 0 : index
    %c0_20 = arith.constant 0 : index
    %c0_21 = arith.constant 0 : index
    %c0_22 = arith.constant 0 : index
    %58 = vector.load %arg6[%c0_19, %c0_20, %c0_21, %c0_22] : memref<32x2x8x32xf32, #tpu.memory_space<vmem>>, vector<32x1x8x32xf32>
    %59 = vector.shape_cast %58 : vector<32x1x8x32xf32> to vector<32x8x32xf32>
    %60 = vector.shape_cast %57 : vector<32x8x32xf32> to vector<32x1x8x32xf32>
    tpu.vector_store %arg6[%c0_19, %c0_20, %c0_21, %c0_22], %60 {strides = array<i32>} : memref<32x2x8x32xf32, #tpu.memory_space<vmem>>, vector<32x1x8x32xf32>,
    %61 = vector.extract_strided_slice %2 {offsets = [0, 32], sizes = [256, 32], strides = [1, 1]} : vector<256x64xf32> to vector<256x32xf32>
    %cst_23 = arith.constant dense<0.000000e+00> : vector<256xf32>
    %62 = vector.multi_reduction <add>, %61, %cst_23 [1] : vector<256x32xf32> to vector<256xf32>
    %63 = vector.shape_cast %62 : vector<256xf32> to vector<256x1xf32>
    %cst_24 = arith.constant 0.000000e+00 : f32
    %64 = vector.shape_cast %7 : vector<1x32xi1> to vector<1x32xi1>
    %65 = vector.broadcast %64 : vector<1x32xi1> to vector<256x32xi1>
    %66 = vector.broadcast %cst_24 : f32 to vector<256x32xf32>
    %67 = arith.select %65, %61, %66 : vector<256x32xi1>, vector<256x32xf32>
    %cst_25 = arith.constant dense<0.000000e+00> : vector<256xf32>
    %68 = vector.multi_reduction <add>, %67, %cst_25 [1] : vector<256x32xf32> to vector<256xf32>
    %69 = vector.shape_cast %68 : vector<256xf32> to vector<256x1xf32>
    %70 = arith.subf %63, %69 : vector<256x1xf32>
    %71 = vector.shape_cast %7 : vector<1x32xi1> to vector<1x32xi1>
    %72 = vector.broadcast %71 : vector<1x32xi1> to vector<256x32xi1>
    %73 = vector.shape_cast %69 : vector<256x1xf32> to vector<256x1xf32>
    %74 = vector.broadcast %73 : vector<256x1xf32> to vector<256x32xf32>
    %75 = vector.shape_cast %70 : vector<256x1xf32> to vector<256x1xf32>
    %76 = vector.broadcast %75 : vector<256x1xf32> to vector<256x32xf32>
    %77 = arith.select %72, %74, %76 : vector<256x32xi1>, vector<256x32xf32>
    %cst_26 = arith.constant 6.250000e-02 : f32
    %78 = vector.broadcast %cst_26 : f32 to vector<256x32xf32>
    %79 = arith.mulf %77, %78 : vector<256x32xf32>
    %80 = arith.subf %61, %79 : vector<256x32xf32>
    %81 = arith.mulf %80, %80 : vector<256x32xf32>
    %cst_27 = arith.constant dense<0.000000e+00> : vector<256xf32>
    %82 = vector.multi_reduction <add>, %81, %cst_27 [1] : vector<256x32xf32> to vector<256xf32>
    %83 = vector.shape_cast %82 : vector<256xf32> to vector<256x1xf32>
    %cst_28 = arith.constant 0.000000e+00 : f32
    %84 = vector.shape_cast %7 : vector<1x32xi1> to vector<1x32xi1>
    %85 = vector.broadcast %84 : vector<1x32xi1> to vector<256x32xi1>
    %86 = vector.broadcast %cst_28 : f32 to vector<256x32xf32>
    %87 = arith.select %85, %81, %86 : vector<256x32xi1>, vector<256x32xf32>
    %cst_29 = arith.constant dense<0.000000e+00> : vector<256xf32>
    %88 = vector.multi_reduction <add>, %87, %cst_29 [1] : vector<256x32xf32> to vector<256xf32>
    %89 = vector.shape_cast %88 : vector<256xf32> to vector<256x1xf32>
    %90 = arith.subf %83, %89 : vector<256x1xf32>
    %91 = vector.shape_cast %7 : vector<1x32xi1> to vector<1x32xi1>
    %92 = vector.broadcast %91 : vector<1x32xi1> to vector<256x32xi1>
    %93 = vector.shape_cast %89 : vector<256x1xf32> to vector<256x1xf32>
    %94 = vector.broadcast %93 : vector<256x1xf32> to vector<256x32xf32>
    %95 = vector.shape_cast %90 : vector<256x1xf32> to vector<256x1xf32>
    %96 = vector.broadcast %95 : vector<256x1xf32> to vector<256x32xf32>
    %97 = arith.select %92, %94, %96 : vector<256x32xi1>, vector<256x32xf32>
    %cst_30 = arith.constant 6.250000e-02 : f32
    %98 = vector.broadcast %cst_30 : f32 to vector<256x32xf32>
    %99 = arith.mulf %97, %98 : vector<256x32xf32>
    %cst_31 = arith.constant 9.99999974E-6 : f32
    %100 = vector.broadcast %cst_31 : f32 to vector<256x32xf32>
    %101 = arith.addf %99, %100 : vector<256x32xf32>
    %102 = math.rsqrt %101 : vector<256x32xf32>
    %103 = arith.mulf %80, %102 : vector<256x32xf32>
    %104 = vector.broadcast %3 : vector<1x32xf32> to vector<256x32xf32>
    %105 = arith.mulf %103, %104 : vector<256x32xf32>
    %106 = vector.broadcast %4 : vector<1x32xf32> to vector<256x32xf32>
    %107 = arith.addf %105, %106 : vector<256x32xf32>
    %c0_32 = arith.constant 0 : index
    %c0_33 = arith.constant 0 : index
    %108 = vector.load %arg5[%c0_32, %c0_33] : memref<32x32xf32, #tpu.memory_space<vmem>>, vector<32x32xf32>
    %cst_34 = arith.constant dense<0.000000e+00> : vector<256x32xf32>
    %109 = tpu.matmul %107, %108, %cst_34 {dimension_numbers = #tpu.dot_dimension_numbers<[1], [0], [0], [1], [0, 0, 1, 1], [], []>} : vector<256x32xf32>, vector<32x32xf32>, vector<256x32xf32> -> vector<256x32xf32>
    %110 = vector.shape_cast %109 : vector<256x32xf32> to vector<32x8x32xf32>
    %c0_35 = arith.constant 0 : index
    %c1 = arith.constant 1 : index
    %c0_36 = arith.constant 0 : index
    %c0_37 = arith.constant 0 : index
    %111 = vector.load %arg6[%c0_35, %c1, %c0_36, %c0_37] : memref<32x2x8x32xf32, #tpu.memory_space<vmem>>, vector<32x1x8x32xf32>
    %112 = vector.shape_cast %111 : vector<32x1x8x32xf32> to vector<32x8x32xf32>
    %113 = vector.shape_cast %110 : vector<32x8x32xf32> to vector<32x1x8x32xf32>
    tpu.vector_store %arg6[%c0_35, %c1, %c0_36, %c0_37], %113 {strides = array<i32>} : memref<32x2x8x32xf32, #tpu.memory_space<vmem>>, vector<32x1x8x32xf32>,
    return
  }
  func.func @transform_0(%arg0: i32) -> (i32, i32) {
    %c0_i32 = arith.constant 0 : i32
    %c0_i32_0 = arith.constant 0 : i32
    return %arg0, %c0_i32 : i32, i32
  }
  func.func @transform_1(%arg0: i32) -> (i32, i32) {
    %c0_i32 = arith.constant 0 : i32
    %c0_i32_0 = arith.constant 0 : i32
    %c0_i32_1 = arith.constant 0 : i32
    return %c0_i32, %c0_i32_0 : i32, i32
  }
  func.func @transform_2(%arg0: i32) -> (i32, i32) {
    %c0_i32 = arith.constant 0 : i32
    %c0_i32_0 = arith.constant 0 : i32
    %c0_i32_1 = arith.constant 0 : i32
    return %c0_i32, %c0_i32_0 : i32, i32
  }
  func.func @transform_3(%arg0: i32) -> (i32, i32) {
    %c0_i32 = arith.constant 0 : i32
    %c0_i32_0 = arith.constant 0 : i32
    %c0_i32_1 = arith.constant 0 : i32
    return %c0_i32, %c0_i32_0 : i32, i32
  }
  func.func @transform_4(%arg0: i32) -> (i32, i32) {
    %c0_i32 = arith.constant 0 : i32
    %c0_i32_0 = arith.constant 0 : i32
    %c0_i32_1 = arith.constant 0 : i32
    return %c0_i32, %c0_i32_0 : i32, i32
  }
  func.func @transform_5(%arg0: i32) -> (i32, i32, i32, i32) {
    %c0_i32 = arith.constant 0 : i32
    %c0_i32_0 = arith.constant 0 : i32
    %c0_i32_1 = arith.constant 0 : i32
    %c0_i32_2 = arith.constant 0 : i32
    return %arg0, %c0_i32, %c0_i32_0, %c0_i32_1 : i32, i32, i32, i32
  }
}

</mosaic_0001>

<llo_original>
// kernel: tpu_custom_call.1
$region0: #{tpu_custom_call.1}
  #allocation0 [shape = 'u32[]', space=smem, size = 0x4, offset = 0x4, fixed_abs, tag = 'smem constant byte address 0x4 - core index']
  #allocation1 [shape = 'u32[144,128]{1,0:T(1,128)}', space=vmem, size = 0x12000, scoped, tag = 'internal scratch']
  %s0 = inlined_call_operand.vmem [shape: f32[256,32], index: 0, kind: input, shape index: {}]
  %s1 = inlined_call_operand.vmem [shape: f32[32,64], index: 1, kind: input, shape index: {}]
  %s2 = inlined_call_operand.vmem [shape: f32[1,32], index: 2, kind: input, shape index: {}]
  %s3 = inlined_call_operand.vmem [shape: f32[1,32], index: 3, kind: input, shape index: {}]
  %s4 = inlined_call_operand.vmem [shape: f32[32,32], index: 4, kind: input, shape index: {}]
  %s5 = inlined_call_operand.hbm [shape: f32[32,2,8,32], index: 5, kind: output, shape index: {}]
  %s6 = sld [smem:[#allocation0]]
  $region30: #{tpu_custom_call.1} parent=0
    _
  %s8 = ssub.s32 1, %s6
  %s9 = scalar_select 0, %s8, %s6
  $region1: #{tpu_custom_call.1} parent=0
    #allocation2 [shape = 'u8[262144]{0}', space=vmem, size = 0x40000, scoped, tag = 'output window, operand 0, single buffered']
    #allocation3 [shape = 's32[1]{0}', space=sflag, size = 0x4, scoped, tag = 'scoped memory for tpu_custom_call.1']
    %10 = vsyncpa [#allocation3], 0
    // Predicated region
    $region2: #{tpu_custom_call.1} parent=1 // pred_check
      _
    $region3: #{tpu_custom_call.1} parent=1 // pred_check_branch
      %12 = sbr.rel (0) target = $region5
    $region4: #{tpu_custom_call.1} parent=1 // pred_region
      _
    $region5: #{tpu_custom_call.1} parent=1 // pred_fallthru
      _
    // Predicated region
    $region6: #{tpu_custom_call.1} parent=1 // pred_check
      _
    $region7: #{tpu_custom_call.1} parent=1 // pred_check_branch
      %14 = sbr.rel (0) target = $region9
    $region8: #{tpu_custom_call.1} parent=1 // pred_region
      _
    $region9: #{tpu_custom_call.1} parent=1 // pred_fallthru
      _
    // Predicated region
    $region10: #{tpu_custom_call.1} parent=1 // pred_check
      _
    $region11: #{tpu_custom_call.1} parent=1 // pred_check_branch
      %16 = sbr.rel (0) target = $region13
    $region12: #{tpu_custom_call.1} parent=1 // pred_region
      _
    $region13: #{tpu_custom_call.1} parent=1 // pred_fallthru
      _
    // Predicated region
    $region14: #{tpu_custom_call.1} parent=1 // pred_check
      _
    $region15: #{tpu_custom_call.1} parent=1 // pred_check_branch
      %18 = sbr.rel (0) target = $region17
    $region16: #{tpu_custom_call.1} parent=1 // pred_region
      _
    $region17: #{tpu_custom_call.1} parent=1 // pred_fallthru
      _
    // Predicated region
    $region18: #{tpu_custom_call.1} parent=1 // pred_check
      _
    $region19: #{tpu_custom_call.1} parent=1 // pred_check_branch
      %20 = sbr.rel (0) target = $region21
    $region20: #{tpu_custom_call.1} parent=1 // pred_region
      _
    $region21: #{tpu_custom_call.1} parent=1 // pred_fallthru
      _
    %v21 = vld [vmem:[%s0] sm:$0xff]
    %v22 = vld [vmem:[%s0 + $0x8] sm:$0xff]
    %v23 = vld [vmem:[%s0 + $0x10] sm:$0xff]
    %v24 = vld [vmem:[%s0 + $0x18] sm:$0xff]
    %v25 = vld [vmem:[%s0 + $0x20] sm:$0xff]
    %v26 = vld [vmem:[%s0 + $0x28] sm:$0xff]
    %v27 = vld [vmem:[%s0 + $0x30] sm:$0xff]
    %v28 = vld [vmem:[%s0 + $0x38] sm:$0xff]
    %v29 = vld [vmem:[%s0 + $0x40] sm:$0xff]
    %v30 = vld [vmem:[%s0 + $0x48] sm:$0xff]
    %v31 = vld [vmem:[%s0 + $0x50] sm:$0xff]
    %v32 = vld [vmem:[%s0 + $0x58] sm:$0xff]
    %v33 = vld [vmem:[%s0 + $0x60] sm:$0xff]
    %v34 = vld [vmem:[%s0 + $0x68] sm:$0xff]
    %v35 = vld [vmem:[%s0 + $0x70] sm:$0xff]
    %v36 = vld [vmem:[%s0 + $0x78] sm:$0xff]
    %v37 = vld [vmem:[%s0 + $0x80] sm:$0xff]
    %v38 = vld [vmem:[%s0 + $0x88] sm:$0xff]
    %v39 = vld [vmem:[%s0 + $0x90] sm:$0xff]
    %v40 = vld [vmem:[%s0 + $0x98] sm:$0xff]
    %v41 = vld [vmem:[%s0 + $0xa0] sm:$0xff]
    %v42 = vld [vmem:[%s0 + $0xa8] sm:$0xff]
    %v43 = vld [vmem:[%s0 + $0xb0] sm:$0xff]
    %v44 = vld [vmem:[%s0 + $0xb8] sm:$0xff]
    %v45 = vld [vmem:[%s0 + $0xc0] sm:$0xff]
    %v46 = vld [vmem:[%s0 + $0xc8] sm:$0xff]
    %v47 = vld [vmem:[%s0 + $0xd0] sm:$0xff]
    %v48 = vld [vmem:[%s0 + $0xd8] sm:$0xff]
    %v49 = vld [vmem:[%s0 + $0xe0] sm:$0xff]
    %v50 = vld [vmem:[%s0 + $0xe8] sm:$0xff]
    %v51 = vld [vmem:[%s0 + $0xf0] sm:$0xff]
    %v52 = vld [vmem:[%s0 + $0xf8] sm:$0xff]
    %v53 = vld [vmem:[%s1] sm:$0xff]
    %v54 = vld [vmem:[%s1 + $0x8] sm:$0xff]
    %v55 = vld [vmem:[%s1 + $0x10] sm:$0xff]
    %v56 = vld [vmem:[%s1 + $0x18] sm:$0xff]
    %vm57 = vcmask 261120
    %v59 = vsel %vm57, %v21, 0
    %v62 = vsel %vm57, %v22, 0
    %v65 = vsel %vm57, %v23, 0
    %v68 = vsel %vm57, %v24, 0
    %v71 = vsel %vm57, %v25, 0
    %v74 = vsel %vm57, %v26, 0
    %v77 = vsel %vm57, %v27, 0
    %v80 = vsel %vm57, %v28, 0
    %v83 = vsel %vm57, %v29, 0
    %v86 = vsel %vm57, %v30, 0
    %v89 = vsel %vm57, %v31, 0
    %v92 = vsel %vm57, %v32, 0
    %v95 = vsel %vm57, %v33, 0
    %v98 = vsel %vm57, %v34, 0
    %v101 = vsel %vm57, %v35, 0
    %v104 = vsel %vm57, %v36, 0
    %v107 = vsel %vm57, %v37, 0
    %v110 = vsel %vm57, %v38, 0
    %v113 = vsel %vm57, %v39, 0
    %v116 = vsel %vm57, %v40, 0
    %v119 = vsel %vm57, %v41, 0
    %v122 = vsel %vm57, %v42, 0
    %v125 = vsel %vm57, %v43, 0
    %v128 = vsel %vm57, %v44, 0
    %v131 = vsel %vm57, %v45, 0
    %v134 = vsel %vm57, %v46, 0
    %v137 = vsel %vm57, %v47, 0
    %v140 = vsel %vm57, %v48, 0
    %v143 = vsel %vm57, %v49, 0
    %v146 = vsel %vm57, %v50, 0
    %v149 = vsel %vm57, %v51, 0
    %v152 = vsel %vm57, %v52, 0
    %154 = vmatprep.subr.mxu0 0.0
    %155 = vmatpush1.msra.mxu0 %v53
    %156 = vmatprep.subr.mxu0 0.0
    %157 = vmatpush1.msra.mxu0 %v54
    %158 = vmatprep.subr.mxu0 0.0
    %159 = vmatpush1.msra.mxu0 %v55
    %160 = vmatprep.subr.mxu0 0.0
    %161 = vmatpush1.msra.mxu0 %v56
    %162 = vmatprep.subr.mxu0 0.0
    %163 = vmatpush1.msra.mxu0 0.0
    %164 = vmatprep.subr.mxu0 0.0
    %165 = vmatpush1.msra.mxu0 0.0
    %166 = vmatprep.subr.mxu0 0.0
    %167 = vmatpush1.msra.mxu0 0.0
    %168 = vmatprep.subr.mxu0 0.0
    %169 = vmatpush1.msra.mxu0 0.0
    %170 = vmatprep.subr.mxu0 0.0
    %171 = vmatpush1.msra.mxu0 0.0
    %172 = vmatprep.subr.mxu0 0.0
    %173 = vmatpush1.msra.mxu0 0.0
    %174 = vmatprep.subr.mxu0 0.0
    %175 = vmatpush1.msra.mxu0 0.0
    %176 = vmatprep.subr.mxu0 0.0
    %177 = vmatpush1.msra.mxu0 0.0
    %178 = vmatprep.subr.mxu0 0.0
    %179 = vmatpush1.msra.mxu0 0.0
    %180 = vmatprep.subr.mxu0 0.0
    %181 = vmatpush1.msra.mxu0 0.0
    %182 = vmatprep.subr.mxu0 0.0
    %183 = vmatpush1.msra.mxu0 0.0
    %184 = vmatprep.subr.mxu0 0.0
    %185 = vmatpush1.msra.mxu0 0.0
    %186 = vmatprep.subr.mxu0 0.0
    %187 = vmatpush1.msra.mxu0 0.0
    %188 = vmatprep.subr.mxu0 0.0
    %189 = vmatpush1.msra.mxu0 0.0
    %190 = vmatprep.subr.mxu0 0.0
    %191 = vmatpush1.msra.mxu0 0.0
    %192 = vmatprep.subr.mxu0 0.0
    %193 = vmatpush1.msra.mxu0 0.0
    %194 = vmatprep.subr.mxu0 0.0
    %195 = vmatpush1.msra.mxu0 0.0
    %196 = vmatprep.subr.mxu0 0.0
    %197 = vmatpush1.msra.mxu0 0.0
    %198 = vmatprep.subr.mxu0 0.0
    %199 = vmatpush1.msra.mxu0 0.0
    %200 = vmatprep.subr.mxu0 0.0
    %201 = vmatpush1.msra.mxu0 0.0
    %202 = vmatprep.subr.mxu0 0.0
    %203 = vmatpush1.msra.mxu0 0.0
    %204 = vmatprep.subr.mxu0 0.0
    %205 = vmatpush1.msra.mxu0 0.0
    %206 = vmatprep.subr.mxu0 0.0
    %207 = vmatpush1.msra.mxu0 0.0
    %208 = vmatprep.subr.mxu0 0.0
    %209 = vmatpush1.msra.mxu0 0.0
    %210 = vmatprep.subr.mxu0 0.0
    %211 = vmatpush1.msra.mxu0 0.0
    %212 = vmatprep.subr.mxu0 0.0
    %213 = vmatpush1.msra.mxu0 0.0
    %214 = vmatprep.subr.mxu0 0.0
    %215 = vmatpush1.msra.mxu0 0.0
    %216 = vmatprep.subr.mxu0 0.0
    %217 = vmatpush1.msra.mxu0 0.0
    %218 = vmatprep.mubr.f32.mxu0 0.0
    %219 = vmatmul.mubr.f32.gmra.mrb[0].mxu0 %v59
    %v220 = vpop.f32.mrb[0].mxu0
    %v221 = vadd.f32 0.0, %v220
    %v222 = vpop.f32.mrb[0].mxu0
    %223 = vmatprep.mubr.f32.mxu0 0.0
    %224 = vmatmul.mubr.f32.gmra.mrb[0].mxu0 %v62
    %v225 = vpop.f32.mrb[0].mxu0
    %v226 = vadd.f32 0.0, %v225
    %v227 = vpop.f32.mrb[0].mxu0
    %228 = vmatprep.mubr.f32.mxu0 0.0
    %229 = vmatmul.mubr.f32.gmra.mrb[0].mxu0 %v65
    %v230 = vpop.f32.mrb[0].mxu0
    %v231 = vadd.f32 0.0, %v230
    %v232 = vpop.f32.mrb[0].mxu0
    %233 = vmatprep.mubr.f32.mxu0 0.0
    %234 = vmatmul.mubr.f32.gmra.mrb[0].mxu0 %v68
    %v235 = vpop.f32.mrb[0].mxu0
    %v236 = vadd.f32 0.0, %v235
    %v237 = vpop.f32.mrb[0].mxu0
    %238 = vmatprep.mubr.f32.mxu0 0.0
    %239 = vmatmul.mubr.f32.gmra.mrb[0].mxu0 %v71
    %v240 = vpop.f32.mrb[0].mxu0
    %v241 = vadd.f32 0.0, %v240
    %v242 = vpop.f32.mrb[0].mxu0
    %243 = vmatprep.mubr.f32.mxu0 0.0
    %244 = vmatmul.mubr.f32.gmra.mrb[0].mxu0 %v74
    %v245 = vpop.f32.mrb[0].mxu0
    %v246 = vadd.f32 0.0, %v245
    %v247 = vpop.f32.mrb[0].mxu0
    %248 = vmatprep.mubr.f32.mxu0 0.0
    %249 = vmatmul.mubr.f32.gmra.mrb[0].mxu0 %v77
    %v250 = vpop.f32.mrb[0].mxu0
    %v251 = vadd.f32 0.0, %v250
    %v252 = vpop.f32.mrb[0].mxu0
    %253 = vmatprep.mubr.f32.mxu0 0.0
    %254 = vmatmul.mubr.f32.gmra.mrb[0].mxu0 %v80
    %v255 = vpop.f32.mrb[0].mxu0
    %v256 = vadd.f32 0.0, %v255
    %v257 = vpop.f32.mrb[0].mxu0
    %258 = vmatprep.mubr.f32.mxu0 0.0
    %259 = vmatmul.mubr.f32.gmra.mrb[0].mxu0 %v83
    %v260 = vpop.f32.mrb[0].mxu0
    %v261 = vadd.f32 0.0, %v260
    %v262 = vpop.f32.mrb[0].mxu0
    %263 = vmatprep.mubr.f32.mxu0 0.0
    %264 = vmatmul.mubr.f32.gmra.mrb[0].mxu0 %v86
    %v265 = vpop.f32.mrb[0].mxu0
    %v266 = vadd.f32 0.0, %v265
    %v267 = vpop.f32.mrb[0].mxu0
    %268 = vmatprep.mubr.f32.mxu0 0.0
    %269 = vmatmul.mubr.f32.gmra.mrb[0].mxu0 %v89
    %v270 = vpop.f32.mrb[0].mxu0
    %v271 = vadd.f32 0.0, %v270
    %v272 = vpop.f32.mrb[0].mxu0
    %273 = vmatprep.mubr.f32.mxu0 0.0
    %274 = vmatmul.mubr.f32.gmra.mrb[0].mxu0 %v92
    %v275 = vpop.f32.mrb[0].mxu0
    %v276 = vadd.f32 0.0, %v275
    %v277 = vpop.f32.mrb[0].mxu0
    %278 = vmatprep.mubr.f32.mxu0 0.0
    %279 = vmatmul.mubr.f32.gmra.mrb[0].mxu0 %v95
    %v280 = vpop.f32.mrb[0].mxu0
    %v281 = vadd.f32 0.0, %v280
    %v282 = vpop.f32.mrb[0].mxu0
    %283 = vmatprep.mubr.f32.mxu0 0.0
    %284 = vmatmul.mubr.f32.gmra.mrb[0].mxu0 %v98
    %v285 = vpop.f32.mrb[0].mxu0
    %v286 = vadd.f32 0.0, %v285
    %v287 = vpop.f32.mrb[0].mxu0
    %288 = vmatprep.mubr.f32.mxu0 0.0
    %289 = vmatmul.mubr.f32.gmra.mrb[0].mxu0 %v101
    %v290 = vpop.f32.mrb[0].mxu0
    %v291 = vadd.f32 0.0, %v290
    %v292 = vpop.f32.mrb[0].mxu0
    %293 = vmatprep.mubr.f32.mxu0 0.0
    %294 = vmatmul.mubr.f32.gmra.mrb[0].mxu0 %v104
    %v295 = vpop.f32.mrb[0].mxu0
    %v296 = vadd.f32 0.0, %v295
    %v297 = vpop.f32.mrb[0].mxu0
    %298 = vmatprep.mubr.f32.mxu0 0.0
    %299 = vmatmul.mubr.f32.gmra.mrb[0].mxu0 %v107
    %v300 = vpop.f32.mrb[0].mxu0
    %v301 = vadd.f32 0.0, %v300
    %v302 = vpop.f32.mrb[0].mxu0
    %303 = vmatprep.mubr.f32.mxu0 0.0
    %304 = vmatmul.mubr.f32.gmra.mrb[0].mxu0 %v110
    %v305 = vpop.f32.mrb[0].mxu0
    %v306 = vadd.f32 0.0, %v305
    %v307 = vpop.f32.mrb[0].mxu0
    %308 = vmatprep.mubr.f32.mxu0 0.0
    %309 = vmatmul.mubr.f32.gmra.mrb[0].mxu0 %v113
    %v310 = vpop.f32.mrb[0].mxu0
    %v311 = vadd.f32 0.0, %v310
    %v312 = vpop.f32.mrb[0].mxu0
    %313 = vmatprep.mubr.f32.mxu0 0.0
    %314 = vmatmul.mubr.f32.gmra.mrb[0].mxu0 %v116
    %v315 = vpop.f32.mrb[0].mxu0
    %v316 = vadd.f32 0.0, %v315
    %v317 = vpop.f32.mrb[0].mxu0
    %318 = vmatprep.mubr.f32.mxu0 0.0
    %319 = vmatmul.mubr.f32.gmra.mrb[0].mxu0 %v119
    %v320 = vpop.f32.mrb[0].mxu0
    %v321 = vadd.f32 0.0, %v320
    %v322 = vpop.f32.mrb[0].mxu0
    %323 = vmatprep.mubr.f32.mxu0 0.0
    %324 = vmatmul.mubr.f32.gmra.mrb[0].mxu0 %v122
    %v325 = vpop.f32.mrb[0].mxu0
    %v326 = vadd.f32 0.0, %v325
    %v327 = vpop.f32.mrb[0].mxu0
    %328 = vmatprep.mubr.f32.mxu0 0.0
    %329 = vmatmul.mubr.f32.gmra.mrb[0].mxu0 %v125
    %v330 = vpop.f32.mrb[0].mxu0
    %v331 = vadd.f32 0.0, %v330
    %v332 = vpop.f32.mrb[0].mxu0
    %333 = vmatprep.mubr.f32.mxu0 0.0
    %334 = vmatmul.mubr.f32.gmra.mrb[0].mxu0 %v128
    %v335 = vpop.f32.mrb[0].mxu0
    %v336 = vadd.f32 0.0, %v335
    %v337 = vpop.f32.mrb[0].mxu0
    %338 = vmatprep.mubr.f32.mxu0 0.0
    %339 = vmatmul.mubr.f32.gmra.mrb[0].mxu0 %v131
    %v340 = vpop.f32.mrb[0].mxu0
    %v341 = vadd.f32 0.0, %v340
    %v342 = vpop.f32.mrb[0].mxu0
    %343 = vmatprep.mubr.f32.mxu0 0.0
    %344 = vmatmul.mubr.f32.gmra.mrb[0].mxu0 %v134
    %v345 = vpop.f32.mrb[0].mxu0
    %v346 = vadd.f32 0.0, %v345
    %v347 = vpop.f32.mrb[0].mxu0
    %348 = vmatprep.mubr.f32.mxu0 0.0
    %349 = vmatmul.mubr.f32.gmra.mrb[0].mxu0 %v137
    %v350 = vpop.f32.mrb[0].mxu0
    %v351 = vadd.f32 0.0, %v350
    %v352 = vpop.f32.mrb[0].mxu0
    %353 = vmatprep.mubr.f32.mxu0 0.0
    %354 = vmatmul.mubr.f32.gmra.mrb[0].mxu0 %v140
    %v355 = vpop.f32.mrb[0].mxu0
    %v356 = vadd.f32 0.0, %v355
    %v357 = vpop.f32.mrb[0].mxu0
    %358 = vmatprep.mubr.f32.mxu0 0.0
    %359 = vmatmul.mubr.f32.gmra.mrb[0].mxu0 %v143
    %v360 = vpop.f32.mrb[0].mxu0
    %v361 = vadd.f32 0.0, %v360
    %v362 = vpop.f32.mrb[0].mxu0
    %363 = vmatprep.mubr.f32.mxu0 0.0
    %364 = vmatmul.mubr.f32.gmra.mrb[0].mxu0 %v146
    %v365 = vpop.f32.mrb[0].mxu0
    %v366 = vadd.f32 0.0, %v365
    %v367 = vpop.f32.mrb[0].mxu0
    %368 = vmatprep.mubr.f32.mxu0 0.0
    %369 = vmatmul.mubr.f32.gmra.mrb[0].mxu0 %v149
    %v370 = vpop.f32.mrb[0].mxu0
    %v371 = vadd.f32 0.0, %v370
    %v372 = vpop.f32.mrb[0].mxu0
    %373 = vmatprep.mubr.f32.mxu0 0.0
    %374 = vmatmul.mubr.f32.gmra.mrb[0].mxu0 %v152
    %v375 = vpop.f32.mrb[0].mxu0
    %v376 = vadd.f32 0.0, %v375
    %v377 = vpop.f32.mrb[0].mxu0
    %378 = vdwg.mxu0
    %v379 = vld [vmem:[%s2] sm:$0x1]
    %v380 = vld [vmem:[%s3] sm:$0x1]
    %v381 = vlaneseq
    %v382 = vand.u32 %v381, 127
    %vm383 = vcmp.lt.s32.totalorder %v382, 16
    %v384 = vsel %vm57, %v221, 0.0
    %385 = vadd.xlane.f32.xlu0 %v384
    %v386 = vpop.xlane.xlu0 %385
    %v387 = vsel %vm57, %v226, 0.0
    %388 = vadd.xlane.f32.xlu0 %v387
    %v389 = vpop.xlane.xlu0 %388
    %v390 = vsel %vm57, %v231, 0.0
    %391 = vadd.xlane.f32.xlu0 %v390
    %v392 = vpop.xlane.xlu0 %391
    %v393 = vsel %vm57, %v236, 0.0
    %394 = vadd.xlane.f32.xlu0 %v393
    %v395 = vpop.xlane.xlu0 %394
    %v396 = vsel %vm57, %v241, 0.0
    %397 = vadd.xlane.f32.xlu0 %v396
    %v398 = vpop.xlane.xlu0 %397
    %v399 = vsel %vm57, %v246, 0.0
    %400 = vadd.xlane.f32.xlu0 %v399
    %v401 = vpop.xlane.xlu0 %400
    %v402 = vsel %vm57, %v251, 0.0
    %403 = vadd.xlane.f32.xlu0 %v402
    %v404 = vpop.xlane.xlu0 %403
    %v405 = vsel %vm57, %v256, 0.0
    %406 = vadd.xlane.f32.xlu0 %v405
    %v407 = vpop.xlane.xlu0 %406
    %v408 = vsel %vm57, %v261, 0.0
    %409 = vadd.xlane.f32.xlu0 %v408
    %v410 = vpop.xlane.xlu0 %409
    %v411 = vsel %vm57, %v266, 0.0
    %412 = vadd.xlane.f32.xlu0 %v411
    %v413 = vpop.xlane.xlu0 %412
    %v414 = vsel %vm57, %v271, 0.0
    %415 = vadd.xlane.f32.xlu0 %v414
    %v416 = vpop.xlane.xlu0 %415
    %v417 = vsel %vm57, %v276, 0.0
    %418 = vadd.xlane.f32.xlu0 %v417
    %v419 = vpop.xlane.xlu0 %418
    %v420 = vsel %vm57, %v281, 0.0
    %421 = vadd.xlane.f32.xlu0 %v420
    %v422 = vpop.xlane.xlu0 %421
    %v423 = vsel %vm57, %v286, 0.0
    %424 = vadd.xlane.f32.xlu0 %v423
    %v425 = vpop.xlane.xlu0 %424
    %v426 = vsel %vm57, %v291, 0.0
    %427 = vadd.xlane.f32.xlu0 %v426
    %v428 = vpop.xlane.xlu0 %427
    %v429 = vsel %vm57, %v296, 0.0
    %430 = vadd.xlane.f32.xlu0 %v429
    %v431 = vpop.xlane.xlu0 %430
    %v432 = vsel %vm57, %v301, 0.0
    %433 = vadd.xlane.f32.xlu0 %v432
    %v434 = vpop.xlane.xlu0 %433
    %v435 = vsel %vm57, %v306, 0.0
    %436 = vadd.xlane.f32.xlu0 %v435
    %v437 = vpop.xlane.xlu0 %436
    %v438 = vsel %vm57, %v311, 0.0
    %439 = vadd.xlane.f32.xlu0 %v438
    %v440 = vpop.xlane.xlu0 %439
    %v441 = vsel %vm57, %v316, 0.0
    %442 = vadd.xlane.f32.xlu0 %v441
    %v443 = vpop.xlane.xlu0 %442
    %v444 = vsel %vm57, %v321, 0.0
    %445 = vadd.xlane.f32.xlu0 %v444
    %v446 = vpop.xlane.xlu0 %445
    %v447 = vsel %vm57, %v326, 0.0
    %448 = vadd.xlane.f32.xlu0 %v447
    %v449 = vpop.xlane.xlu0 %448
    %v450 = vsel %vm57, %v331, 0.0
    %451 = vadd.xlane.f32.xlu0 %v450
    %v452 = vpop.xlane.xlu0 %451
    %v453 = vsel %vm57, %v336, 0.0
    %454 = vadd.xlane.f32.xlu0 %v453
    %v455 = vpop.xlane.xlu0 %454
    %v456 = vsel %vm57, %v341, 0.0
    %457 = vadd.xlane.f32.xlu0 %v456
    %v458 = vpop.xlane.xlu0 %457
    %v459 = vsel %vm57, %v346, 0.0
    %460 = vadd.xlane.f32.xlu0 %v459
    %v461 = vpop.xlane.xlu0 %460
    %v462 = vsel %vm57, %v351, 0.0
    %463 = vadd.xlane.f32.xlu0 %v462
    %v464 = vpop.xlane.xlu0 %463
    %v465 = vsel %vm57, %v356, 0.0
    %466 = vadd.xlane.f32.xlu0 %v465
    %v467 = vpop.xlane.xlu0 %466
    %v468 = vsel %vm57, %v361, 0.0
    %469 = vadd.xlane.f32.xlu0 %v468
    %v470 = vpop.xlane.xlu0 %469
    %v471 = vsel %vm57, %v366, 0.0
    %472 = vadd.xlane.f32.xlu0 %v471
    %v473 = vpop.xlane.xlu0 %472
    %v474 = vsel %vm57, %v371, 0.0
    %475 = vadd.xlane.f32.xlu0 %v474
    %v476 = vpop.xlane.xlu0 %475
    %v477 = vsel %vm57, %v376, 0.0
    %478 = vadd.xlane.f32.xlu0 %v477
    %v479 = vpop.xlane.xlu0 %478
    %v480 = vsel %vm383, 1, 0
    %vm481 = vcmp.eq.s32.totalorder %v480, 1
    %v482 = vsel %vm481, %v221, 0.0
    %v483 = vsel %vm481, %v226, 0.0
    %v484 = vsel %vm481, %v231, 0.0
    %v485 = vsel %vm481, %v236, 0.0
    %v486 = vsel %vm481, %v241, 0.0
    %v487 = vsel %vm481, %v246, 0.0
    %v488 = vsel %vm481, %v251, 0.0
    %v489 = vsel %vm481, %v256, 0.0
    %v490 = vsel %vm481, %v261, 0.0
    %v491 = vsel %vm481, %v266, 0.0
    %v492 = vsel %vm481, %v271, 0.0
    %v493 = vsel %vm481, %v276, 0.0
    %v494 = vsel %vm481, %v281, 0.0
    %v495 = vsel %vm481, %v286, 0.0
    %v496 = vsel %vm481, %v291, 0.0
    %v497 = vsel %vm481, %v296, 0.0
    %v498 = vsel %vm481, %v301, 0.0
    %v499 = vsel %vm481, %v306, 0.0
    %v500 = vsel %vm481, %v311, 0.0
    %v501 = vsel %vm481, %v316, 0.0
    %v502 = vsel %vm481, %v321, 0.0
    %v503 = vsel %vm481, %v326, 0.0
    %v504 = vsel %vm481, %v331, 0.0
    %v505 = vsel %vm481, %v336, 0.0
    %v506 = vsel %vm481, %v341, 0.0
    %v507 = vsel %vm481, %v346, 0.0
    %v508 = vsel %vm481, %v351, 0.0
    %v509 = vsel %vm481, %v356, 0.0
    %v510 = vsel %vm481, %v361, 0.0
    %v511 = vsel %vm481, %v366, 0.0
    %v512 = vsel %vm481, %v371, 0.0
    %v513 = vsel %vm481, %v376, 0.0
    %v514 = vsel %vm57, %v482, 0.0
    %515 = vadd.xlane.f32.xlu0 %v514
    %v516 = vpop.xlane.xlu0 %515
    %v517 = vsel %vm57, %v483, 0.0
    %518 = vadd.xlane.f32.xlu0 %v517
    %v519 = vpop.xlane.xlu0 %518
    %v520 = vsel %vm57, %v484, 0.0
    %521 = vadd.xlane.f32.xlu0 %v520
    %v522 = vpop.xlane.xlu0 %521
    %v523 = vsel %vm57, %v485, 0.0
    %524 = vadd.xlane.f32.xlu0 %v523
    %v525 = vpop.xlane.xlu0 %524
    %v526 = vsel %vm57, %v486, 0.0
    %527 = vadd.xlane.f32.xlu0 %v526
    %v528 = vpop.xlane.xlu0 %527
    %v529 = vsel %vm57, %v487, 0.0
    %530 = vadd.xlane.f32.xlu0 %v529
    %v531 = vpop.xlane.xlu0 %530
    %v532 = vsel %vm57, %v488, 0.0
    %533 = vadd.xlane.f32.xlu0 %v532
    %v534 = vpop.xlane.xlu0 %533
    %v535 = vsel %vm57, %v489, 0.0
    %536 = vadd.xlane.f32.xlu0 %v535
    %v537 = vpop.xlane.xlu0 %536
    %v538 = vsel %vm57, %v490, 0.0
    %539 = vadd.xlane.f32.xlu0 %v538
    %v540 = vpop.xlane.xlu0 %539
    %v541 = vsel %vm57, %v491, 0.0
    %542 = vadd.xlane.f32.xlu0 %v541
    %v543 = vpop.xlane.xlu0 %542
    %v544 = vsel %vm57, %v492, 0.0
    %545 = vadd.xlane.f32.xlu0 %v544
    %v546 = vpop.xlane.xlu0 %545
    %v547 = vsel %vm57, %v493, 0.0
    %548 = vadd.xlane.f32.xlu0 %v547
    %v549 = vpop.xlane.xlu0 %548
    %v550 = vsel %vm57, %v494, 0.0
    %551 = vadd.xlane.f32.xlu0 %v550
    %v552 = vpop.xlane.xlu0 %551
    %v553 = vsel %vm57, %v495, 0.0
    %554 = vadd.xlane.f32.xlu0 %v553
    %v555 = vpop.xlane.xlu0 %554
    %v556 = vsel %vm57, %v496, 0.0
    %557 = vadd.xlane.f32.xlu0 %v556
    %v558 = vpop.xlane.xlu0 %557
    %v559 = vsel %vm57, %v497, 0.0
    %560 = vadd.xlane.f32.xlu0 %v559
    %v561 = vpop.xlane.xlu0 %560
    %v562 = vsel %vm57, %v498, 0.0
    %563 = vadd.xlane.f32.xlu0 %v562
    %v564 = vpop.xlane.xlu0 %563
    %v565 = vsel %vm57, %v499, 0.0
    %566 = vadd.xlane.f32.xlu0 %v565
    %v567 = vpop.xlane.xlu0 %566
    %v568 = vsel %vm57, %v500, 0.0
    %569 = vadd.xlane.f32.xlu0 %v568
    %v570 = vpop.xlane.xlu0 %569
    %v571 = vsel %vm57, %v501, 0.0
    %572 = vadd.xlane.f32.xlu0 %v571
    %v573 = vpop.xlane.xlu0 %572
    %v574 = vsel %vm57, %v502, 0.0
    %575 = vadd.xlane.f32.xlu0 %v574
    %v576 = vpop.xlane.xlu0 %575
    %v577 = vsel %vm57, %v503, 0.0
    %578 = vadd.xlane.f32.xlu0 %v577
    %v579 = vpop.xlane.xlu0 %578
    %v580 = vsel %vm57, %v504, 0.0
    %581 = vadd.xlane.f32.xlu0 %v580
    %v582 = vpop.xlane.xlu0 %581
    %v583 = vsel %vm57, %v505, 0.0
    %584 = vadd.xlane.f32.xlu0 %v583
    %v585 = vpop.xlane.xlu0 %584
    %v586 = vsel %vm57, %v506, 0.0
    %587 = vadd.xlane.f32.xlu0 %v586
    %v588 = vpop.xlane.xlu0 %587
    %v589 = vsel %vm57, %v507, 0.0
    %590 = vadd.xlane.f32.xlu0 %v589
    %v591 = vpop.xlane.xlu0 %590
    %v592 = vsel %vm57, %v508, 0.0
    %593 = vadd.xlane.f32.xlu0 %v592
    %v594 = vpop.xlane.xlu0 %593
    %v595 = vsel %vm57, %v509, 0.0
    %596 = vadd.xlane.f32.xlu0 %v595
    %v597 = vpop.xlane.xlu0 %596
    %v598 = vsel %vm57, %v510, 0.0
    %599 = vadd.xlane.f32.xlu0 %v598
    %v600 = vpop.xlane.xlu0 %599
    %v601 = vsel %vm57, %v511, 0.0
    %602 = vadd.xlane.f32.xlu0 %v601
    %v603 = vpop.xlane.xlu0 %602
    %v604 = vsel %vm57, %v512, 0.0
    %605 = vadd.xlane.f32.xlu0 %v604
    %v606 = vpop.xlane.xlu0 %605
    %v607 = vsel %vm57, %v513, 0.0
    %608 = vadd.xlane.f32.xlu0 %v607
    %v609 = vpop.xlane.xlu0 %608
    %v610 = vsub.f32 %v386, %v516
    %v611 = vsub.f32 %v389, %v519
    %v612 = vsub.f32 %v392, %v522
    %v613 = vsub.f32 %v395, %v525
    %v614 = vsub.f32 %v398, %v528
    %v615 = vsub.f32 %v401, %v531
    %v616 = vsub.f32 %v404, %v534
    %v617 = vsub.f32 %v407, %v537
    %v618 = vsub.f32 %v410, %v540
    %v619 = vsub.f32 %v413, %v543
    %v620 = vsub.f32 %v416, %v546
    %v621 = vsub.f32 %v419, %v549
    %v622 = vsub.f32 %v422, %v552
    %v623 = vsub.f32 %v425, %v555
    %v624 = vsub.f32 %v428, %v558
    %v625 = vsub.f32 %v431, %v561
    %v626 = vsub.f32 %v434, %v564
    %v627 = vsub.f32 %v437, %v567
    %v628 = vsub.f32 %v440, %v570
    %v629 = vsub.f32 %v443, %v573
    %v630 = vsub.f32 %v446, %v576
    %v631 = vsub.f32 %v449, %v579
    %v632 = vsub.f32 %v452, %v582
    %v633 = vsub.f32 %v455, %v585
    %v634 = vsub.f32 %v458, %v588
    %v635 = vsub.f32 %v461, %v591
    %v636 = vsub.f32 %v464, %v594
    %v637 = vsub.f32 %v467, %v597
    %v638 = vsub.f32 %v470, %v600
    %v639 = vsub.f32 %v473, %v603
    %v640 = vsub.f32 %v476, %v606
    %v641 = vsub.f32 %v479, %v609
    %v642 = vsel %vm481, %v516, %v610
    %v643 = vsel %vm481, %v519, %v611
    %v644 = vsel %vm481, %v522, %v612
    %v645 = vsel %vm481, %v525, %v613
    %v646 = vsel %vm481, %v528, %v614
    %v647 = vsel %vm481, %v531, %v615
    %v648 = vsel %vm481, %v534, %v616
    %v649 = vsel %vm481, %v537, %v617
    %v650 = vsel %vm481, %v540, %v618
    %v651 = vsel %vm481, %v543, %v619
    %v652 = vsel %vm481, %v546, %v620
    %v653 = vsel %vm481, %v549, %v621
    %v654 = vsel %vm481, %v552, %v622
    %v655 = vsel %vm481, %v555, %v623
    %v656 = vsel %vm481, %v558, %v624
    %v657 = vsel %vm481, %v561, %v625
    %v658 = vsel %vm481, %v564, %v626
    %v659 = vsel %vm481, %v567, %v627
    %v660 = vsel %vm481, %v570, %v628
    %v661 = vsel %vm481, %v573, %v629
    %v662 = vsel %vm481, %v576, %v630
    %v663 = vsel %vm481, %v579, %v631
    %v664 = vsel %vm481, %v582, %v632
    %v665 = vsel %vm481, %v585, %v633
    %v666 = vsel %vm481, %v588, %v634
    %v667 = vsel %vm481, %v591, %v635
    %v668 = vsel %vm481, %v594, %v636
    %v669 = vsel %vm481, %v597, %v637
    %v670 = vsel %vm481, %v600, %v638
    %v671 = vsel %vm481, %v603, %v639
    %v672 = vsel %vm481, %v606, %v640
    %v673 = vsel %vm481, %v609, %v641
    %v674 = vmul.f32 %v642, 0.0625
    %v675 = vmul.f32 %v643, 0.0625
    %v676 = vmul.f32 %v644, 0.0625
    %v677 = vmul.f32 %v645, 0.0625
    %v678 = vmul.f32 %v646, 0.0625
    %v679 = vmul.f32 %v647, 0.0625
    %v680 = vmul.f32 %v648, 0.0625
    %v681 = vmul.f32 %v649, 0.0625
    %v682 = vmul.f32 %v650, 0.0625
    %v683 = vmul.f32 %v651, 0.0625
    %v684 = vmul.f32 %v652, 0.0625
    %v685 = vmul.f32 %v653, 0.0625
    %v686 = vmul.f32 %v654, 0.0625
    %v687 = vmul.f32 %v655, 0.0625
    %v688 = vmul.f32 %v656, 0.0625
    %v689 = vmul.f32 %v657, 0.0625
    %v690 = vmul.f32 %v658, 0.0625
    %v691 = vmul.f32 %v659, 0.0625
    %v692 = vmul.f32 %v660, 0.0625
    %v693 = vmul.f32 %v661, 0.0625
    %v694 = vmul.f32 %v662, 0.0625
    %v695 = vmul.f32 %v663, 0.0625
    %v696 = vmul.f32 %v664, 0.0625
    %v697 = vmul.f32 %v665, 0.0625
    %v698 = vmul.f32 %v666, 0.0625
    %v699 = vmul.f32 %v667, 0.0625
    %v700 = vmul.f32 %v668, 0.0625
    %v701 = vmul.f32 %v669, 0.0625
    %v702 = vmul.f32 %v670, 0.0625
    %v703 = vmul.f32 %v671, 0.0625
    %v704 = vmul.f32 %v672, 0.0625
    %v705 = vmul.f32 %v673, 0.0625
    %v706 = vsub.f32 %v221, %v674
    %v707 = vsub.f32 %v226, %v675
    %v708 = vsub.f32 %v231, %v676
    %v709 = vsub.f32 %v236, %v677
    %v710 = vsub.f32 %v241, %v678
    %v711 = vsub.f32 %v246, %v679
    %v712 = vsub.f32 %v251, %v680
    %v713 = vsub.f32 %v256, %v681
    %v714 = vsub.f32 %v261, %v682
    %v715 = vsub.f32 %v266, %v683
    %v716 = vsub.f32 %v271, %v684
    %v717 = vsub.f32 %v276, %v685
    %v718 = vsub.f32 %v281, %v686
    %v719 = vsub.f32 %v286, %v687
    %v720 = vsub.f32 %v291, %v688
    %v721 = vsub.f32 %v296, %v689
    %v722 = vsub.f32 %v301, %v690
    %v723 = vsub.f32 %v306, %v691
    %v724 = vsub.f32 %v311, %v692
    %v725 = vsub.f32 %v316, %v693
    %v726 = vsub.f32 %v321, %v694
    %v727 = vsub.f32 %v326, %v695
    %v728 = vsub.f32 %v331, %v696
    %v729 = vsub.f32 %v336, %v697
    %v730 = vsub.f32 %v341, %v698
    %v731 = vsub.f32 %v346, %v699
    %v732 = vsub.f32 %v351, %v700
    %v733 = vsub.f32 %v356, %v701
    %v734 = vsub.f32 %v361, %v702
    %v735 = vsub.f32 %v366, %v703
    %v736 = vsub.f32 %v371, %v704
    %v737 = vsub.f32 %v376, %v705
    %v738 = vmul.f32 %v706, %v706
    %v739 = vmul.f32 %v707, %v707
    %v740 = vmul.f32 %v708, %v708
    %v741 = vmul.f32 %v709, %v709
    %v742 = vmul.f32 %v710, %v710
    %v743 = vmul.f32 %v711, %v711
    %v744 = vmul.f32 %v712, %v712
    %v745 = vmul.f32 %v713, %v713
    %v746 = vmul.f32 %v714, %v714
    %v747 = vmul.f32 %v715, %v715
    %v748 = vmul.f32 %v716, %v716
    %v749 = vmul.f32 %v717, %v717
    %v750 = vmul.f32 %v718, %v718
    %v751 = vmul.f32 %v719, %v719
    %v752 = vmul.f32 %v720, %v720
    %v753 = vmul.f32 %v721, %v721
    %v754 = vmul.f32 %v722, %v722
    %v755 = vmul.f32 %v723, %v723
    %v756 = vmul.f32 %v724, %v724
    %v757 = vmul.f32 %v725, %v725
    %v758 = vmul.f32 %v726, %v726
    %v759 = vmul.f32 %v727, %v727
    %v760 = vmul.f32 %v728, %v728
    %v761 = vmul.f32 %v729, %v729
    %v762 = vmul.f32 %v730, %v730
    %v763 = vmul.f32 %v731, %v731
    %v764 = vmul.f32 %v732, %v732
    %v765 = vmul.f32 %v733, %v733
    %v766 = vmul.f32 %v734, %v734
    %v767 = vmul.f32 %v735, %v735
    %v768 = vmul.f32 %v736, %v736
    %v769 = vmul.f32 %v737, %v737
    %v770 = vsel %vm57, %v738, 0.0
    %771 = vadd.xlane.f32.xlu0 %v770
    %v772 = vpop.xlane.xlu0 %771
    %v773 = vsel %vm57, %v739, 0.0
    %774 = vadd.xlane.f32.xlu0 %v773
    %v775 = vpop.xlane.xlu0 %774
    %v776 = vsel %vm57, %v740, 0.0
    %777 = vadd.xlane.f32.xlu0 %v776
    %v778 = vpop.xlane.xlu0 %777
    %v779 = vsel %vm57, %v741, 0.0
    %780 = vadd.xlane.f32.xlu0 %v779
    %v781 = vpop.xlane.xlu0 %780
    %v782 = vsel %vm57, %v742, 0.0
    %783 = vadd.xlane.f32.xlu0 %v782
    %v784 = vpop.xlane.xlu0 %783
    %v785 = vsel %vm57, %v743, 0.0
    %786 = vadd.xlane.f32.xlu0 %v785
    %v787 = vpop.xlane.xlu0 %786
    %v788 = vsel %vm57, %v744, 0.0
    %789 = vadd.xlane.f32.xlu0 %v788
    %v790 = vpop.xlane.xlu0 %789
    %v791 = vsel %vm57, %v745, 0.0
    %792 = vadd.xlane.f32.xlu0 %v791
    %v793 = vpop.xlane.xlu0 %792
    %v794 = vsel %vm57, %v746, 0.0
    %795 = vadd.xlane.f32.xlu0 %v794
    %v796 = vpop.xlane.xlu0 %795
    %v797 = vsel %vm57, %v747, 0.0
    %798 = vadd.xlane.f32.xlu0 %v797
    %v799 = vpop.xlane.xlu0 %798
    %v800 = vsel %vm57, %v748, 0.0
    %801 = vadd.xlane.f32.xlu0 %v800
    %v802 = vpop.xlane.xlu0 %801
    %v803 = vsel %vm57, %v749, 0.0
    %804 = vadd.xlane.f32.xlu0 %v803
    %v805 = vpop.xlane.xlu0 %804
    %v806 = vsel %vm57, %v750, 0.0
    %807 = vadd.xlane.f32.xlu0 %v806
    %v808 = vpop.xlane.xlu0 %807
    %v809 = vsel %vm57, %v751, 0.0
    %810 = vadd.xlane.f32.xlu0 %v809
    %v811 = vpop.xlane.xlu0 %810
    %v812 = vsel %vm57, %v752, 0.0
    %813 = vadd.xlane.f32.xlu0 %v812
    %v814 = vpop.xlane.xlu0 %813
    %v815 = vsel %vm57, %v753, 0.0
    %816 = vadd.xlane.f32.xlu0 %v815
    %v817 = vpop.xlane.xlu0 %816
    %v818 = vsel %vm57, %v754, 0.0
    %819 = vadd.xlane.f32.xlu0 %v818
    %v820 = vpop.xlane.xlu0 %819
    %v821 = vsel %vm57, %v755, 0.0
    %822 = vadd.xlane.f32.xlu0 %v821
    %v823 = vpop.xlane.xlu0 %822
    %v824 = vsel %vm57, %v756, 0.0
    %825 = vadd.xlane.f32.xlu0 %v824
    %v826 = vpop.xlane.xlu0 %825
    %v827 = vsel %vm57, %v757, 0.0
    %828 = vadd.xlane.f32.xlu0 %v827
    %v829 = vpop.xlane.xlu0 %828
    %v830 = vsel %vm57, %v758, 0.0
    %831 = vadd.xlane.f32.xlu0 %v830
    %v832 = vpop.xlane.xlu0 %831
    %v833 = vsel %vm57, %v759, 0.0
    %834 = vadd.xlane.f32.xlu0 %v833
    %v835 = vpop.xlane.xlu0 %834
    %v836 = vsel %vm57, %v760, 0.0
    %837 = vadd.xlane.f32.xlu0 %v836
    %v838 = vpop.xlane.xlu0 %837
    %v839 = vsel %vm57, %v761, 0.0
    %840 = vadd.xlane.f32.xlu0 %v839
    %v841 = vpop.xlane.xlu0 %840
    %v842 = vsel %vm57, %v762, 0.0
    %843 = vadd.xlane.f32.xlu0 %v842
    %v844 = vpop.xlane.xlu0 %843
    %v845 = vsel %vm57, %v763, 0.0
    %846 = vadd.xlane.f32.xlu0 %v845
    %v847 = vpop.xlane.xlu0 %846
    %v848 = vsel %vm57, %v764, 0.0
    %849 = vadd.xlane.f32.xlu0 %v848
    %v850 = vpop.xlane.xlu0 %849
    %v851 = vsel %vm57, %v765, 0.0
    %852 = vadd.xlane.f32.xlu0 %v851
    %v853 = vpop.xlane.xlu0 %852
    %v854 = vsel %vm57, %v766, 0.0
    %855 = vadd.xlane.f32.xlu0 %v854
    %v856 = vpop.xlane.xlu0 %855
    %v857 = vsel %vm57, %v767, 0.0
    %858 = vadd.xlane.f32.xlu0 %v857
    %v859 = vpop.xlane.xlu0 %858
    %v860 = vsel %vm57, %v768, 0.0
    %861 = vadd.xlane.f32.xlu0 %v860
    %v862 = vpop.xlane.xlu0 %861
    %v863 = vsel %vm57, %v769, 0.0
    %864 = vadd.xlane.f32.xlu0 %v863
    %v865 = vpop.xlane.xlu0 %864
    %v866 = vsel %vm481, %v738, 0.0
    %v867 = vsel %vm481, %v739, 0.0
    %v868 = vsel %vm481, %v740, 0.0
    %v869 = vsel %vm481, %v741, 0.0
    %v870 = vsel %vm481, %v742, 0.0
    %v871 = vsel %vm481, %v743, 0.0
    %v872 = vsel %vm481, %v744, 0.0
    %v873 = vsel %vm481, %v745, 0.0
    %v874 = vsel %vm481, %v746, 0.0
    %v875 = vsel %vm481, %v747, 0.0
    %v876 = vsel %vm481, %v748, 0.0
    %v877 = vsel %vm481, %v749, 0.0
    %v878 = vsel %vm481, %v750, 0.0
    %v879 = vsel %vm481, %v751, 0.0
    %v880 = vsel %vm481, %v752, 0.0
    %v881 = vsel %vm481, %v753, 0.0
    %v882 = vsel %vm481, %v754, 0.0
    %v883 = vsel %vm481, %v755, 0.0
    %v884 = vsel %vm481, %v756, 0.0
    %v885 = vsel %vm481, %v757, 0.0
    %v886 = vsel %vm481, %v758, 0.0
    %v887 = vsel %vm481, %v759, 0.0
    %v888 = vsel %vm481, %v760, 0.0
    %v889 = vsel %vm481, %v761, 0.0
    %v890 = vsel %vm481, %v762, 0.0
    %v891 = vsel %vm481, %v763, 0.0
    %v892 = vsel %vm481, %v764, 0.0
    %v893 = vsel %vm481, %v765, 0.0
    %v894 = vsel %vm481, %v766, 0.0
    %v895 = vsel %vm481, %v767, 0.0
    %v896 = vsel %vm481, %v768, 0.0
    %v897 = vsel %vm481, %v769, 0.0
    %v898 = vsel %vm57, %v866, 0.0
    %899 = vadd.xlane.f32.xlu0 %v898
    %v900 = vpop.xlane.xlu0 %899
    %v901 = vsel %vm57, %v867, 0.0
    %902 = vadd.xlane.f32.xlu0 %v901
    %v903 = vpop.xlane.xlu0 %902
    %v904 = vsel %vm57, %v868, 0.0
    %905 = vadd.xlane.f32.xlu0 %v904
    %v906 = vpop.xlane.xlu0 %905
    %v907 = vsel %vm57, %v869, 0.0
    %908 = vadd.xlane.f32.xlu0 %v907
    %v909 = vpop.xlane.xlu0 %908
    %v910 = vsel %vm57, %v870, 0.0
    %911 = vadd.xlane.f32.xlu0 %v910
    %v912 = vpop.xlane.xlu0 %911
    %v913 = vsel %vm57, %v871, 0.0
    %914 = vadd.xlane.f32.xlu0 %v913
    %v915 = vpop.xlane.xlu0 %914
    %v916 = vsel %vm57, %v872, 0.0
    %917 = vadd.xlane.f32.xlu0 %v916
    %v918 = vpop.xlane.xlu0 %917
    %v919 = vsel %vm57, %v873, 0.0
    %920 = vadd.xlane.f32.xlu0 %v919
    %v921 = vpop.xlane.xlu0 %920
    %v922 = vsel %vm57, %v874, 0.0
    %923 = vadd.xlane.f32.xlu0 %v922
    %v924 = vpop.xlane.xlu0 %923
    %v925 = vsel %vm57, %v875, 0.0
    %926 = vadd.xlane.f32.xlu0 %v925
    %v927 = vpop.xlane.xlu0 %926
    %v928 = vsel %vm57, %v876, 0.0
    %929 = vadd.xlane.f32.xlu0 %v928
    %v930 = vpop.xlane.xlu0 %929
    %v931 = vsel %vm57, %v877, 0.0
    %932 = vadd.xlane.f32.xlu0 %v931
    %v933 = vpop.xlane.xlu0 %932
    %v934 = vsel %vm57, %v878, 0.0
    %935 = vadd.xlane.f32.xlu0 %v934
    %v936 = vpop.xlane.xlu0 %935
    %v937 = vsel %vm57, %v879, 0.0
    %938 = vadd.xlane.f32.xlu0 %v937
    %v939 = vpop.xlane.xlu0 %938
    %v940 = vsel %vm57, %v880, 0.0
    %941 = vadd.xlane.f32.xlu0 %v940
    %v942 = vpop.xlane.xlu0 %941
    %v943 = vsel %vm57, %v881, 0.0
    %944 = vadd.xlane.f32.xlu0 %v943
    %v945 = vpop.xlane.xlu0 %944
    %v946 = vsel %vm57, %v882, 0.0
    %947 = vadd.xlane.f32.xlu0 %v946
    %v948 = vpop.xlane.xlu0 %947
    %v949 = vsel %vm57, %v883, 0.0
    %950 = vadd.xlane.f32.xlu0 %v949
    %v951 = vpop.xlane.xlu0 %950
    %v952 = vsel %vm57, %v884, 0.0
    %953 = vadd.xlane.f32.xlu0 %v952
    %v954 = vpop.xlane.xlu0 %953
    %v955 = vsel %vm57, %v885, 0.0
    %956 = vadd.xlane.f32.xlu0 %v955
    %v957 = vpop.xlane.xlu0 %956
    %v958 = vsel %vm57, %v886, 0.0
    %959 = vadd.xlane.f32.xlu0 %v958
    %v960 = vpop.xlane.xlu0 %959
    %v961 = vsel %vm57, %v887, 0.0
    %962 = vadd.xlane.f32.xlu0 %v961
    %v963 = vpop.xlane.xlu0 %962
    %v964 = vsel %vm57, %v888, 0.0
    %965 = vadd.xlane.f32.xlu0 %v964
    %v966 = vpop.xlane.xlu0 %965
    %v967 = vsel %vm57, %v889, 0.0
    %968 = vadd.xlane.f32.xlu0 %v967
    %v969 = vpop.xlane.xlu0 %968
    %v970 = vsel %vm57, %v890, 0.0
    %971 = vadd.xlane.f32.xlu0 %v970
    %v972 = vpop.xlane.xlu0 %971
    %v973 = vsel %vm57, %v891, 0.0
    %974 = vadd.xlane.f32.xlu0 %v973
    %v975 = vpop.xlane.xlu0 %974
    %v976 = vsel %vm57, %v892, 0.0
    %977 = vadd.xlane.f32.xlu0 %v976
    %v978 = vpop.xlane.xlu0 %977
    %v979 = vsel %vm57, %v893, 0.0
    %980 = vadd.xlane.f32.xlu0 %v979
    %v981 = vpop.xlane.xlu0 %980
    %v982 = vsel %vm57, %v894, 0.0
    %983 = vadd.xlane.f32.xlu0 %v982
    %v984 = vpop.xlane.xlu0 %983
    %v985 = vsel %vm57, %v895, 0.0
    %986 = vadd.xlane.f32.xlu0 %v985
    %v987 = vpop.xlane.xlu0 %986
    %v988 = vsel %vm57, %v896, 0.0
    %989 = vadd.xlane.f32.xlu0 %v988
    %v990 = vpop.xlane.xlu0 %989
    %v991 = vsel %vm57, %v897, 0.0
    %992 = vadd.xlane.f32.xlu0 %v991
    %v993 = vpop.xlane.xlu0 %992
    %v994 = vsub.f32 %v772, %v900
    %v995 = vsub.f32 %v775, %v903
    %v996 = vsub.f32 %v778, %v906
    %v997 = vsub.f32 %v781, %v909
    %v998 = vsub.f32 %v784, %v912
    %v999 = vsub.f32 %v787, %v915
    %v1000 = vsub.f32 %v790, %v918
    %v1001 = vsub.f32 %v793, %v921
    %v1002 = vsub.f32 %v796, %v924
    %v1003 = vsub.f32 %v799, %v927
    %v1004 = vsub.f32 %v802, %v930
    %v1005 = vsub.f32 %v805, %v933
    %v1006 = vsub.f32 %v808, %v936
    %v1007 = vsub.f32 %v811, %v939
    %v1008 = vsub.f32 %v814, %v942
    %v1009 = vsub.f32 %v817, %v945
    %v1010 = vsub.f32 %v820, %v948
    %v1011 = vsub.f32 %v823, %v951
    %v1012 = vsub.f32 %v826, %v954
    %v1013 = vsub.f32 %v829, %v957
    %v1014 = vsub.f32 %v832, %v960
    %v1015 = vsub.f32 %v835, %v963
    %v1016 = vsub.f32 %v838, %v966
    %v1017 = vsub.f32 %v841, %v969
    %v1018 = vsub.f32 %v844, %v972
    %v1019 = vsub.f32 %v847, %v975
    %v1020 = vsub.f32 %v850, %v978
    %v1021 = vsub.f32 %v853, %v981
    %v1022 = vsub.f32 %v856, %v984
    %v1023 = vsub.f32 %v859, %v987
    %v1024 = vsub.f32 %v862, %v990
    %v1025 = vsub.f32 %v865, %v993
    %v1026 = vsel %vm481, %v900, %v994
    %v1027 = vsel %vm481, %v903, %v995
    %v1028 = vsel %vm481, %v906, %v996
    %v1029 = vsel %vm481, %v909, %v997
    %v1030 = vsel %vm481, %v912, %v998
    %v1031 = vsel %vm481, %v915, %v999
    %v1032 = vsel %vm481, %v918, %v1000
    %v1033 = vsel %vm481, %v921, %v1001
    %v1034 = vsel %vm481, %v924, %v1002
    %v1035 = vsel %vm481, %v927, %v1003
    %v1036 = vsel %vm481, %v930, %v1004
    %v1037 = vsel %vm481, %v933, %v1005
    %v1038 = vsel %vm481, %v936, %v1006
    %v1039 = vsel %vm481, %v939, %v1007
    %v1040 = vsel %vm481, %v942, %v1008
    %v1041 = vsel %vm481, %v945, %v1009
    %v1042 = vsel %vm481, %v948, %v1010
    %v1043 = vsel %vm481, %v951, %v1011
    %v1044 = vsel %vm481, %v954, %v1012
    %v1045 = vsel %vm481, %v957, %v1013
    %v1046 = vsel %vm481, %v960, %v1014
    %v1047 = vsel %vm481, %v963, %v1015
    %v1048 = vsel %vm481, %v966, %v1016
    %v1049 = vsel %vm481, %v969, %v1017
    %v1050 = vsel %vm481, %v972, %v1018
    %v1051 = vsel %vm481, %v975, %v1019
    %v1052 = vsel %vm481, %v978, %v1020
    %v1053 = vsel %vm481, %v981, %v1021
    %v1054 = vsel %vm481, %v984, %v1022
    %v1055 = vsel %vm481, %v987, %v1023
    %v1056 = vsel %vm481, %v990, %v1024
    %v1057 = vsel %vm481, %v993, %v1025
    %v1058 = vmul.f32 %v1026, 0.0625
    %v1059 = vmul.f32 %v1027, 0.0625
    %v1060 = vmul.f32 %v1028, 0.0625
    %v1061 = vmul.f32 %v1029, 0.0625
    %v1062 = vmul.f32 %v1030, 0.0625
    %v1063 = vmul.f32 %v1031, 0.0625
    %v1064 = vmul.f32 %v1032, 0.0625
    %v1065 = vmul.f32 %v1033, 0.0625
    %v1066 = vmul.f32 %v1034, 0.0625
    %v1067 = vmul.f32 %v1035, 0.0625
    %v1068 = vmul.f32 %v1036, 0.0625
    %v1069 = vmul.f32 %v1037, 0.0625
    %v1070 = vmul.f32 %v1038, 0.0625
    %v1071 = vmul.f32 %v1039, 0.0625
    %v1072 = vmul.f32 %v1040, 0.0625
    %v1073 = vmul.f32 %v1041, 0.0625
    %v1074 = vmul.f32 %v1042, 0.0625
    %v1075 = vmul.f32 %v1043, 0.0625
    %v1076 = vmul.f32 %v1044, 0.0625
    %v1077 = vmul.f32 %v1045, 0.0625
    %v1078 = vmul.f32 %v1046, 0.0625
    %v1079 = vmul.f32 %v1047, 0.0625
    %v1080 = vmul.f32 %v1048, 0.0625
    %v1081 = vmul.f32 %v1049, 0.0625
    %v1082 = vmul.f32 %v1050, 0.0625
    %v1083 = vmul.f32 %v1051, 0.0625
    %v1084 = vmul.f32 %v1052, 0.0625
    %v1085 = vmul.f32 %v1053, 0.0625
    %v1086 = vmul.f32 %v1054, 0.0625
    %v1087 = vmul.f32 %v1055, 0.0625
    %v1088 = vmul.f32 %v1056, 0.0625
    %v1089 = vmul.f32 %v1057, 0.0625
    %v1090 = vadd.f32 %v1058, 1e-05
    %v1091 = vadd.f32 %v1059, 1e-05
    %v1092 = vadd.f32 %v1060, 1e-05
    %v1093 = vadd.f32 %v1061, 1e-05
    %v1094 = vadd.f32 %v1062, 1e-05
    %v1095 = vadd.f32 %v1063, 1e-05
    %v1096 = vadd.f32 %v1064, 1e-05
    %v1097 = vadd.f32 %v1065, 1e-05
    %v1098 = vadd.f32 %v1066, 1e-05
    %v1099 = vadd.f32 %v1067, 1e-05
    %v1100 = vadd.f32 %v1068, 1e-05
    %v1101 = vadd.f32 %v1069, 1e-05
    %v1102 = vadd.f32 %v1070, 1e-05
    %v1103 = vadd.f32 %v1071, 1e-05
    %v1104 = vadd.f32 %v1072, 1e-05
    %v1105 = vadd.f32 %v1073, 1e-05
    %v1106 = vadd.f32 %v1074, 1e-05
    %v1107 = vadd.f32 %v1075, 1e-05
    %v1108 = vadd.f32 %v1076, 1e-05
    %v1109 = vadd.f32 %v1077, 1e-05
    %v1110 = vadd.f32 %v1078, 1e-05
    %v1111 = vadd.f32 %v1079, 1e-05
    %v1112 = vadd.f32 %v1080, 1e-05
    %v1113 = vadd.f32 %v1081, 1e-05
    %v1114 = vadd.f32 %v1082, 1e-05
    %v1115 = vadd.f32 %v1083, 1e-05
    %v1116 = vadd.f32 %v1084, 1e-05
    %v1117 = vadd.f32 %v1085, 1e-05
    %v1118 = vadd.f32 %v1086, 1e-05
    %v1119 = vadd.f32 %v1087, 1e-05
    %v1120 = vadd.f32 %v1088, 1e-05
    %v1121 = vadd.f32 %v1089, 1e-05
    %v1122 = vrsqrt.pop %v1090
    %v1123 = vrsqrt.pop %v1091
    %v1124 = vrsqrt.pop %v1092
    %v1125 = vrsqrt.pop %v1093
    %v1126 = vrsqrt.pop %v1094
    %v1127 = vrsqrt.pop %v1095
    %v1128 = vrsqrt.pop %v1096
    %v1129 = vrsqrt.pop %v1097
    %v1130 = vrsqrt.pop %v1098
    %v1131 = vrsqrt.pop %v1099
    %v1132 = vrsqrt.pop %v1100
    %v1133 = vrsqrt.pop %v1101
    %v1134 = vrsqrt.pop %v1102
    %v1135 = vrsqrt.pop %v1103
    %v1136 = vrsqrt.pop %v1104
    %v1137 = vrsqrt.pop %v1105
    %v1138 = vrsqrt.pop %v1106
    %v1139 = vrsqrt.pop %v1107
    %v1140 = vrsqrt.pop %v1108
    %v1141 = vrsqrt.pop %v1109
    %v1142 = vrsqrt.pop %v1110
    %v1143 = vrsqrt.pop %v1111
    %v1144 = vrsqrt.pop %v1112
    %v1145 = vrsqrt.pop %v1113
    %v1146 = vrsqrt.pop %v1114
    %v1147 = vrsqrt.pop %v1115
    %v1148 = vrsqrt.pop %v1116
    %v1149 = vrsqrt.pop %v1117
    %v1150 = vrsqrt.pop %v1118
    %v1151 = vrsqrt.pop %v1119
    %v1152 = vrsqrt.pop %v1120
    %v1153 = vrsqrt.pop %v1121
    %v1154 = vmul.f32 %v706, %v1122
    %v1155 = vmul.f32 %v707, %v1123
    %v1156 = vmul.f32 %v708, %v1124
    %v1157 = vmul.f32 %v709, %v1125
    %v1158 = vmul.f32 %v710, %v1126
    %v1159 = vmul.f32 %v711, %v1127
    %v1160 = vmul.f32 %v712, %v1128
    %v1161 = vmul.f32 %v713, %v1129
    %v1162 = vmul.f32 %v714, %v1130
    %v1163 = vmul.f32 %v715, %v1131
    %v1164 = vmul.f32 %v716, %v1132
    %v1165 = vmul.f32 %v717, %v1133
    %v1166 = vmul.f32 %v718, %v1134
    %v1167 = vmul.f32 %v719, %v1135
    %v1168 = vmul.f32 %v720, %v1136
    %v1169 = vmul.f32 %v721, %v1137
    %v1170 = vmul.f32 %v722, %v1138
    %v1171 = vmul.f32 %v723, %v1139
    %v1172 = vmul.f32 %v724, %v1140
    %v1173 = vmul.f32 %v725, %v1141
    %v1174 = vmul.f32 %v726, %v1142
    %v1175 = vmul.f32 %v727, %v1143
    %v1176 = vmul.f32 %v728, %v1144
    %v1177 = vmul.f32 %v729, %v1145
    %v1178 = vmul.f32 %v730, %v1146
    %v1179 = vmul.f32 %v731, %v1147
    %v1180 = vmul.f32 %v732, %v1148
    %v1181 = vmul.f32 %v733, %v1149
    %v1182 = vmul.f32 %v734, %v1150
    %v1183 = vmul.f32 %v735, %v1151
    %v1184 = vmul.f32 %v736, %v1152
    %v1185 = vmul.f32 %v737, %v1153
    %v1187 = vlaneseq
    %v1188 = vshrl.u32 %v1187, 7
    %v1189 = vsub.s32 0, %v1188
    %v1190 = vrot.slane %v379, %v1189
    %v1192 = vmul.f32 %v1154, %v1190
    %v1193 = vmul.f32 %v1155, %v1190
    %v1194 = vmul.f32 %v1156, %v1190
    %v1195 = vmul.f32 %v1157, %v1190
    %v1196 = vmul.f32 %v1158, %v1190
    %v1197 = vmul.f32 %v1159, %v1190
    %v1198 = vmul.f32 %v1160, %v1190
    %v1199 = vmul.f32 %v1161, %v1190
    %v1200 = vmul.f32 %v1162, %v1190
    %v1201 = vmul.f32 %v1163, %v1190
    %v1202 = vmul.f32 %v1164, %v1190
    %v1203 = vmul.f32 %v1165, %v1190
    %v1204 = vmul.f32 %v1166, %v1190
    %v1205 = vmul.f32 %v1167, %v1190
    %v1206 = vmul.f32 %v1168, %v1190
    %v1207 = vmul.f32 %v1169, %v1190
    %v1208 = vmul.f32 %v1170, %v1190
    %v1209 = vmul.f32 %v1171, %v1190
    %v1210 = vmul.f32 %v1172, %v1190
    %v1211 = vmul.f32 %v1173, %v1190
    %v1212 = vmul.f32 %v1174, %v1190
    %v1213 = vmul.f32 %v1175, %v1190
    %v1214 = vmul.f32 %v1176, %v1190
    %v1215 = vmul.f32 %v1177, %v1190
    %v1216 = vmul.f32 %v1178, %v1190
    %v1217 = vmul.f32 %v1179, %v1190
    %v1218 = vmul.f32 %v1180, %v1190
    %v1219 = vmul.f32 %v1181, %v1190
    %v1220 = vmul.f32 %v1182, %v1190
    %v1221 = vmul.f32 %v1183, %v1190
    %v1222 = vmul.f32 %v1184, %v1190
    %v1223 = vmul.f32 %v1185, %v1190
    %v1225 = vlaneseq
    %v1226 = vshrl.u32 %v1225, 7
    %v1227 = vsub.s32 0, %v1226
    %v1228 = vrot.slane %v380, %v1227
    %v1230 = vadd.f32 %v1192, %v1228
    %v1231 = vadd.f32 %v1193, %v1228
    %v1232 = vadd.f32 %v1194, %v1228
    %v1233 = vadd.f32 %v1195, %v1228
    %v1234 = vadd.f32 %v1196, %v1228
    %v1235 = vadd.f32 %v1197, %v1228
    %v1236 = vadd.f32 %v1198, %v1228
    %v1237 = vadd.f32 %v1199, %v1228
    %v1238 = vadd.f32 %v1200, %v1228
    %v1239 = vadd.f32 %v1201, %v1228
    %v1240 = vadd.f32 %v1202, %v1228
    %v1241 = vadd.f32 %v1203, %v1228
    %v1242 = vadd.f32 %v1204, %v1228
    %v1243 = vadd.f32 %v1205, %v1228
    %v1244 = vadd.f32 %v1206, %v1228
    %v1245 = vadd.f32 %v1207, %v1228
    %v1246 = vadd.f32 %v1208, %v1228
    %v1247 = vadd.f32 %v1209, %v1228
    %v1248 = vadd.f32 %v1210, %v1228
    %v1249 = vadd.f32 %v1211, %v1228
    %v1250 = vadd.f32 %v1212, %v1228
    %v1251 = vadd.f32 %v1213, %v1228
    %v1252 = vadd.f32 %v1214, %v1228
    %v1253 = vadd.f32 %v1215, %v1228
    %v1254 = vadd.f32 %v1216, %v1228
    %v1255 = vadd.f32 %v1217, %v1228
    %v1256 = vadd.f32 %v1218, %v1228
    %v1257 = vadd.f32 %v1219, %v1228
    %v1258 = vadd.f32 %v1220, %v1228
    %v1259 = vadd.f32 %v1221, %v1228
    %v1260 = vadd.f32 %v1222, %v1228
    %v1261 = vadd.f32 %v1223, %v1228
    %v1262 = vld [vmem:[%s4] sm:$0xff]
    %v1263 = vld [vmem:[%s4 + $0x8] sm:$0xff]
    %v1264 = vld [vmem:[%s4 + $0x10] sm:$0xff]
    %v1265 = vld [vmem:[%s4 + $0x18] sm:$0xff]
    %v1267 = vsel %vm57, %v1230, 0
    %v1270 = vsel %vm57, %v1231, 0
    %v1273 = vsel %vm57, %v1232, 0
    %v1276 = vsel %vm57, %v1233, 0
    %v1279 = vsel %vm57, %v1234, 0
    %v1282 = vsel %vm57, %v1235, 0
    %v1285 = vsel %vm57, %v1236, 0
    %v1288 = vsel %vm57, %v1237, 0
    %v1291 = vsel %vm57, %v1238, 0
    %v1294 = vsel %vm57, %v1239, 0
    %v1297 = vsel %vm57, %v1240, 0
    %v1300 = vsel %vm57, %v1241, 0
    %v1303 = vsel %vm57, %v1242, 0
    %v1306 = vsel %vm57, %v1243, 0
    %v1309 = vsel %vm57, %v1244, 0
    %v1312 = vsel %vm57, %v1245, 0
    %v1315 = vsel %vm57, %v1246, 0
    %v1318 = vsel %vm57, %v1247, 0
    %v1321 = vsel %vm57, %v1248, 0
    %v1324 = vsel %vm57, %v1249, 0
    %v1327 = vsel %vm57, %v1250, 0
    %v1330 = vsel %vm57, %v1251, 0
    %v1333 = vsel %vm57, %v1252, 0
    %v1336 = vsel %vm57, %v1253, 0
    %v1339 = vsel %vm57, %v1254, 0
    %v1342 = vsel %vm57, %v1255, 0
    %v1345 = vsel %vm57, %v1256, 0
    %v1348 = vsel %vm57, %v1257, 0
    %v1351 = vsel %vm57, %v1258, 0
    %v1354 = vsel %vm57, %v1259, 0
    %v1357 = vsel %vm57, %v1260, 0
    %v1360 = vsel %vm57, %v1261, 0
    %1362 = vmatprep.subr.mxu0 0.0
    %1363 = vmatpush1.msra.mxu0 %v1262
    %1364 = vmatprep.subr.mxu0 0.0
    %1365 = vmatpush1.msra.mxu0 %v1263
    %1366 = vmatprep.subr.mxu0 0.0
    %1367 = vmatpush1.msra.mxu0 %v1264
    %1368 = vmatprep.subr.mxu0 0.0
    %1369 = vmatpush1.msra.mxu0 %v1265
    %1370 = vmatprep.subr.mxu0 0.0
    %1371 = vmatpush1.msra.mxu0 0.0
    %1372 = vmatprep.subr.mxu0 0.0
    %1373 = vmatpush1.msra.mxu0 0.0
    %1374 = vmatprep.subr.mxu0 0.0
    %1375 = vmatpush1.msra.mxu0 0.0
    %1376 = vmatprep.subr.mxu0 0.0
    %1377 = vmatpush1.msra.mxu0 0.0
    %1378 = vmatprep.subr.mxu0 0.0
    %1379 = vmatpush1.msra.mxu0 0.0
    %1380 = vmatprep.subr.mxu0 0.0
    %1381 = vmatpush1.msra.mxu0 0.0
    %1382 = vmatprep.subr.mxu0 0.0
    %1383 = vmatpush1.msra.mxu0 0.0
    %1384 = vmatprep.subr.mxu0 0.0
    %1385 = vmatpush1.msra.mxu0 0.0
    %1386 = vmatprep.subr.mxu0 0.0
    %1387 = vmatpush1.msra.mxu0 0.0
    %1388 = vmatprep.subr.mxu0 0.0
    %1389 = vmatpush1.msra.mxu0 0.0
    %1390 = vmatprep.subr.mxu0 0.0
    %1391 = vmatpush1.msra.mxu0 0.0
    %1392 = vmatprep.subr.mxu0 0.0
    %1393 = vmatpush1.msra.mxu0 0.0
    %1394 = vmatprep.subr.mxu0 0.0
    %1395 = vmatpush1.msra.mxu0 0.0
    %1396 = vmatprep.subr.mxu0 0.0
    %1397 = vmatpush1.msra.mxu0 0.0
    %1398 = vmatprep.subr.mxu0 0.0
    %1399 = vmatpush1.msra.mxu0 0.0
    %1400 = vmatprep.subr.mxu0 0.0
    %1401 = vmatpush1.msra.mxu0 0.0
    %1402 = vmatprep.subr.mxu0 0.0
    %1403 = vmatpush1.msra.mxu0 0.0
    %1404 = vmatprep.subr.mxu0 0.0
    %1405 = vmatpush1.msra.mxu0 0.0
    %1406 = vmatprep.subr.mxu0 0.0
    %1407 = vmatpush1.msra.mxu0 0.0
    %1408 = vmatprep.subr.mxu0 0.0
    %1409 = vmatpush1.msra.mxu0 0.0
    %1410 = vmatprep.subr.mxu0 0.0
    %1411 = vmatpush1.msra.mxu0 0.0
    %1412 = vmatprep.subr.mxu0 0.0
    %1413 = vmatpush1.msra.mxu0 0.0
    %1414 = vmatprep.subr.mxu0 0.0
    %1415 = vmatpush1.msra.mxu0 0.0
    %1416 = vmatprep.subr.mxu0 0.0
    %1417 = vmatpush1.msra.mxu0 0.0
    %1418 = vmatprep.subr.mxu0 0.0
    %1419 = vmatpush1.msra.mxu0 0.0
    %1420 = vmatprep.subr.mxu0 0.0
    %1421 = vmatpush1.msra.mxu0 0.0
    %1422 = vmatprep.subr.mxu0 0.0
    %1423 = vmatpush1.msra.mxu0 0.0
    %1424 = vmatprep.subr.mxu0 0.0
    %1425 = vmatpush1.msra.mxu0 0.0
    %1426 = vmatprep.mubr.f32.mxu0 0.0
    %1427 = vmatmul.mubr.f32.gmra.mrb[0].mxu0 %v1267
    %v1428 = vpop.f32.mrb[0].mxu0
    %v1429 = vadd.f32 0.0, %v1428
    %v1430 = vpop.f32.mrb[0].mxu0
    %1431 = vmatprep.mubr.f32.mxu0 0.0
    %1432 = vmatmul.mubr.f32.gmra.mrb[0].mxu0 %v1270
    %v1433 = vpop.f32.mrb[0].mxu0
    %v1434 = vadd.f32 0.0, %v1433
    %v1435 = vpop.f32.mrb[0].mxu0
    %1436 = vmatprep.mubr.f32.mxu0 0.0
    %1437 = vmatmul.mubr.f32.gmra.mrb[0].mxu0 %v1273
    %v1438 = vpop.f32.mrb[0].mxu0
    %v1439 = vadd.f32 0.0, %v1438
    %v1440 = vpop.f32.mrb[0].mxu0
    %1441 = vmatprep.mubr.f32.mxu0 0.0
    %1442 = vmatmul.mubr.f32.gmra.mrb[0].mxu0 %v1276
    %v1443 = vpop.f32.mrb[0].mxu0
    %v1444 = vadd.f32 0.0, %v1443
    %v1445 = vpop.f32.mrb[0].mxu0
    %1446 = vmatprep.mubr.f32.mxu0 0.0
    %1447 = vmatmul.mubr.f32.gmra.mrb[0].mxu0 %v1279
    %v1448 = vpop.f32.mrb[0].mxu0
    %v1449 = vadd.f32 0.0, %v1448
    %v1450 = vpop.f32.mrb[0].mxu0
    %1451 = vmatprep.mubr.f32.mxu0 0.0
    %1452 = vmatmul.mubr.f32.gmra.mrb[0].mxu0 %v1282
    %v1453 = vpop.f32.mrb[0].mxu0
    %v1454 = vadd.f32 0.0, %v1453
    %v1455 = vpop.f32.mrb[0].mxu0
    %1456 = vmatprep.mubr.f32.mxu0 0.0
    %1457 = vmatmul.mubr.f32.gmra.mrb[0].mxu0 %v1285
    %v1458 = vpop.f32.mrb[0].mxu0
    %v1459 = vadd.f32 0.0, %v1458
    %v1460 = vpop.f32.mrb[0].mxu0
    %1461 = vmatprep.mubr.f32.mxu0 0.0
    %1462 = vmatmul.mubr.f32.gmra.mrb[0].mxu0 %v1288
    %v1463 = vpop.f32.mrb[0].mxu0
    %v1464 = vadd.f32 0.0, %v1463
    %v1465 = vpop.f32.mrb[0].mxu0
    %1466 = vmatprep.mubr.f32.mxu0 0.0
    %1467 = vmatmul.mubr.f32.gmra.mrb[0].mxu0 %v1291
    %v1468 = vpop.f32.mrb[0].mxu0
    %v1469 = vadd.f32 0.0, %v1468
    %v1470 = vpop.f32.mrb[0].mxu0
    %1471 = vmatprep.mubr.f32.mxu0 0.0
    %1472 = vmatmul.mubr.f32.gmra.mrb[0].mxu0 %v1294
    %v1473 = vpop.f32.mrb[0].mxu0
    %v1474 = vadd.f32 0.0, %v1473
    %v1475 = vpop.f32.mrb[0].mxu0
    %1476 = vmatprep.mubr.f32.mxu0 0.0
    %1477 = vmatmul.mubr.f32.gmra.mrb[0].mxu0 %v1297
    %v1478 = vpop.f32.mrb[0].mxu0
    %v1479 = vadd.f32 0.0, %v1478
    %v1480 = vpop.f32.mrb[0].mxu0
    %1481 = vmatprep.mubr.f32.mxu0 0.0
    %1482 = vmatmul.mubr.f32.gmra.mrb[0].mxu0 %v1300
    %v1483 = vpop.f32.mrb[0].mxu0
    %v1484 = vadd.f32 0.0, %v1483
    %v1485 = vpop.f32.mrb[0].mxu0
    %1486 = vmatprep.mubr.f32.mxu0 0.0
    %1487 = vmatmul.mubr.f32.gmra.mrb[0].mxu0 %v1303
    %v1488 = vpop.f32.mrb[0].mxu0
    %v1489 = vadd.f32 0.0, %v1488
    %v1490 = vpop.f32.mrb[0].mxu0
    %1491 = vmatprep.mubr.f32.mxu0 0.0
    %1492 = vmatmul.mubr.f32.gmra.mrb[0].mxu0 %v1306
    %v1493 = vpop.f32.mrb[0].mxu0
    %v1494 = vadd.f32 0.0, %v1493
    %v1495 = vpop.f32.mrb[0].mxu0
    %1496 = vmatprep.mubr.f32.mxu0 0.0
    %1497 = vmatmul.mubr.f32.gmra.mrb[0].mxu0 %v1309
    %v1498 = vpop.f32.mrb[0].mxu0
    %v1499 = vadd.f32 0.0, %v1498
    %v1500 = vpop.f32.mrb[0].mxu0
    %1501 = vmatprep.mubr.f32.mxu0 0.0
    %1502 = vmatmul.mubr.f32.gmra.mrb[0].mxu0 %v1312
    %v1503 = vpop.f32.mrb[0].mxu0
    %v1504 = vadd.f32 0.0, %v1503
    %v1505 = vpop.f32.mrb[0].mxu0
    %1506 = vmatprep.mubr.f32.mxu0 0.0
    %1507 = vmatmul.mubr.f32.gmra.mrb[0].mxu0 %v1315
    %v1508 = vpop.f32.mrb[0].mxu0
    %v1509 = vadd.f32 0.0, %v1508
    %v1510 = vpop.f32.mrb[0].mxu0
    %1511 = vmatprep.mubr.f32.mxu0 0.0
    %1512 = vmatmul.mubr.f32.gmra.mrb[0].mxu0 %v1318
    %v1513 = vpop.f32.mrb[0].mxu0
    %v1514 = vadd.f32 0.0, %v1513
    %v1515 = vpop.f32.mrb[0].mxu0
    %1516 = vmatprep.mubr.f32.mxu0 0.0
    %1517 = vmatmul.mubr.f32.gmra.mrb[0].mxu0 %v1321
    %v1518 = vpop.f32.mrb[0].mxu0
    %v1519 = vadd.f32 0.0, %v1518
    %v1520 = vpop.f32.mrb[0].mxu0
    %1521 = vmatprep.mubr.f32.mxu0 0.0
    %1522 = vmatmul.mubr.f32.gmra.mrb[0].mxu0 %v1324
    %v1523 = vpop.f32.mrb[0].mxu0
    %v1524 = vadd.f32 0.0, %v1523
    %v1525 = vpop.f32.mrb[0].mxu0
    %1526 = vmatprep.mubr.f32.mxu0 0.0
    %1527 = vmatmul.mubr.f32.gmra.mrb[0].mxu0 %v1327
    %v1528 = vpop.f32.mrb[0].mxu0
    %v1529 = vadd.f32 0.0, %v1528
    %v1530 = vpop.f32.mrb[0].mxu0
    %1531 = vmatprep.mubr.f32.mxu0 0.0
    %1532 = vmatmul.mubr.f32.gmra.mrb[0].mxu0 %v1330
    %v1533 = vpop.f32.mrb[0].mxu0
    %v1534 = vadd.f32 0.0, %v1533
    %v1535 = vpop.f32.mrb[0].mxu0
    %1536 = vmatprep.mubr.f32.mxu0 0.0
    %1537 = vmatmul.mubr.f32.gmra.mrb[0].mxu0 %v1333
    %v1538 = vpop.f32.mrb[0].mxu0
    %v1539 = vadd.f32 0.0, %v1538
    %v1540 = vpop.f32.mrb[0].mxu0
    %1541 = vmatprep.mubr.f32.mxu0 0.0
    %1542 = vmatmul.mubr.f32.gmra.mrb[0].mxu0 %v1336
    %v1543 = vpop.f32.mrb[0].mxu0
    %v1544 = vadd.f32 0.0, %v1543
    %v1545 = vpop.f32.mrb[0].mxu0
    %1546 = vmatprep.mubr.f32.mxu0 0.0
    %1547 = vmatmul.mubr.f32.gmra.mrb[0].mxu0 %v1339
    %v1548 = vpop.f32.mrb[0].mxu0
    %v1549 = vadd.f32 0.0, %v1548
    %v1550 = vpop.f32.mrb[0].mxu0
    %1551 = vmatprep.mubr.f32.mxu0 0.0
    %1552 = vmatmul.mubr.f32.gmra.mrb[0].mxu0 %v1342
    %v1553 = vpop.f32.mrb[0].mxu0
    %v1554 = vadd.f32 0.0, %v1553
    %v1555 = vpop.f32.mrb[0].mxu0
    %1556 = vmatprep.mubr.f32.mxu0 0.0
    %1557 = vmatmul.mubr.f32.gmra.mrb[0].mxu0 %v1345
    %v1558 = vpop.f32.mrb[0].mxu0
    %v1559 = vadd.f32 0.0, %v1558
    %v1560 = vpop.f32.mrb[0].mxu0
    %1561 = vmatprep.mubr.f32.mxu0 0.0
    %1562 = vmatmul.mubr.f32.gmra.mrb[0].mxu0 %v1348
    %v1563 = vpop.f32.mrb[0].mxu0
    %v1564 = vadd.f32 0.0, %v1563
    %v1565 = vpop.f32.mrb[0].mxu0
    %1566 = vmatprep.mubr.f32.mxu0 0.0
    %1567 = vmatmul.mubr.f32.gmra.mrb[0].mxu0 %v1351
    %v1568 = vpop.f32.mrb[0].mxu0
    %v1569 = vadd.f32 0.0, %v1568
    %v1570 = vpop.f32.mrb[0].mxu0
    %1571 = vmatprep.mubr.f32.mxu0 0.0
    %1572 = vmatmul.mubr.f32.gmra.mrb[0].mxu0 %v1354
    %v1573 = vpop.f32.mrb[0].mxu0
    %v1574 = vadd.f32 0.0, %v1573
    %v1575 = vpop.f32.mrb[0].mxu0
    %1576 = vmatprep.mubr.f32.mxu0 0.0
    %1577 = vmatmul.mubr.f32.gmra.mrb[0].mxu0 %v1357
    %v1578 = vpop.f32.mrb[0].mxu0
    %v1579 = vadd.f32 0.0, %v1578
    %v1580 = vpop.f32.mrb[0].mxu0
    %1581 = vmatprep.mubr.f32.mxu0 0.0
    %1582 = vmatmul.mubr.f32.gmra.mrb[0].mxu0 %v1360
    %v1583 = vpop.f32.mrb[0].mxu0
    %v1584 = vadd.f32 0.0, %v1583
    %v1585 = vpop.f32.mrb[0].mxu0
    %1586 = vdwg.mxu0
    %1587 = vst.msk [vmem:[#allocation2] sm:$0xff] %vm57, %v1429
    %1588 = vst.msk [vmem:[#allocation2 + $0x10] sm:$0xff] %vm57, %v1434
    %1589 = vst.msk [vmem:[#allocation2 + $0x20] sm:$0xff] %vm57, %v1439
    %1590 = vst.msk [vmem:[#allocation2 + $0x30] sm:$0xff] %vm57, %v1444
    %1591 = vst.msk [vmem:[#allocation2 + $0x40] sm:$0xff] %vm57, %v1449
    %1592 = vst.msk [vmem:[#allocation2 + $0x50] sm:$0xff] %vm57, %v1454
    %1593 = vst.msk [vmem:[#allocation2 + $0x60] sm:$0xff] %vm57, %v1459
    %1594 = vst.msk [vmem:[#allocation2 + $0x70] sm:$0xff] %vm57, %v1464
    %1595 = vst.msk [vmem:[#allocation2 + $0x80] sm:$0xff] %vm57, %v1469
    %1596 = vst.msk [vmem:[#allocation2 + $0x90] sm:$0xff] %vm57, %v1474
    %1597 = vst.msk [vmem:[#allocation2 + $0xa0] sm:$0xff] %vm57, %v1479
    %1598 = vst.msk [vmem:[#allocation2 + $0xb0] sm:$0xff] %vm57, %v1484
    %1599 = vst.msk [vmem:[#allocation2 + $0xc0] sm:$0xff] %vm57, %v1489
    %1600 = vst.msk [vmem:[#allocation2 + $0xd0] sm:$0xff] %vm57, %v1494
    %1601 = vst.msk [vmem:[#allocation2 + $0xe0] sm:$0xff] %vm57, %v1499
    %1602 = vst.msk [vmem:[#allocation2 + $0xf0] sm:$0xff] %vm57, %v1504
    %1603 = vst.msk [vmem:[#allocation2 + $0x100] sm:$0xff] %vm57, %v1509
    %1604 = vst.msk [vmem:[#allocation2 + $0x110] sm:$0xff] %vm57, %v1514
    %1605 = vst.msk [vmem:[#allocation2 + $0x120] sm:$0xff] %vm57, %v1519
    %1606 = vst.msk [vmem:[#allocation2 + $0x130] sm:$0xff] %vm57, %v1524
    %1607 = vst.msk [vmem:[#allocation2 + $0x140] sm:$0xff] %vm57, %v1529
    %1608 = vst.msk [vmem:[#allocation2 + $0x150] sm:$0xff] %vm57, %v1534
    %1609 = vst.msk [vmem:[#allocation2 + $0x160] sm:$0xff] %vm57, %v1539
    %1610 = vst.msk [vmem:[#allocation2 + $0x170] sm:$0xff] %vm57, %v1544
    %1611 = vst.msk [vmem:[#allocation2 + $0x180] sm:$0xff] %vm57, %v1549
    %1612 = vst.msk [vmem:[#allocation2 + $0x190] sm:$0xff] %vm57, %v1554
    %1613 = vst.msk [vmem:[#allocation2 + $0x1a0] sm:$0xff] %vm57, %v1559
    %1614 = vst.msk [vmem:[#allocation2 + $0x1b0] sm:$0xff] %vm57, %v1564
    %1615 = vst.msk [vmem:[#allocation2 + $0x1c0] sm:$0xff] %vm57, %v1569
    %1616 = vst.msk [vmem:[#allocation2 + $0x1d0] sm:$0xff] %vm57, %v1574
    %1617 = vst.msk [vmem:[#allocation2 + $0x1e0] sm:$0xff] %vm57, %v1579
    %1618 = vst.msk [vmem:[#allocation2 + $0x1f0] sm:$0xff] %vm57, %v1584
    %1651 = vrot.lane.b32.xlu0 %v221, 96
    %v1652 = vpop.permute.xlu0 %1651
    %1653 = vrot.lane.b32.xlu0 %v226, 96
    %v1654 = vpop.permute.xlu0 %1653
    %1655 = vrot.lane.b32.xlu0 %v231, 96
    %v1656 = vpop.permute.xlu0 %1655
    %1657 = vrot.lane.b32.xlu0 %v236, 96
    %v1658 = vpop.permute.xlu0 %1657
    %1659 = vrot.lane.b32.xlu0 %v241, 96
    %v1660 = vpop.permute.xlu0 %1659
    %1661 = vrot.lane.b32.xlu0 %v246, 96
    %v1662 = vpop.permute.xlu0 %1661
    %1663 = vrot.lane.b32.xlu0 %v251, 96
    %v1664 = vpop.permute.xlu0 %1663
    %1665 = vrot.lane.b32.xlu0 %v256, 96
    %v1666 = vpop.permute.xlu0 %1665
    %1667 = vrot.lane.b32.xlu0 %v261, 96
    %v1668 = vpop.permute.xlu0 %1667
    %1669 = vrot.lane.b32.xlu0 %v266, 96
    %v1670 = vpop.permute.xlu0 %1669
    %1671 = vrot.lane.b32.xlu0 %v271, 96
    %v1672 = vpop.permute.xlu0 %1671
    %1673 = vrot.lane.b32.xlu0 %v276, 96
    %v1674 = vpop.permute.xlu0 %1673
    %1675 = vrot.lane.b32.xlu0 %v281, 96
    %v1676 = vpop.permute.xlu0 %1675
    %1677 = vrot.lane.b32.xlu0 %v286, 96
    %v1678 = vpop.permute.xlu0 %1677
    %1679 = vrot.lane.b32.xlu0 %v291, 96
    %v1680 = vpop.permute.xlu0 %1679
    %1681 = vrot.lane.b32.xlu0 %v296, 96
    %v1682 = vpop.permute.xlu0 %1681
    %1683 = vrot.lane.b32.xlu0 %v301, 96
    %v1684 = vpop.permute.xlu0 %1683
    %1685 = vrot.lane.b32.xlu0 %v306, 96
    %v1686 = vpop.permute.xlu0 %1685
    %1687 = vrot.lane.b32.xlu0 %v311, 96
    %v1688 = vpop.permute.xlu0 %1687
    %1689 = vrot.lane.b32.xlu0 %v316, 96
    %v1690 = vpop.permute.xlu0 %1689
    %1691 = vrot.lane.b32.xlu0 %v321, 96
    %v1692 = vpop.permute.xlu0 %1691
    %1693 = vrot.lane.b32.xlu0 %v326, 96
    %v1694 = vpop.permute.xlu0 %1693
    %1695 = vrot.lane.b32.xlu0 %v331, 96
    %v1696 = vpop.permute.xlu0 %1695
    %1697 = vrot.lane.b32.xlu0 %v336, 96
    %v1698 = vpop.permute.xlu0 %1697
    %1699 = vrot.lane.b32.xlu0 %v341, 96
    %v1700 = vpop.permute.xlu0 %1699
    %1701 = vrot.lane.b32.xlu0 %v346, 96
    %v1702 = vpop.permute.xlu0 %1701
    %1703 = vrot.lane.b32.xlu0 %v351, 96
    %v1704 = vpop.permute.xlu0 %1703
    %1705 = vrot.lane.b32.xlu0 %v356, 96
    %v1706 = vpop.permute.xlu0 %1705
    %1707 = vrot.lane.b32.xlu0 %v361, 96
    %v1708 = vpop.permute.xlu0 %1707
    %1709 = vrot.lane.b32.xlu0 %v366, 96
    %v1710 = vpop.permute.xlu0 %1709
    %1711 = vrot.lane.b32.xlu0 %v371, 96
    %v1712 = vpop.permute.xlu0 %1711
    %1713 = vrot.lane.b32.xlu0 %v376, 96
    %v1714 = vpop.permute.xlu0 %1713
    %v1747 = vsel %vm57, %v1652, 0.0
    %1748 = vadd.xlane.f32.xlu0 %v1747
    %v1749 = vpop.xlane.xlu0 %1748
    %v1750 = vsel %vm57, %v1654, 0.0
    %1751 = vadd.xlane.f32.xlu0 %v1750
    %v1752 = vpop.xlane.xlu0 %1751
    %v1753 = vsel %vm57, %v1656, 0.0
    %1754 = vadd.xlane.f32.xlu0 %v1753
    %v1755 = vpop.xlane.xlu0 %1754
    %v1756 = vsel %vm57, %v1658, 0.0
    %1757 = vadd.xlane.f32.xlu0 %v1756
    %v1758 = vpop.xlane.xlu0 %1757
    %v1759 = vsel %vm57, %v1660, 0.0
    %1760 = vadd.xlane.f32.xlu0 %v1759
    %v1761 = vpop.xlane.xlu0 %1760
    %v1762 = vsel %vm57, %v1662, 0.0
    %1763 = vadd.xlane.f32.xlu0 %v1762
    %v1764 = vpop.xlane.xlu0 %1763
    %v1765 = vsel %vm57, %v1664, 0.0
    %1766 = vadd.xlane.f32.xlu0 %v1765
    %v1767 = vpop.xlane.xlu0 %1766
    %v1768 = vsel %vm57, %v1666, 0.0
    %1769 = vadd.xlane.f32.xlu0 %v1768
    %v1770 = vpop.xlane.xlu0 %1769
    %v1771 = vsel %vm57, %v1668, 0.0
    %1772 = vadd.xlane.f32.xlu0 %v1771
    %v1773 = vpop.xlane.xlu0 %1772
    %v1774 = vsel %vm57, %v1670, 0.0
    %1775 = vadd.xlane.f32.xlu0 %v1774
    %v1776 = vpop.xlane.xlu0 %1775
    %v1777 = vsel %vm57, %v1672, 0.0
    %1778 = vadd.xlane.f32.xlu0 %v1777
    %v1779 = vpop.xlane.xlu0 %1778
    %v1780 = vsel %vm57, %v1674, 0.0
    %1781 = vadd.xlane.f32.xlu0 %v1780
    %v1782 = vpop.xlane.xlu0 %1781
    %v1783 = vsel %vm57, %v1676, 0.0
    %1784 = vadd.xlane.f32.xlu0 %v1783
    %v1785 = vpop.xlane.xlu0 %1784
    %v1786 = vsel %vm57, %v1678, 0.0
    %1787 = vadd.xlane.f32.xlu0 %v1786
    %v1788 = vpop.xlane.xlu0 %1787
    %v1789 = vsel %vm57, %v1680, 0.0
    %1790 = vadd.xlane.f32.xlu0 %v1789
    %v1791 = vpop.xlane.xlu0 %1790
    %v1792 = vsel %vm57, %v1682, 0.0
    %1793 = vadd.xlane.f32.xlu0 %v1792
    %v1794 = vpop.xlane.xlu0 %1793
    %v1795 = vsel %vm57, %v1684, 0.0
    %1796 = vadd.xlane.f32.xlu0 %v1795
    %v1797 = vpop.xlane.xlu0 %1796
    %v1798 = vsel %vm57, %v1686, 0.0
    %1799 = vadd.xlane.f32.xlu0 %v1798
    %v1800 = vpop.xlane.xlu0 %1799
    %v1801 = vsel %vm57, %v1688, 0.0
    %1802 = vadd.xlane.f32.xlu0 %v1801
    %v1803 = vpop.xlane.xlu0 %1802
    %v1804 = vsel %vm57, %v1690, 0.0
    %1805 = vadd.xlane.f32.xlu0 %v1804
    %v1806 = vpop.xlane.xlu0 %1805
    %v1807 = vsel %vm57, %v1692, 0.0
    %1808 = vadd.xlane.f32.xlu0 %v1807
    %v1809 = vpop.xlane.xlu0 %1808
    %v1810 = vsel %vm57, %v1694, 0.0
    %1811 = vadd.xlane.f32.xlu0 %v1810
    %v1812 = vpop.xlane.xlu0 %1811
    %v1813 = vsel %vm57, %v1696, 0.0
    %1814 = vadd.xlane.f32.xlu0 %v1813
    %v1815 = vpop.xlane.xlu0 %1814
    %v1816 = vsel %vm57, %v1698, 0.0
    %1817 = vadd.xlane.f32.xlu0 %v1816
    %v1818 = vpop.xlane.xlu0 %1817
    %v1819 = vsel %vm57, %v1700, 0.0
    %1820 = vadd.xlane.f32.xlu0 %v1819
    %v1821 = vpop.xlane.xlu0 %1820
    %v1822 = vsel %vm57, %v1702, 0.0
    %1823 = vadd.xlane.f32.xlu0 %v1822
    %v1824 = vpop.xlane.xlu0 %1823
    %v1825 = vsel %vm57, %v1704, 0.0
    %1826 = vadd.xlane.f32.xlu0 %v1825
    %v1827 = vpop.xlane.xlu0 %1826
    %v1828 = vsel %vm57, %v1706, 0.0
    %1829 = vadd.xlane.f32.xlu0 %v1828
    %v1830 = vpop.xlane.xlu0 %1829
    %v1831 = vsel %vm57, %v1708, 0.0
    %1832 = vadd.xlane.f32.xlu0 %v1831
    %v1833 = vpop.xlane.xlu0 %1832
    %v1834 = vsel %vm57, %v1710, 0.0
    %1835 = vadd.xlane.f32.xlu0 %v1834
    %v1836 = vpop.xlane.xlu0 %1835
    %v1837 = vsel %vm57, %v1712, 0.0
    %1838 = vadd.xlane.f32.xlu0 %v1837
    %v1839 = vpop.xlane.xlu0 %1838
    %v1840 = vsel %vm57, %v1714, 0.0
    %1841 = vadd.xlane.f32.xlu0 %v1840
    %v1842 = vpop.xlane.xlu0 %1841
    %v1843 = vsel %vm481, %v1652, 0.0
    %v1844 = vsel %vm481, %v1654, 0.0
    %v1845 = vsel %vm481, %v1656, 0.0
    %v1846 = vsel %vm481, %v1658, 0.0
    %v1847 = vsel %vm481, %v1660, 0.0
    %v1848 = vsel %vm481, %v1662, 0.0
    %v1849 = vsel %vm481, %v1664, 0.0
    %v1850 = vsel %vm481, %v1666, 0.0
    %v1851 = vsel %vm481, %v1668, 0.0
    %v1852 = vsel %vm481, %v1670, 0.0
    %v1853 = vsel %vm481, %v1672, 0.0
    %v1854 = vsel %vm481, %v1674, 0.0
    %v1855 = vsel %vm481, %v1676, 0.0
    %v1856 = vsel %vm481, %v1678, 0.0
    %v1857 = vsel %vm481, %v1680, 0.0
    %v1858 = vsel %vm481, %v1682, 0.0
    %v1859 = vsel %vm481, %v1684, 0.0
    %v1860 = vsel %vm481, %v1686, 0.0
    %v1861 = vsel %vm481, %v1688, 0.0
    %v1862 = vsel %vm481, %v1690, 0.0
    %v1863 = vsel %vm481, %v1692, 0.0
    %v1864 = vsel %vm481, %v1694, 0.0
    %v1865 = vsel %vm481, %v1696, 0.0
    %v1866 = vsel %vm481, %v1698, 0.0
    %v1867 = vsel %vm481, %v1700, 0.0
    %v1868 = vsel %vm481, %v1702, 0.0
    %v1869 = vsel %vm481, %v1704, 0.0
    %v1870 = vsel %vm481, %v1706, 0.0
    %v1871 = vsel %vm481, %v1708, 0.0
    %v1872 = vsel %vm481, %v1710, 0.0
    %v1873 = vsel %vm481, %v1712, 0.0
    %v1874 = vsel %vm481, %v1714, 0.0
    %v1875 = vsel %vm57, %v1843, 0.0
    %1876 = vadd.xlane.f32.xlu0 %v1875
    %v1877 = vpop.xlane.xlu0 %1876
    %v1878 = vsel %vm57, %v1844, 0.0
    %1879 = vadd.xlane.f32.xlu0 %v1878
    %v1880 = vpop.xlane.xlu0 %1879
    %v1881 = vsel %vm57, %v1845, 0.0
    %1882 = vadd.xlane.f32.xlu0 %v1881
    %v1883 = vpop.xlane.xlu0 %1882
    %v1884 = vsel %vm57, %v1846, 0.0
    %1885 = vadd.xlane.f32.xlu0 %v1884
    %v1886 = vpop.xlane.xlu0 %1885
    %v1887 = vsel %vm57, %v1847, 0.0
    %1888 = vadd.xlane.f32.xlu0 %v1887
    %v1889 = vpop.xlane.xlu0 %1888
    %v1890 = vsel %vm57, %v1848, 0.0
    %1891 = vadd.xlane.f32.xlu0 %v1890
    %v1892 = vpop.xlane.xlu0 %1891
    %v1893 = vsel %vm57, %v1849, 0.0
    %1894 = vadd.xlane.f32.xlu0 %v1893
    %v1895 = vpop.xlane.xlu0 %1894
    %v1896 = vsel %vm57, %v1850, 0.0
    %1897 = vadd.xlane.f32.xlu0 %v1896
    %v1898 = vpop.xlane.xlu0 %1897
    %v1899 = vsel %vm57, %v1851, 0.0
    %1900 = vadd.xlane.f32.xlu0 %v1899
    %v1901 = vpop.xlane.xlu0 %1900
    %v1902 = vsel %vm57, %v1852, 0.0
    %1903 = vadd.xlane.f32.xlu0 %v1902
    %v1904 = vpop.xlane.xlu0 %1903
    %v1905 = vsel %vm57, %v1853, 0.0
    %1906 = vadd.xlane.f32.xlu0 %v1905
    %v1907 = vpop.xlane.xlu0 %1906
    %v1908 = vsel %vm57, %v1854, 0.0
    %1909 = vadd.xlane.f32.xlu0 %v1908
    %v1910 = vpop.xlane.xlu0 %1909
    %v1911 = vsel %vm57, %v1855, 0.0
    %1912 = vadd.xlane.f32.xlu0 %v1911
    %v1913 = vpop.xlane.xlu0 %1912
    %v1914 = vsel %vm57, %v1856, 0.0
    %1915 = vadd.xlane.f32.xlu0 %v1914
    %v1916 = vpop.xlane.xlu0 %1915
    %v1917 = vsel %vm57, %v1857, 0.0
    %1918 = vadd.xlane.f32.xlu0 %v1917
    %v1919 = vpop.xlane.xlu0 %1918
    %v1920 = vsel %vm57, %v1858, 0.0
    %1921 = vadd.xlane.f32.xlu0 %v1920
    %v1922 = vpop.xlane.xlu0 %1921
    %v1923 = vsel %vm57, %v1859, 0.0
    %1924 = vadd.xlane.f32.xlu0 %v1923
    %v1925 = vpop.xlane.xlu0 %1924
    %v1926 = vsel %vm57, %v1860, 0.0
    %1927 = vadd.xlane.f32.xlu0 %v1926
    %v1928 = vpop.xlane.xlu0 %1927
    %v1929 = vsel %vm57, %v1861, 0.0
    %1930 = vadd.xlane.f32.xlu0 %v1929
    %v1931 = vpop.xlane.xlu0 %1930
    %v1932 = vsel %vm57, %v1862, 0.0
    %1933 = vadd.xlane.f32.xlu0 %v1932
    %v1934 = vpop.xlane.xlu0 %1933
    %v1935 = vsel %vm57, %v1863, 0.0
    %1936 = vadd.xlane.f32.xlu0 %v1935
    %v1937 = vpop.xlane.xlu0 %1936
    %v1938 = vsel %vm57, %v1864, 0.0
    %1939 = vadd.xlane.f32.xlu0 %v1938
    %v1940 = vpop.xlane.xlu0 %1939
    %v1941 = vsel %vm57, %v1865, 0.0
    %1942 = vadd.xlane.f32.xlu0 %v1941
    %v1943 = vpop.xlane.xlu0 %1942
    %v1944 = vsel %vm57, %v1866, 0.0
    %1945 = vadd.xlane.f32.xlu0 %v1944
    %v1946 = vpop.xlane.xlu0 %1945
    %v1947 = vsel %vm57, %v1867, 0.0
    %1948 = vadd.xlane.f32.xlu0 %v1947
    %v1949 = vpop.xlane.xlu0 %1948
    %v1950 = vsel %vm57, %v1868, 0.0
    %1951 = vadd.xlane.f32.xlu0 %v1950
    %v1952 = vpop.xlane.xlu0 %1951
    %v1953 = vsel %vm57, %v1869, 0.0
    %1954 = vadd.xlane.f32.xlu0 %v1953
    %v1955 = vpop.xlane.xlu0 %1954
    %v1956 = vsel %vm57, %v1870, 0.0
    %1957 = vadd.xlane.f32.xlu0 %v1956
    %v1958 = vpop.xlane.xlu0 %1957
    %v1959 = vsel %vm57, %v1871, 0.0
    %1960 = vadd.xlane.f32.xlu0 %v1959
    %v1961 = vpop.xlane.xlu0 %1960
    %v1962 = vsel %vm57, %v1872, 0.0
    %1963 = vadd.xlane.f32.xlu0 %v1962
    %v1964 = vpop.xlane.xlu0 %1963
    %v1965 = vsel %vm57, %v1873, 0.0
    %1966 = vadd.xlane.f32.xlu0 %v1965
    %v1967 = vpop.xlane.xlu0 %1966
    %v1968 = vsel %vm57, %v1874, 0.0
    %1969 = vadd.xlane.f32.xlu0 %v1968
    %v1970 = vpop.xlane.xlu0 %1969
    %v1971 = vsub.f32 %v1749, %v1877
    %v1972 = vsub.f32 %v1752, %v1880
    %v1973 = vsub.f32 %v1755, %v1883
    %v1974 = vsub.f32 %v1758, %v1886
    %v1975 = vsub.f32 %v1761, %v1889
    %v1976 = vsub.f32 %v1764, %v1892
    %v1977 = vsub.f32 %v1767, %v1895
    %v1978 = vsub.f32 %v1770, %v1898
    %v1979 = vsub.f32 %v1773, %v1901
    %v1980 = vsub.f32 %v1776, %v1904
    %v1981 = vsub.f32 %v1779, %v1907
    %v1982 = vsub.f32 %v1782, %v1910
    %v1983 = vsub.f32 %v1785, %v1913
    %v1984 = vsub.f32 %v1788, %v1916
    %v1985 = vsub.f32 %v1791, %v1919
    %v1986 = vsub.f32 %v1794, %v1922
    %v1987 = vsub.f32 %v1797, %v1925
    %v1988 = vsub.f32 %v1800, %v1928
    %v1989 = vsub.f32 %v1803, %v1931
    %v1990 = vsub.f32 %v1806, %v1934
    %v1991 = vsub.f32 %v1809, %v1937
    %v1992 = vsub.f32 %v1812, %v1940
    %v1993 = vsub.f32 %v1815, %v1943
    %v1994 = vsub.f32 %v1818, %v1946
    %v1995 = vsub.f32 %v1821, %v1949
    %v1996 = vsub.f32 %v1824, %v1952
    %v1997 = vsub.f32 %v1827, %v1955
    %v1998 = vsub.f32 %v1830, %v1958
    %v1999 = vsub.f32 %v1833, %v1961
    %v2000 = vsub.f32 %v1836, %v1964
    %v2001 = vsub.f32 %v1839, %v1967
    %v2002 = vsub.f32 %v1842, %v1970
    %v2003 = vsel %vm481, %v1877, %v1971
    %v2004 = vsel %vm481, %v1880, %v1972
    %v2005 = vsel %vm481, %v1883, %v1973
    %v2006 = vsel %vm481, %v1886, %v1974
    %v2007 = vsel %vm481, %v1889, %v1975
    %v2008 = vsel %vm481, %v1892, %v1976
    %v2009 = vsel %vm481, %v1895, %v1977
    %v2010 = vsel %vm481, %v1898, %v1978
    %v2011 = vsel %vm481, %v1901, %v1979
    %v2012 = vsel %vm481, %v1904, %v1980
    %v2013 = vsel %vm481, %v1907, %v1981
    %v2014 = vsel %vm481, %v1910, %v1982
    %v2015 = vsel %vm481, %v1913, %v1983
    %v2016 = vsel %vm481, %v1916, %v1984
    %v2017 = vsel %vm481, %v1919, %v1985
    %v2018 = vsel %vm481, %v1922, %v1986
    %v2019 = vsel %vm481, %v1925, %v1987
    %v2020 = vsel %vm481, %v1928, %v1988
    %v2021 = vsel %vm481, %v1931, %v1989
    %v2022 = vsel %vm481, %v1934, %v1990
    %v2023 = vsel %vm481, %v1937, %v1991
    %v2024 = vsel %vm481, %v1940, %v1992
    %v2025 = vsel %vm481, %v1943, %v1993
    %v2026 = vsel %vm481, %v1946, %v1994
    %v2027 = vsel %vm481, %v1949, %v1995
    %v2028 = vsel %vm481, %v1952, %v1996
    %v2029 = vsel %vm481, %v1955, %v1997
    %v2030 = vsel %vm481, %v1958, %v1998
    %v2031 = vsel %vm481, %v1961, %v1999
    %v2032 = vsel %vm481, %v1964, %v2000
    %v2033 = vsel %vm481, %v1967, %v2001
    %v2034 = vsel %vm481, %v1970, %v2002
    %v2035 = vmul.f32 %v2003, 0.0625
    %v2036 = vmul.f32 %v2004, 0.0625
    %v2037 = vmul.f32 %v2005, 0.0625
    %v2038 = vmul.f32 %v2006, 0.0625
    %v2039 = vmul.f32 %v2007, 0.0625
    %v2040 = vmul.f32 %v2008, 0.0625
    %v2041 = vmul.f32 %v2009, 0.0625
    %v2042 = vmul.f32 %v2010, 0.0625
    %v2043 = vmul.f32 %v2011, 0.0625
    %v2044 = vmul.f32 %v2012, 0.0625
    %v2045 = vmul.f32 %v2013, 0.0625
    %v2046 = vmul.f32 %v2014, 0.0625
    %v2047 = vmul.f32 %v2015, 0.0625
    %v2048 = vmul.f32 %v2016, 0.0625
    %v2049 = vmul.f32 %v2017, 0.0625
    %v2050 = vmul.f32 %v2018, 0.0625
    %v2051 = vmul.f32 %v2019, 0.0625
    %v2052 = vmul.f32 %v2020, 0.0625
    %v2053 = vmul.f32 %v2021, 0.0625
    %v2054 = vmul.f32 %v2022, 0.0625
    %v2055 = vmul.f32 %v2023, 0.0625
    %v2056 = vmul.f32 %v2024, 0.0625
    %v2057 = vmul.f32 %v2025, 0.0625
    %v2058 = vmul.f32 %v2026, 0.0625
    %v2059 = vmul.f32 %v2027, 0.0625
    %v2060 = vmul.f32 %v2028, 0.0625
    %v2061 = vmul.f32 %v2029, 0.0625
    %v2062 = vmul.f32 %v2030, 0.0625
    %v2063 = vmul.f32 %v2031, 0.0625
    %v2064 = vmul.f32 %v2032, 0.0625
    %v2065 = vmul.f32 %v2033, 0.0625
    %v2066 = vmul.f32 %v2034, 0.0625
    %2099 = vrot.lane.b32.xlu0 %v2035, 32
    %v2100 = vpop.permute.xlu0 %2099
    %2101 = vrot.lane.b32.xlu0 %v2036, 32
    %v2102 = vpop.permute.xlu0 %2101
    %2103 = vrot.lane.b32.xlu0 %v2037, 32
    %v2104 = vpop.permute.xlu0 %2103
    %2105 = vrot.lane.b32.xlu0 %v2038, 32
    %v2106 = vpop.permute.xlu0 %2105
    %2107 = vrot.lane.b32.xlu0 %v2039, 32
    %v2108 = vpop.permute.xlu0 %2107
    %2109 = vrot.lane.b32.xlu0 %v2040, 32
    %v2110 = vpop.permute.xlu0 %2109
    %2111 = vrot.lane.b32.xlu0 %v2041, 32
    %v2112 = vpop.permute.xlu0 %2111
    %2113 = vrot.lane.b32.xlu0 %v2042, 32
    %v2114 = vpop.permute.xlu0 %2113
    %2115 = vrot.lane.b32.xlu0 %v2043, 32
    %v2116 = vpop.permute.xlu0 %2115
    %2117 = vrot.lane.b32.xlu0 %v2044, 32
    %v2118 = vpop.permute.xlu0 %2117
    %2119 = vrot.lane.b32.xlu0 %v2045, 32
    %v2120 = vpop.permute.xlu0 %2119
    %2121 = vrot.lane.b32.xlu0 %v2046, 32
    %v2122 = vpop.permute.xlu0 %2121
    %2123 = vrot.lane.b32.xlu0 %v2047, 32
    %v2124 = vpop.permute.xlu0 %2123
    %2125 = vrot.lane.b32.xlu0 %v2048, 32
    %v2126 = vpop.permute.xlu0 %2125
    %2127 = vrot.lane.b32.xlu0 %v2049, 32
    %v2128 = vpop.permute.xlu0 %2127
    %2129 = vrot.lane.b32.xlu0 %v2050, 32
    %v2130 = vpop.permute.xlu0 %2129
    %2131 = vrot.lane.b32.xlu0 %v2051, 32
    %v2132 = vpop.permute.xlu0 %2131
    %2133 = vrot.lane.b32.xlu0 %v2052, 32
    %v2134 = vpop.permute.xlu0 %2133
    %2135 = vrot.lane.b32.xlu0 %v2053, 32
    %v2136 = vpop.permute.xlu0 %2135
    %2137 = vrot.lane.b32.xlu0 %v2054, 32
    %v2138 = vpop.permute.xlu0 %2137
    %2139 = vrot.lane.b32.xlu0 %v2055, 32
    %v2140 = vpop.permute.xlu0 %2139
    %2141 = vrot.lane.b32.xlu0 %v2056, 32
    %v2142 = vpop.permute.xlu0 %2141
    %2143 = vrot.lane.b32.xlu0 %v2057, 32
    %v2144 = vpop.permute.xlu0 %2143
    %2145 = vrot.lane.b32.xlu0 %v2058, 32
    %v2146 = vpop.permute.xlu0 %2145
    %2147 = vrot.lane.b32.xlu0 %v2059, 32
    %v2148 = vpop.permute.xlu0 %2147
    %2149 = vrot.lane.b32.xlu0 %v2060, 32
    %v2150 = vpop.permute.xlu0 %2149
    %2151 = vrot.lane.b32.xlu0 %v2061, 32
    %v2152 = vpop.permute.xlu0 %2151
    %2153 = vrot.lane.b32.xlu0 %v2062, 32
    %v2154 = vpop.permute.xlu0 %2153
    %2155 = vrot.lane.b32.xlu0 %v2063, 32
    %v2156 = vpop.permute.xlu0 %2155
    %2157 = vrot.lane.b32.xlu0 %v2064, 32
    %v2158 = vpop.permute.xlu0 %2157
    %2159 = vrot.lane.b32.xlu0 %v2065, 32
    %v2160 = vpop.permute.xlu0 %2159
    %2161 = vrot.lane.b32.xlu0 %v2066, 32
    %v2162 = vpop.permute.xlu0 %2161
    %v2195 = vsub.f32 %v221, %v2100
    %v2196 = vsub.f32 %v226, %v2102
    %v2197 = vsub.f32 %v231, %v2104
    %v2198 = vsub.f32 %v236, %v2106
    %v2199 = vsub.f32 %v241, %v2108
    %v2200 = vsub.f32 %v246, %v2110
    %v2201 = vsub.f32 %v251, %v2112
    %v2202 = vsub.f32 %v256, %v2114
    %v2203 = vsub.f32 %v261, %v2116
    %v2204 = vsub.f32 %v266, %v2118
    %v2205 = vsub.f32 %v271, %v2120
    %v2206 = vsub.f32 %v276, %v2122
    %v2207 = vsub.f32 %v281, %v2124
    %v2208 = vsub.f32 %v286, %v2126
    %v2209 = vsub.f32 %v291, %v2128
    %v2210 = vsub.f32 %v296, %v2130
    %v2211 = vsub.f32 %v301, %v2132
    %v2212 = vsub.f32 %v306, %v2134
    %v2213 = vsub.f32 %v311, %v2136
    %v2214 = vsub.f32 %v316, %v2138
    %v2215 = vsub.f32 %v321, %v2140
    %v2216 = vsub.f32 %v326, %v2142
    %v2217 = vsub.f32 %v331, %v2144
    %v2218 = vsub.f32 %v336, %v2146
    %v2219 = vsub.f32 %v341, %v2148
    %v2220 = vsub.f32 %v346, %v2150
    %v2221 = vsub.f32 %v351, %v2152
    %v2222 = vsub.f32 %v356, %v2154
    %v2223 = vsub.f32 %v361, %v2156
    %v2224 = vsub.f32 %v366, %v2158
    %v2225 = vsub.f32 %v371, %v2160
    %v2226 = vsub.f32 %v376, %v2162
    %v2227 = vmul.f32 %v2195, %v2195
    %v2228 = vmul.f32 %v2196, %v2196
    %v2229 = vmul.f32 %v2197, %v2197
    %v2230 = vmul.f32 %v2198, %v2198
    %v2231 = vmul.f32 %v2199, %v2199
    %v2232 = vmul.f32 %v2200, %v2200
    %v2233 = vmul.f32 %v2201, %v2201
    %v2234 = vmul.f32 %v2202, %v2202
    %v2235 = vmul.f32 %v2203, %v2203
    %v2236 = vmul.f32 %v2204, %v2204
    %v2237 = vmul.f32 %v2205, %v2205
    %v2238 = vmul.f32 %v2206, %v2206
    %v2239 = vmul.f32 %v2207, %v2207
    %v2240 = vmul.f32 %v2208, %v2208
    %v2241 = vmul.f32 %v2209, %v2209
    %v2242 = vmul.f32 %v2210, %v2210
    %v2243 = vmul.f32 %v2211, %v2211
    %v2244 = vmul.f32 %v2212, %v2212
    %v2245 = vmul.f32 %v2213, %v2213
    %v2246 = vmul.f32 %v2214, %v2214
    %v2247 = vmul.f32 %v2215, %v2215
    %v2248 = vmul.f32 %v2216, %v2216
    %v2249 = vmul.f32 %v2217, %v2217
    %v2250 = vmul.f32 %v2218, %v2218
    %v2251 = vmul.f32 %v2219, %v2219
    %v2252 = vmul.f32 %v2220, %v2220
    %v2253 = vmul.f32 %v2221, %v2221
    %v2254 = vmul.f32 %v2222, %v2222
    %v2255 = vmul.f32 %v2223, %v2223
    %v2256 = vmul.f32 %v2224, %v2224
    %v2257 = vmul.f32 %v2225, %v2225
    %v2258 = vmul.f32 %v2226, %v2226
    %2291 = vrot.lane.b32.xlu0 %v2227, 96
    %v2292 = vpop.permute.xlu0 %2291
    %2293 = vrot.lane.b32.xlu0 %v2228, 96
    %v2294 = vpop.permute.xlu0 %2293
    %2295 = vrot.lane.b32.xlu0 %v2229, 96
    %v2296 = vpop.permute.xlu0 %2295
    %2297 = vrot.lane.b32.xlu0 %v2230, 96
    %v2298 = vpop.permute.xlu0 %2297
    %2299 = vrot.lane.b32.xlu0 %v2231, 96
    %v2300 = vpop.permute.xlu0 %2299
    %2301 = vrot.lane.b32.xlu0 %v2232, 96
    %v2302 = vpop.permute.xlu0 %2301
    %2303 = vrot.lane.b32.xlu0 %v2233, 96
    %v2304 = vpop.permute.xlu0 %2303
    %2305 = vrot.lane.b32.xlu0 %v2234, 96
    %v2306 = vpop.permute.xlu0 %2305
    %2307 = vrot.lane.b32.xlu0 %v2235, 96
    %v2308 = vpop.permute.xlu0 %2307
    %2309 = vrot.lane.b32.xlu0 %v2236, 96
    %v2310 = vpop.permute.xlu0 %2309
    %2311 = vrot.lane.b32.xlu0 %v2237, 96
    %v2312 = vpop.permute.xlu0 %2311
    %2313 = vrot.lane.b32.xlu0 %v2238, 96
    %v2314 = vpop.permute.xlu0 %2313
    %2315 = vrot.lane.b32.xlu0 %v2239, 96
    %v2316 = vpop.permute.xlu0 %2315
    %2317 = vrot.lane.b32.xlu0 %v2240, 96
    %v2318 = vpop.permute.xlu0 %2317
    %2319 = vrot.lane.b32.xlu0 %v2241, 96
    %v2320 = vpop.permute.xlu0 %2319
    %2321 = vrot.lane.b32.xlu0 %v2242, 96
    %v2322 = vpop.permute.xlu0 %2321
    %2323 = vrot.lane.b32.xlu0 %v2243, 96
    %v2324 = vpop.permute.xlu0 %2323
    %2325 = vrot.lane.b32.xlu0 %v2244, 96
    %v2326 = vpop.permute.xlu0 %2325
    %2327 = vrot.lane.b32.xlu0 %v2245, 96
    %v2328 = vpop.permute.xlu0 %2327
    %2329 = vrot.lane.b32.xlu0 %v2246, 96
    %v2330 = vpop.permute.xlu0 %2329
    %2331 = vrot.lane.b32.xlu0 %v2247, 96
    %v2332 = vpop.permute.xlu0 %2331
    %2333 = vrot.lane.b32.xlu0 %v2248, 96
    %v2334 = vpop.permute.xlu0 %2333
    %2335 = vrot.lane.b32.xlu0 %v2249, 96
    %v2336 = vpop.permute.xlu0 %2335
    %2337 = vrot.lane.b32.xlu0 %v2250, 96
    %v2338 = vpop.permute.xlu0 %2337
    %2339 = vrot.lane.b32.xlu0 %v2251, 96
    %v2340 = vpop.permute.xlu0 %2339
    %2341 = vrot.lane.b32.xlu0 %v2252, 96
    %v2342 = vpop.permute.xlu0 %2341
    %2343 = vrot.lane.b32.xlu0 %v2253, 96
    %v2344 = vpop.permute.xlu0 %2343
    %2345 = vrot.lane.b32.xlu0 %v2254, 96
    %v2346 = vpop.permute.xlu0 %2345
    %2347 = vrot.lane.b32.xlu0 %v2255, 96
    %v2348 = vpop.permute.xlu0 %2347
    %2349 = vrot.lane.b32.xlu0 %v2256, 96
    %v2350 = vpop.permute.xlu0 %2349
    %2351 = vrot.lane.b32.xlu0 %v2257, 96
    %v2352 = vpop.permute.xlu0 %2351
    %2353 = vrot.lane.b32.xlu0 %v2258, 96
    %v2354 = vpop.permute.xlu0 %2353
    %v2387 = vsel %vm57, %v2292, 0.0
    %2388 = vadd.xlane.f32.xlu0 %v2387
    %v2389 = vpop.xlane.xlu0 %2388
    %v2390 = vsel %vm57, %v2294, 0.0
    %2391 = vadd.xlane.f32.xlu0 %v2390
    %v2392 = vpop.xlane.xlu0 %2391
    %v2393 = vsel %vm57, %v2296, 0.0
    %2394 = vadd.xlane.f32.xlu0 %v2393
    %v2395 = vpop.xlane.xlu0 %2394
    %v2396 = vsel %vm57, %v2298, 0.0
    %2397 = vadd.xlane.f32.xlu0 %v2396
    %v2398 = vpop.xlane.xlu0 %2397
    %v2399 = vsel %vm57, %v2300, 0.0
    %2400 = vadd.xlane.f32.xlu0 %v2399
    %v2401 = vpop.xlane.xlu0 %2400
    %v2402 = vsel %vm57, %v2302, 0.0
    %2403 = vadd.xlane.f32.xlu0 %v2402
    %v2404 = vpop.xlane.xlu0 %2403
    %v2405 = vsel %vm57, %v2304, 0.0
    %2406 = vadd.xlane.f32.xlu0 %v2405
    %v2407 = vpop.xlane.xlu0 %2406
    %v2408 = vsel %vm57, %v2306, 0.0
    %2409 = vadd.xlane.f32.xlu0 %v2408
    %v2410 = vpop.xlane.xlu0 %2409
    %v2411 = vsel %vm57, %v2308, 0.0
    %2412 = vadd.xlane.f32.xlu0 %v2411
    %v2413 = vpop.xlane.xlu0 %2412
    %v2414 = vsel %vm57, %v2310, 0.0
    %2415 = vadd.xlane.f32.xlu0 %v2414
    %v2416 = vpop.xlane.xlu0 %2415
    %v2417 = vsel %vm57, %v2312, 0.0
    %2418 = vadd.xlane.f32.xlu0 %v2417
    %v2419 = vpop.xlane.xlu0 %2418
    %v2420 = vsel %vm57, %v2314, 0.0
    %2421 = vadd.xlane.f32.xlu0 %v2420
    %v2422 = vpop.xlane.xlu0 %2421
    %v2423 = vsel %vm57, %v2316, 0.0
    %2424 = vadd.xlane.f32.xlu0 %v2423
    %v2425 = vpop.xlane.xlu0 %2424
    %v2426 = vsel %vm57, %v2318, 0.0
    %2427 = vadd.xlane.f32.xlu0 %v2426
    %v2428 = vpop.xlane.xlu0 %2427
    %v2429 = vsel %vm57, %v2320, 0.0
    %2430 = vadd.xlane.f32.xlu0 %v2429
    %v2431 = vpop.xlane.xlu0 %2430
    %v2432 = vsel %vm57, %v2322, 0.0
    %2433 = vadd.xlane.f32.xlu0 %v2432
    %v2434 = vpop.xlane.xlu0 %2433
    %v2435 = vsel %vm57, %v2324, 0.0
    %2436 = vadd.xlane.f32.xlu0 %v2435
    %v2437 = vpop.xlane.xlu0 %2436
    %v2438 = vsel %vm57, %v2326, 0.0
    %2439 = vadd.xlane.f32.xlu0 %v2438
    %v2440 = vpop.xlane.xlu0 %2439
    %v2441 = vsel %vm57, %v2328, 0.0
    %2442 = vadd.xlane.f32.xlu0 %v2441
    %v2443 = vpop.xlane.xlu0 %2442
    %v2444 = vsel %vm57, %v2330, 0.0
    %2445 = vadd.xlane.f32.xlu0 %v2444
    %v2446 = vpop.xlane.xlu0 %2445
    %v2447 = vsel %vm57, %v2332, 0.0
    %2448 = vadd.xlane.f32.xlu0 %v2447
    %v2449 = vpop.xlane.xlu0 %2448
    %v2450 = vsel %vm57, %v2334, 0.0
    %2451 = vadd.xlane.f32.xlu0 %v2450
    %v2452 = vpop.xlane.xlu0 %2451
    %v2453 = vsel %vm57, %v2336, 0.0
    %2454 = vadd.xlane.f32.xlu0 %v2453
    %v2455 = vpop.xlane.xlu0 %2454
    %v2456 = vsel %vm57, %v2338, 0.0
    %2457 = vadd.xlane.f32.xlu0 %v2456
    %v2458 = vpop.xlane.xlu0 %2457
    %v2459 = vsel %vm57, %v2340, 0.0
    %2460 = vadd.xlane.f32.xlu0 %v2459
    %v2461 = vpop.xlane.xlu0 %2460
    %v2462 = vsel %vm57, %v2342, 0.0
    %2463 = vadd.xlane.f32.xlu0 %v2462
    %v2464 = vpop.xlane.xlu0 %2463
    %v2465 = vsel %vm57, %v2344, 0.0
    %2466 = vadd.xlane.f32.xlu0 %v2465
    %v2467 = vpop.xlane.xlu0 %2466
    %v2468 = vsel %vm57, %v2346, 0.0
    %2469 = vadd.xlane.f32.xlu0 %v2468
    %v2470 = vpop.xlane.xlu0 %2469
    %v2471 = vsel %vm57, %v2348, 0.0
    %2472 = vadd.xlane.f32.xlu0 %v2471
    %v2473 = vpop.xlane.xlu0 %2472
    %v2474 = vsel %vm57, %v2350, 0.0
    %2475 = vadd.xlane.f32.xlu0 %v2474
    %v2476 = vpop.xlane.xlu0 %2475
    %v2477 = vsel %vm57, %v2352, 0.0
    %2478 = vadd.xlane.f32.xlu0 %v2477
    %v2479 = vpop.xlane.xlu0 %2478
    %v2480 = vsel %vm57, %v2354, 0.0
    %2481 = vadd.xlane.f32.xlu0 %v2480
    %v2482 = vpop.xlane.xlu0 %2481
    %v2483 = vsel %vm481, %v2292, 0.0
    %v2484 = vsel %vm481, %v2294, 0.0
    %v2485 = vsel %vm481, %v2296, 0.0
    %v2486 = vsel %vm481, %v2298, 0.0
    %v2487 = vsel %vm481, %v2300, 0.0
    %v2488 = vsel %vm481, %v2302, 0.0
    %v2489 = vsel %vm481, %v2304, 0.0
    %v2490 = vsel %vm481, %v2306, 0.0
    %v2491 = vsel %vm481, %v2308, 0.0
    %v2492 = vsel %vm481, %v2310, 0.0
    %v2493 = vsel %vm481, %v2312, 0.0
    %v2494 = vsel %vm481, %v2314, 0.0
    %v2495 = vsel %vm481, %v2316, 0.0
    %v2496 = vsel %vm481, %v2318, 0.0
    %v2497 = vsel %vm481, %v2320, 0.0
    %v2498 = vsel %vm481, %v2322, 0.0
    %v2499 = vsel %vm481, %v2324, 0.0
    %v2500 = vsel %vm481, %v2326, 0.0
    %v2501 = vsel %vm481, %v2328, 0.0
    %v2502 = vsel %vm481, %v2330, 0.0
    %v2503 = vsel %vm481, %v2332, 0.0
    %v2504 = vsel %vm481, %v2334, 0.0
    %v2505 = vsel %vm481, %v2336, 0.0
    %v2506 = vsel %vm481, %v2338, 0.0
    %v2507 = vsel %vm481, %v2340, 0.0
    %v2508 = vsel %vm481, %v2342, 0.0
    %v2509 = vsel %vm481, %v2344, 0.0
    %v2510 = vsel %vm481, %v2346, 0.0
    %v2511 = vsel %vm481, %v2348, 0.0
    %v2512 = vsel %vm481, %v2350, 0.0
    %v2513 = vsel %vm481, %v2352, 0.0
    %v2514 = vsel %vm481, %v2354, 0.0
    %v2515 = vsel %vm57, %v2483, 0.0
    %2516 = vadd.xlane.f32.xlu0 %v2515
    %v2517 = vpop.xlane.xlu0 %2516
    %v2518 = vsel %vm57, %v2484, 0.0
    %2519 = vadd.xlane.f32.xlu0 %v2518
    %v2520 = vpop.xlane.xlu0 %2519
    %v2521 = vsel %vm57, %v2485, 0.0
    %2522 = vadd.xlane.f32.xlu0 %v2521
    %v2523 = vpop.xlane.xlu0 %2522
    %v2524 = vsel %vm57, %v2486, 0.0
    %2525 = vadd.xlane.f32.xlu0 %v2524
    %v2526 = vpop.xlane.xlu0 %2525
    %v2527 = vsel %vm57, %v2487, 0.0
    %2528 = vadd.xlane.f32.xlu0 %v2527
    %v2529 = vpop.xlane.xlu0 %2528
    %v2530 = vsel %vm57, %v2488, 0.0
    %2531 = vadd.xlane.f32.xlu0 %v2530
    %v2532 = vpop.xlane.xlu0 %2531
    %v2533 = vsel %vm57, %v2489, 0.0
    %2534 = vadd.xlane.f32.xlu0 %v2533
    %v2535 = vpop.xlane.xlu0 %2534
    %v2536 = vsel %vm57, %v2490, 0.0
    %2537 = vadd.xlane.f32.xlu0 %v2536
    %v2538 = vpop.xlane.xlu0 %2537
    %v2539 = vsel %vm57, %v2491, 0.0
    %2540 = vadd.xlane.f32.xlu0 %v2539
    %v2541 = vpop.xlane.xlu0 %2540
    %v2542 = vsel %vm57, %v2492, 0.0
    %2543 = vadd.xlane.f32.xlu0 %v2542
    %v2544 = vpop.xlane.xlu0 %2543
    %v2545 = vsel %vm57, %v2493, 0.0
    %2546 = vadd.xlane.f32.xlu0 %v2545
    %v2547 = vpop.xlane.xlu0 %2546
    %v2548 = vsel %vm57, %v2494, 0.0
    %2549 = vadd.xlane.f32.xlu0 %v2548
    %v2550 = vpop.xlane.xlu0 %2549
    %v2551 = vsel %vm57, %v2495, 0.0
    %2552 = vadd.xlane.f32.xlu0 %v2551
    %v2553 = vpop.xlane.xlu0 %2552
    %v2554 = vsel %vm57, %v2496, 0.0
    %2555 = vadd.xlane.f32.xlu0 %v2554
    %v2556 = vpop.xlane.xlu0 %2555
    %v2557 = vsel %vm57, %v2497, 0.0
    %2558 = vadd.xlane.f32.xlu0 %v2557
    %v2559 = vpop.xlane.xlu0 %2558
    %v2560 = vsel %vm57, %v2498, 0.0
    %2561 = vadd.xlane.f32.xlu0 %v2560
    %v2562 = vpop.xlane.xlu0 %2561
    %v2563 = vsel %vm57, %v2499, 0.0
    %2564 = vadd.xlane.f32.xlu0 %v2563
    %v2565 = vpop.xlane.xlu0 %2564
    %v2566 = vsel %vm57, %v2500, 0.0
    %2567 = vadd.xlane.f32.xlu0 %v2566
    %v2568 = vpop.xlane.xlu0 %2567
    %v2569 = vsel %vm57, %v2501, 0.0
    %2570 = vadd.xlane.f32.xlu0 %v2569
    %v2571 = vpop.xlane.xlu0 %2570
    %v2572 = vsel %vm57, %v2502, 0.0
    %2573 = vadd.xlane.f32.xlu0 %v2572
    %v2574 = vpop.xlane.xlu0 %2573
    %v2575 = vsel %vm57, %v2503, 0.0
    %2576 = vadd.xlane.f32.xlu0 %v2575
    %v2577 = vpop.xlane.xlu0 %2576
    %v2578 = vsel %vm57, %v2504, 0.0
    %2579 = vadd.xlane.f32.xlu0 %v2578
    %v2580 = vpop.xlane.xlu0 %2579
    %v2581 = vsel %vm57, %v2505, 0.0
    %2582 = vadd.xlane.f32.xlu0 %v2581
    %v2583 = vpop.xlane.xlu0 %2582
    %v2584 = vsel %vm57, %v2506, 0.0
    %2585 = vadd.xlane.f32.xlu0 %v2584
    %v2586 = vpop.xlane.xlu0 %2585
    %v2587 = vsel %vm57, %v2507, 0.0
    %2588 = vadd.xlane.f32.xlu0 %v2587
    %v2589 = vpop.xlane.xlu0 %2588
    %v2590 = vsel %vm57, %v2508, 0.0
    %2591 = vadd.xlane.f32.xlu0 %v2590
    %v2592 = vpop.xlane.xlu0 %2591
    %v2593 = vsel %vm57, %v2509, 0.0
    %2594 = vadd.xlane.f32.xlu0 %v2593
    %v2595 = vpop.xlane.xlu0 %2594
    %v2596 = vsel %vm57, %v2510, 0.0
    %2597 = vadd.xlane.f32.xlu0 %v2596
    %v2598 = vpop.xlane.xlu0 %2597
    %v2599 = vsel %vm57, %v2511, 0.0
    %2600 = vadd.xlane.f32.xlu0 %v2599
    %v2601 = vpop.xlane.xlu0 %2600
    %v2602 = vsel %vm57, %v2512, 0.0
    %2603 = vadd.xlane.f32.xlu0 %v2602
    %v2604 = vpop.xlane.xlu0 %2603
    %v2605 = vsel %vm57, %v2513, 0.0
    %2606 = vadd.xlane.f32.xlu0 %v2605
    %v2607 = vpop.xlane.xlu0 %2606
    %v2608 = vsel %vm57, %v2514, 0.0
    %2609 = vadd.xlane.f32.xlu0 %v2608
    %v2610 = vpop.xlane.xlu0 %2609
    %v2611 = vsub.f32 %v2389, %v2517
    %v2612 = vsub.f32 %v2392, %v2520
    %v2613 = vsub.f32 %v2395, %v2523
    %v2614 = vsub.f32 %v2398, %v2526
    %v2615 = vsub.f32 %v2401, %v2529
    %v2616 = vsub.f32 %v2404, %v2532
    %v2617 = vsub.f32 %v2407, %v2535
    %v2618 = vsub.f32 %v2410, %v2538
    %v2619 = vsub.f32 %v2413, %v2541
    %v2620 = vsub.f32 %v2416, %v2544
    %v2621 = vsub.f32 %v2419, %v2547
    %v2622 = vsub.f32 %v2422, %v2550
    %v2623 = vsub.f32 %v2425, %v2553
    %v2624 = vsub.f32 %v2428, %v2556
    %v2625 = vsub.f32 %v2431, %v2559
    %v2626 = vsub.f32 %v2434, %v2562
    %v2627 = vsub.f32 %v2437, %v2565
    %v2628 = vsub.f32 %v2440, %v2568
    %v2629 = vsub.f32 %v2443, %v2571
    %v2630 = vsub.f32 %v2446, %v2574
    %v2631 = vsub.f32 %v2449, %v2577
    %v2632 = vsub.f32 %v2452, %v2580
    %v2633 = vsub.f32 %v2455, %v2583
    %v2634 = vsub.f32 %v2458, %v2586
    %v2635 = vsub.f32 %v2461, %v2589
    %v2636 = vsub.f32 %v2464, %v2592
    %v2637 = vsub.f32 %v2467, %v2595
    %v2638 = vsub.f32 %v2470, %v2598
    %v2639 = vsub.f32 %v2473, %v2601
    %v2640 = vsub.f32 %v2476, %v2604
    %v2641 = vsub.f32 %v2479, %v2607
    %v2642 = vsub.f32 %v2482, %v2610
    %v2643 = vsel %vm481, %v2517, %v2611
    %v2644 = vsel %vm481, %v2520, %v2612
    %v2645 = vsel %vm481, %v2523, %v2613
    %v2646 = vsel %vm481, %v2526, %v2614
    %v2647 = vsel %vm481, %v2529, %v2615
    %v2648 = vsel %vm481, %v2532, %v2616
    %v2649 = vsel %vm481, %v2535, %v2617
    %v2650 = vsel %vm481, %v2538, %v2618
    %v2651 = vsel %vm481, %v2541, %v2619
    %v2652 = vsel %vm481, %v2544, %v2620
    %v2653 = vsel %vm481, %v2547, %v2621
    %v2654 = vsel %vm481, %v2550, %v2622
    %v2655 = vsel %vm481, %v2553, %v2623
    %v2656 = vsel %vm481, %v2556, %v2624
    %v2657 = vsel %vm481, %v2559, %v2625
    %v2658 = vsel %vm481, %v2562, %v2626
    %v2659 = vsel %vm481, %v2565, %v2627
    %v2660 = vsel %vm481, %v2568, %v2628
    %v2661 = vsel %vm481, %v2571, %v2629
    %v2662 = vsel %vm481, %v2574, %v2630
    %v2663 = vsel %vm481, %v2577, %v2631
    %v2664 = vsel %vm481, %v2580, %v2632
    %v2665 = vsel %vm481, %v2583, %v2633
    %v2666 = vsel %vm481, %v2586, %v2634
    %v2667 = vsel %vm481, %v2589, %v2635
    %v2668 = vsel %vm481, %v2592, %v2636
    %v2669 = vsel %vm481, %v2595, %v2637
    %v2670 = vsel %vm481, %v2598, %v2638
    %v2671 = vsel %vm481, %v2601, %v2639
    %v2672 = vsel %vm481, %v2604, %v2640
    %v2673 = vsel %vm481, %v2607, %v2641
    %v2674 = vsel %vm481, %v2610, %v2642
    %v2675 = vmul.f32 %v2643, 0.0625
    %v2676 = vmul.f32 %v2644, 0.0625
    %v2677 = vmul.f32 %v2645, 0.0625
    %v2678 = vmul.f32 %v2646, 0.0625
    %v2679 = vmul.f32 %v2647, 0.0625
    %v2680 = vmul.f32 %v2648, 0.0625
    %v2681 = vmul.f32 %v2649, 0.0625
    %v2682 = vmul.f32 %v2650, 0.0625
    %v2683 = vmul.f32 %v2651, 0.0625
    %v2684 = vmul.f32 %v2652, 0.0625
    %v2685 = vmul.f32 %v2653, 0.0625
    %v2686 = vmul.f32 %v2654, 0.0625
    %v2687 = vmul.f32 %v2655, 0.0625
    %v2688 = vmul.f32 %v2656, 0.0625
    %v2689 = vmul.f32 %v2657, 0.0625
    %v2690 = vmul.f32 %v2658, 0.0625
    %v2691 = vmul.f32 %v2659, 0.0625
    %v2692 = vmul.f32 %v2660, 0.0625
    %v2693 = vmul.f32 %v2661, 0.0625
    %v2694 = vmul.f32 %v2662, 0.0625
    %v2695 = vmul.f32 %v2663, 0.0625
    %v2696 = vmul.f32 %v2664, 0.0625
    %v2697 = vmul.f32 %v2665, 0.0625
    %v2698 = vmul.f32 %v2666, 0.0625
    %v2699 = vmul.f32 %v2667, 0.0625
    %v2700 = vmul.f32 %v2668, 0.0625
    %v2701 = vmul.f32 %v2669, 0.0625
    %v2702 = vmul.f32 %v2670, 0.0625
    %v2703 = vmul.f32 %v2671, 0.0625
    %v2704 = vmul.f32 %v2672, 0.0625
    %v2705 = vmul.f32 %v2673, 0.0625
    %v2706 = vmul.f32 %v2674, 0.0625
    %v2707 = vadd.f32 %v2675, 1e-05
    %v2708 = vadd.f32 %v2676, 1e-05
    %v2709 = vadd.f32 %v2677, 1e-05
    %v2710 = vadd.f32 %v2678, 1e-05
    %v2711 = vadd.f32 %v2679, 1e-05
    %v2712 = vadd.f32 %v2680, 1e-05
    %v2713 = vadd.f32 %v2681, 1e-05
    %v2714 = vadd.f32 %v2682, 1e-05
    %v2715 = vadd.f32 %v2683, 1e-05
    %v2716 = vadd.f32 %v2684, 1e-05
    %v2717 = vadd.f32 %v2685, 1e-05
    %v2718 = vadd.f32 %v2686, 1e-05
    %v2719 = vadd.f32 %v2687, 1e-05
    %v2720 = vadd.f32 %v2688, 1e-05
    %v2721 = vadd.f32 %v2689, 1e-05
    %v2722 = vadd.f32 %v2690, 1e-05
    %v2723 = vadd.f32 %v2691, 1e-05
    %v2724 = vadd.f32 %v2692, 1e-05
    %v2725 = vadd.f32 %v2693, 1e-05
    %v2726 = vadd.f32 %v2694, 1e-05
    %v2727 = vadd.f32 %v2695, 1e-05
    %v2728 = vadd.f32 %v2696, 1e-05
    %v2729 = vadd.f32 %v2697, 1e-05
    %v2730 = vadd.f32 %v2698, 1e-05
    %v2731 = vadd.f32 %v2699, 1e-05
    %v2732 = vadd.f32 %v2700, 1e-05
    %v2733 = vadd.f32 %v2701, 1e-05
    %v2734 = vadd.f32 %v2702, 1e-05
    %v2735 = vadd.f32 %v2703, 1e-05
    %v2736 = vadd.f32 %v2704, 1e-05
    %v2737 = vadd.f32 %v2705, 1e-05
    %v2738 = vadd.f32 %v2706, 1e-05
    %v2739 = vrsqrt.pop %v2707
    %v2740 = vrsqrt.pop %v2708
    %v2741 = vrsqrt.pop %v2709
    %v2742 = vrsqrt.pop %v2710
    %v2743 = vrsqrt.pop %v2711
    %v2744 = vrsqrt.pop %v2712
    %v2745 = vrsqrt.pop %v2713
    %v2746 = vrsqrt.pop %v2714
    %v2747 = vrsqrt.pop %v2715
    %v2748 = vrsqrt.pop %v2716
    %v2749 = vrsqrt.pop %v2717
    %v2750 = vrsqrt.pop %v2718
    %v2751 = vrsqrt.pop %v2719
    %v2752 = vrsqrt.pop %v2720
    %v2753 = vrsqrt.pop %v2721
    %v2754 = vrsqrt.pop %v2722
    %v2755 = vrsqrt.pop %v2723
    %v2756 = vrsqrt.pop %v2724
    %v2757 = vrsqrt.pop %v2725
    %v2758 = vrsqrt.pop %v2726
    %v2759 = vrsqrt.pop %v2727
    %v2760 = vrsqrt.pop %v2728
    %v2761 = vrsqrt.pop %v2729
    %v2762 = vrsqrt.pop %v2730
    %v2763 = vrsqrt.pop %v2731
    %v2764 = vrsqrt.pop %v2732
    %v2765 = vrsqrt.pop %v2733
    %v2766 = vrsqrt.pop %v2734
    %v2767 = vrsqrt.pop %v2735
    %v2768 = vrsqrt.pop %v2736
    %v2769 = vrsqrt.pop %v2737
    %v2770 = vrsqrt.pop %v2738
    %2803 = vrot.lane.b32.xlu0 %v2739, 32
    %v2804 = vpop.permute.xlu0 %2803
    %2805 = vrot.lane.b32.xlu0 %v2740, 32
    %v2806 = vpop.permute.xlu0 %2805
    %2807 = vrot.lane.b32.xlu0 %v2741, 32
    %v2808 = vpop.permute.xlu0 %2807
    %2809 = vrot.lane.b32.xlu0 %v2742, 32
    %v2810 = vpop.permute.xlu0 %2809
    %2811 = vrot.lane.b32.xlu0 %v2743, 32
    %v2812 = vpop.permute.xlu0 %2811
    %2813 = vrot.lane.b32.xlu0 %v2744, 32
    %v2814 = vpop.permute.xlu0 %2813
    %2815 = vrot.lane.b32.xlu0 %v2745, 32
    %v2816 = vpop.permute.xlu0 %2815
    %2817 = vrot.lane.b32.xlu0 %v2746, 32
    %v2818 = vpop.permute.xlu0 %2817
    %2819 = vrot.lane.b32.xlu0 %v2747, 32
    %v2820 = vpop.permute.xlu0 %2819
    %2821 = vrot.lane.b32.xlu0 %v2748, 32
    %v2822 = vpop.permute.xlu0 %2821
    %2823 = vrot.lane.b32.xlu0 %v2749, 32
    %v2824 = vpop.permute.xlu0 %2823
    %2825 = vrot.lane.b32.xlu0 %v2750, 32
    %v2826 = vpop.permute.xlu0 %2825
    %2827 = vrot.lane.b32.xlu0 %v2751, 32
    %v2828 = vpop.permute.xlu0 %2827
    %2829 = vrot.lane.b32.xlu0 %v2752, 32
    %v2830 = vpop.permute.xlu0 %2829
    %2831 = vrot.lane.b32.xlu0 %v2753, 32
    %v2832 = vpop.permute.xlu0 %2831
    %2833 = vrot.lane.b32.xlu0 %v2754, 32
    %v2834 = vpop.permute.xlu0 %2833
    %2835 = vrot.lane.b32.xlu0 %v2755, 32
    %v2836 = vpop.permute.xlu0 %2835
    %2837 = vrot.lane.b32.xlu0 %v2756, 32
    %v2838 = vpop.permute.xlu0 %2837
    %2839 = vrot.lane.b32.xlu0 %v2757, 32
    %v2840 = vpop.permute.xlu0 %2839
    %2841 = vrot.lane.b32.xlu0 %v2758, 32
    %v2842 = vpop.permute.xlu0 %2841
    %2843 = vrot.lane.b32.xlu0 %v2759, 32
    %v2844 = vpop.permute.xlu0 %2843
    %2845 = vrot.lane.b32.xlu0 %v2760, 32
    %v2846 = vpop.permute.xlu0 %2845
    %2847 = vrot.lane.b32.xlu0 %v2761, 32
    %v2848 = vpop.permute.xlu0 %2847
    %2849 = vrot.lane.b32.xlu0 %v2762, 32
    %v2850 = vpop.permute.xlu0 %2849
    %2851 = vrot.lane.b32.xlu0 %v2763, 32
    %v2852 = vpop.permute.xlu0 %2851
    %2853 = vrot.lane.b32.xlu0 %v2764, 32
    %v2854 = vpop.permute.xlu0 %2853
    %2855 = vrot.lane.b32.xlu0 %v2765, 32
    %v2856 = vpop.permute.xlu0 %2855
    %2857 = vrot.lane.b32.xlu0 %v2766, 32
    %v2858 = vpop.permute.xlu0 %2857
    %2859 = vrot.lane.b32.xlu0 %v2767, 32
    %v2860 = vpop.permute.xlu0 %2859
    %2861 = vrot.lane.b32.xlu0 %v2768, 32
    %v2862 = vpop.permute.xlu0 %2861
    %2863 = vrot.lane.b32.xlu0 %v2769, 32
    %v2864 = vpop.permute.xlu0 %2863
    %2865 = vrot.lane.b32.xlu0 %v2770, 32
    %v2866 = vpop.permute.xlu0 %2865
    %v2899 = vmul.f32 %v2195, %v2804
    %v2900 = vmul.f32 %v2196, %v2806
    %v2901 = vmul.f32 %v2197, %v2808
    %v2902 = vmul.f32 %v2198, %v2810
    %v2903 = vmul.f32 %v2199, %v2812
    %v2904 = vmul.f32 %v2200, %v2814
    %v2905 = vmul.f32 %v2201, %v2816
    %v2906 = vmul.f32 %v2202, %v2818
    %v2907 = vmul.f32 %v2203, %v2820
    %v2908 = vmul.f32 %v2204, %v2822
    %v2909 = vmul.f32 %v2205, %v2824
    %v2910 = vmul.f32 %v2206, %v2826
    %v2911 = vmul.f32 %v2207, %v2828
    %v2912 = vmul.f32 %v2208, %v2830
    %v2913 = vmul.f32 %v2209, %v2832
    %v2914 = vmul.f32 %v2210, %v2834
    %v2915 = vmul.f32 %v2211, %v2836
    %v2916 = vmul.f32 %v2212, %v2838
    %v2917 = vmul.f32 %v2213, %v2840
    %v2918 = vmul.f32 %v2214, %v2842
    %v2919 = vmul.f32 %v2215, %v2844
    %v2920 = vmul.f32 %v2216, %v2846
    %v2921 = vmul.f32 %v2217, %v2848
    %v2922 = vmul.f32 %v2218, %v2850
    %v2923 = vmul.f32 %v2219, %v2852
    %v2924 = vmul.f32 %v2220, %v2854
    %v2925 = vmul.f32 %v2221, %v2856
    %v2926 = vmul.f32 %v2222, %v2858
    %v2927 = vmul.f32 %v2223, %v2860
    %v2928 = vmul.f32 %v2224, %v2862
    %v2929 = vmul.f32 %v2225, %v2864
    %v2930 = vmul.f32 %v2226, %v2866
    %2931 = vrot.lane.b32.xlu0 %v1190, 32
    %v2932 = vpop.permute.xlu0 %2931
    %v2934 = vmul.f32 %v2899, %v2932
    %v2935 = vmul.f32 %v2900, %v2932
    %v2936 = vmul.f32 %v2901, %v2932
    %v2937 = vmul.f32 %v2902, %v2932
    %v2938 = vmul.f32 %v2903, %v2932
    %v2939 = vmul.f32 %v2904, %v2932
    %v2940 = vmul.f32 %v2905, %v2932
    %v2941 = vmul.f32 %v2906, %v2932
    %v2942 = vmul.f32 %v2907, %v2932
    %v2943 = vmul.f32 %v2908, %v2932
    %v2944 = vmul.f32 %v2909, %v2932
    %v2945 = vmul.f32 %v2910, %v2932
    %v2946 = vmul.f32 %v2911, %v2932
    %v2947 = vmul.f32 %v2912, %v2932
    %v2948 = vmul.f32 %v2913, %v2932
    %v2949 = vmul.f32 %v2914, %v2932
    %v2950 = vmul.f32 %v2915, %v2932
    %v2951 = vmul.f32 %v2916, %v2932
    %v2952 = vmul.f32 %v2917, %v2932
    %v2953 = vmul.f32 %v2918, %v2932
    %v2954 = vmul.f32 %v2919, %v2932
    %v2955 = vmul.f32 %v2920, %v2932
    %v2956 = vmul.f32 %v2921, %v2932
    %v2957 = vmul.f32 %v2922, %v2932
    %v2958 = vmul.f32 %v2923, %v2932
    %v2959 = vmul.f32 %v2924, %v2932
    %v2960 = vmul.f32 %v2925, %v2932
    %v2961 = vmul.f32 %v2926, %v2932
    %v2962 = vmul.f32 %v2927, %v2932
    %v2963 = vmul.f32 %v2928, %v2932
    %v2964 = vmul.f32 %v2929, %v2932
    %v2965 = vmul.f32 %v2930, %v2932
    %2966 = vrot.lane.b32.xlu0 %v1228, 32
    %v2967 = vpop.permute.xlu0 %2966
    %v2969 = vadd.f32 %v2934, %v2967
    %v2970 = vadd.f32 %v2935, %v2967
    %v2971 = vadd.f32 %v2936, %v2967
    %v2972 = vadd.f32 %v2937, %v2967
    %v2973 = vadd.f32 %v2938, %v2967
    %v2974 = vadd.f32 %v2939, %v2967
    %v2975 = vadd.f32 %v2940, %v2967
    %v2976 = vadd.f32 %v2941, %v2967
    %v2977 = vadd.f32 %v2942, %v2967
    %v2978 = vadd.f32 %v2943, %v2967
    %v2979 = vadd.f32 %v2944, %v2967
    %v2980 = vadd.f32 %v2945, %v2967
    %v2981 = vadd.f32 %v2946, %v2967
    %v2982 = vadd.f32 %v2947, %v2967
    %v2983 = vadd.f32 %v2948, %v2967
    %v2984 = vadd.f32 %v2949, %v2967
    %v2985 = vadd.f32 %v2950, %v2967
    %v2986 = vadd.f32 %v2951, %v2967
    %v2987 = vadd.f32 %v2952, %v2967
    %v2988 = vadd.f32 %v2953, %v2967
    %v2989 = vadd.f32 %v2954, %v2967
    %v2990 = vadd.f32 %v2955, %v2967
    %v2991 = vadd.f32 %v2956, %v2967
    %v2992 = vadd.f32 %v2957, %v2967
    %v2993 = vadd.f32 %v2958, %v2967
    %v2994 = vadd.f32 %v2959, %v2967
    %v2995 = vadd.f32 %v2960, %v2967
    %v2996 = vadd.f32 %v2961, %v2967
    %v2997 = vadd.f32 %v2962, %v2967
    %v2998 = vadd.f32 %v2963, %v2967
    %v2999 = vadd.f32 %v2964, %v2967
    %v3000 = vadd.f32 %v2965, %v2967
    %v3001 = vld [vmem:[%s4] sm:$0xff]
    %v3002 = vld [vmem:[%s4 + $0x8] sm:$0xff]
    %v3003 = vld [vmem:[%s4 + $0x10] sm:$0xff]
    %v3004 = vld [vmem:[%s4 + $0x18] sm:$0xff]
    %3037 = vrot.lane.b32.xlu0 %v2969, 96
    %v3038 = vpop.permute.xlu0 %3037
    %3039 = vrot.lane.b32.xlu0 %v2970, 96
    %v3040 = vpop.permute.xlu0 %3039
    %3041 = vrot.lane.b32.xlu0 %v2971, 96
    %v3042 = vpop.permute.xlu0 %3041
    %3043 = vrot.lane.b32.xlu0 %v2972, 96
    %v3044 = vpop.permute.xlu0 %3043
    %3045 = vrot.lane.b32.xlu0 %v2973, 96
    %v3046 = vpop.permute.xlu0 %3045
    %3047 = vrot.lane.b32.xlu0 %v2974, 96
    %v3048 = vpop.permute.xlu0 %3047
    %3049 = vrot.lane.b32.xlu0 %v2975, 96
    %v3050 = vpop.permute.xlu0 %3049
    %3051 = vrot.lane.b32.xlu0 %v2976, 96
    %v3052 = vpop.permute.xlu0 %3051
    %3053 = vrot.lane.b32.xlu0 %v2977, 96
    %v3054 = vpop.permute.xlu0 %3053
    %3055 = vrot.lane.b32.xlu0 %v2978, 96
    %v3056 = vpop.permute.xlu0 %3055
    %3057 = vrot.lane.b32.xlu0 %v2979, 96
    %v3058 = vpop.permute.xlu0 %3057
    %3059 = vrot.lane.b32.xlu0 %v2980, 96
    %v3060 = vpop.permute.xlu0 %3059
    %3061 = vrot.lane.b32.xlu0 %v2981, 96
    %v3062 = vpop.permute.xlu0 %3061
    %3063 = vrot.lane.b32.xlu0 %v2982, 96
    %v3064 = vpop.permute.xlu0 %3063
    %3065 = vrot.lane.b32.xlu0 %v2983, 96
    %v3066 = vpop.permute.xlu0 %3065
    %3067 = vrot.lane.b32.xlu0 %v2984, 96
    %v3068 = vpop.permute.xlu0 %3067
    %3069 = vrot.lane.b32.xlu0 %v2985, 96
    %v3070 = vpop.permute.xlu0 %3069
    %3071 = vrot.lane.b32.xlu0 %v2986, 96
    %v3072 = vpop.permute.xlu0 %3071
    %3073 = vrot.lane.b32.xlu0 %v2987, 96
    %v3074 = vpop.permute.xlu0 %3073
    %3075 = vrot.lane.b32.xlu0 %v2988, 96
    %v3076 = vpop.permute.xlu0 %3075
    %3077 = vrot.lane.b32.xlu0 %v2989, 96
    %v3078 = vpop.permute.xlu0 %3077
    %3079 = vrot.lane.b32.xlu0 %v2990, 96
    %v3080 = vpop.permute.xlu0 %3079
    %3081 = vrot.lane.b32.xlu0 %v2991, 96
    %v3082 = vpop.permute.xlu0 %3081
    %3083 = vrot.lane.b32.xlu0 %v2992, 96
    %v3084 = vpop.permute.xlu0 %3083
    %3085 = vrot.lane.b32.xlu0 %v2993, 96
    %v3086 = vpop.permute.xlu0 %3085
    %3087 = vrot.lane.b32.xlu0 %v2994, 96
    %v3088 = vpop.permute.xlu0 %3087
    %3089 = vrot.lane.b32.xlu0 %v2995, 96
    %v3090 = vpop.permute.xlu0 %3089
    %3091 = vrot.lane.b32.xlu0 %v2996, 96
    %v3092 = vpop.permute.xlu0 %3091
    %3093 = vrot.lane.b32.xlu0 %v2997, 96
    %v3094 = vpop.permute.xlu0 %3093
    %3095 = vrot.lane.b32.xlu0 %v2998, 96
    %v3096 = vpop.permute.xlu0 %3095
    %3097 = vrot.lane.b32.xlu0 %v2999, 96
    %v3098 = vpop.permute.xlu0 %3097
    %3099 = vrot.lane.b32.xlu0 %v3000, 96
    %v3100 = vpop.permute.xlu0 %3099
    %v3101 = vsel %vm57, %v3038, 0
    %v3103 = vsel %vm57, %v3040, 0
    %v3105 = vsel %vm57, %v3042, 0
    %v3107 = vsel %vm57, %v3044, 0
    %v3109 = vsel %vm57, %v3046, 0
    %v3111 = vsel %vm57, %v3048, 0
    %v3113 = vsel %vm57, %v3050, 0
    %v3115 = vsel %vm57, %v3052, 0
    %v3117 = vsel %vm57, %v3054, 0
    %v3119 = vsel %vm57, %v3056, 0
    %v3121 = vsel %vm57, %v3058, 0
    %v3123 = vsel %vm57, %v3060, 0
    %v3125 = vsel %vm57, %v3062, 0
    %v3127 = vsel %vm57, %v3064, 0
    %v3129 = vsel %vm57, %v3066, 0
    %v3131 = vsel %vm57, %v3068, 0
    %v3133 = vsel %vm57, %v3070, 0
    %v3135 = vsel %vm57, %v3072, 0
    %v3137 = vsel %vm57, %v3074, 0
    %v3139 = vsel %vm57, %v3076, 0
    %v3141 = vsel %vm57, %v3078, 0
    %v3143 = vsel %vm57, %v3080, 0
    %v3145 = vsel %vm57, %v3082, 0
    %v3147 = vsel %vm57, %v3084, 0
    %v3149 = vsel %vm57, %v3086, 0
    %v3151 = vsel %vm57, %v3088, 0
    %v3153 = vsel %vm57, %v3090, 0
    %v3155 = vsel %vm57, %v3092, 0
    %v3157 = vsel %vm57, %v3094, 0
    %v3159 = vsel %vm57, %v3096, 0
    %v3161 = vsel %vm57, %v3098, 0
    %v3163 = vsel %vm57, %v3100, 0
    %3165 = vmatprep.subr.mxu0 0.0
    %3166 = vmatpush1.msra.mxu0 %v3001
    %3167 = vmatprep.subr.mxu0 0.0
    %3168 = vmatpush1.msra.mxu0 %v3002
    %3169 = vmatprep.subr.mxu0 0.0
    %3170 = vmatpush1.msra.mxu0 %v3003
    %3171 = vmatprep.subr.mxu0 0.0
    %3172 = vmatpush1.msra.mxu0 %v3004
    %3173 = vmatprep.subr.mxu0 0.0
    %3174 = vmatpush1.msra.mxu0 0.0
    %3175 = vmatprep.subr.mxu0 0.0
    %3176 = vmatpush1.msra.mxu0 0.0
    %3177 = vmatprep.subr.mxu0 0.0
    %3178 = vmatpush1.msra.mxu0 0.0
    %3179 = vmatprep.subr.mxu0 0.0
    %3180 = vmatpush1.msra.mxu0 0.0
    %3181 = vmatprep.subr.mxu0 0.0
    %3182 = vmatpush1.msra.mxu0 0.0
    %3183 = vmatprep.subr.mxu0 0.0
    %3184 = vmatpush1.msra.mxu0 0.0
    %3185 = vmatprep.subr.mxu0 0.0
    %3186 = vmatpush1.msra.mxu0 0.0
    %3187 = vmatprep.subr.mxu0 0.0
    %3188 = vmatpush1.msra.mxu0 0.0
    %3189 = vmatprep.subr.mxu0 0.0
    %3190 = vmatpush1.msra.mxu0 0.0
    %3191 = vmatprep.subr.mxu0 0.0
    %3192 = vmatpush1.msra.mxu0 0.0
    %3193 = vmatprep.subr.mxu0 0.0
    %3194 = vmatpush1.msra.mxu0 0.0
    %3195 = vmatprep.subr.mxu0 0.0
    %3196 = vmatpush1.msra.mxu0 0.0
    %3197 = vmatprep.subr.mxu0 0.0
    %3198 = vmatpush1.msra.mxu0 0.0
    %3199 = vmatprep.subr.mxu0 0.0
    %3200 = vmatpush1.msra.mxu0 0.0
    %3201 = vmatprep.subr.mxu0 0.0
    %3202 = vmatpush1.msra.mxu0 0.0
    %3203 = vmatprep.subr.mxu0 0.0
    %3204 = vmatpush1.msra.mxu0 0.0
    %3205 = vmatprep.subr.mxu0 0.0
    %3206 = vmatpush1.msra.mxu0 0.0
    %3207 = vmatprep.subr.mxu0 0.0
    %3208 = vmatpush1.msra.mxu0 0.0
    %3209 = vmatprep.subr.mxu0 0.0
    %3210 = vmatpush1.msra.mxu0 0.0
    %3211 = vmatprep.subr.mxu0 0.0
    %3212 = vmatpush1.msra.mxu0 0.0
    %3213 = vmatprep.subr.mxu0 0.0
    %3214 = vmatpush1.msra.mxu0 0.0
    %3215 = vmatprep.subr.mxu0 0.0
    %3216 = vmatpush1.msra.mxu0 0.0
    %3217 = vmatprep.subr.mxu0 0.0
    %3218 = vmatpush1.msra.mxu0 0.0
    %3219 = vmatprep.subr.mxu0 0.0
    %3220 = vmatpush1.msra.mxu0 0.0
    %3221 = vmatprep.subr.mxu0 0.0
    %3222 = vmatpush1.msra.mxu0 0.0
    %3223 = vmatprep.subr.mxu0 0.0
    %3224 = vmatpush1.msra.mxu0 0.0
    %3225 = vmatprep.subr.mxu0 0.0
    %3226 = vmatpush1.msra.mxu0 0.0
    %3227 = vmatprep.subr.mxu0 0.0
    %3228 = vmatpush1.msra.mxu0 0.0
    %3229 = vmatprep.mubr.f32.mxu0 0.0
    %3230 = vmatmul.mubr.f32.gmra.mrb[0].mxu0 %v3101
    %v3231 = vpop.f32.mrb[0].mxu0
    %v3232 = vadd.f32 0.0, %v3231
    %v3233 = vpop.f32.mrb[0].mxu0
    %3234 = vmatprep.mubr.f32.mxu0 0.0
    %3235 = vmatmul.mubr.f32.gmra.mrb[0].mxu0 %v3103
    %v3236 = vpop.f32.mrb[0].mxu0
    %v3237 = vadd.f32 0.0, %v3236
    %v3238 = vpop.f32.mrb[0].mxu0
    %3239 = vmatprep.mubr.f32.mxu0 0.0
    %3240 = vmatmul.mubr.f32.gmra.mrb[0].mxu0 %v3105
    %v3241 = vpop.f32.mrb[0].mxu0
    %v3242 = vadd.f32 0.0, %v3241
    %v3243 = vpop.f32.mrb[0].mxu0
    %3244 = vmatprep.mubr.f32.mxu0 0.0
    %3245 = vmatmul.mubr.f32.gmra.mrb[0].mxu0 %v3107
    %v3246 = vpop.f32.mrb[0].mxu0
    %v3247 = vadd.f32 0.0, %v3246
    %v3248 = vpop.f32.mrb[0].mxu0
    %3249 = vmatprep.mubr.f32.mxu0 0.0
    %3250 = vmatmul.mubr.f32.gmra.mrb[0].mxu0 %v3109
    %v3251 = vpop.f32.mrb[0].mxu0
    %v3252 = vadd.f32 0.0, %v3251
    %v3253 = vpop.f32.mrb[0].mxu0
    %3254 = vmatprep.mubr.f32.mxu0 0.0
    %3255 = vmatmul.mubr.f32.gmra.mrb[0].mxu0 %v3111
    %v3256 = vpop.f32.mrb[0].mxu0
    %v3257 = vadd.f32 0.0, %v3256
    %v3258 = vpop.f32.mrb[0].mxu0
    %3259 = vmatprep.mubr.f32.mxu0 0.0
    %3260 = vmatmul.mubr.f32.gmra.mrb[0].mxu0 %v3113
    %v3261 = vpop.f32.mrb[0].mxu0
    %v3262 = vadd.f32 0.0, %v3261
    %v3263 = vpop.f32.mrb[0].mxu0
    %3264 = vmatprep.mubr.f32.mxu0 0.0
    %3265 = vmatmul.mubr.f32.gmra.mrb[0].mxu0 %v3115
    %v3266 = vpop.f32.mrb[0].mxu0
    %v3267 = vadd.f32 0.0, %v3266
    %v3268 = vpop.f32.mrb[0].mxu0
    %3269 = vmatprep.mubr.f32.mxu0 0.0
    %3270 = vmatmul.mubr.f32.gmra.mrb[0].mxu0 %v3117
    %v3271 = vpop.f32.mrb[0].mxu0
    %v3272 = vadd.f32 0.0, %v3271
    %v3273 = vpop.f32.mrb[0].mxu0
    %3274 = vmatprep.mubr.f32.mxu0 0.0
    %3275 = vmatmul.mubr.f32.gmra.mrb[0].mxu0 %v3119
    %v3276 = vpop.f32.mrb[0].mxu0
    %v3277 = vadd.f32 0.0, %v3276
    %v3278 = vpop.f32.mrb[0].mxu0
    %3279 = vmatprep.mubr.f32.mxu0 0.0
    %3280 = vmatmul.mubr.f32.gmra.mrb[0].mxu0 %v3121
    %v3281 = vpop.f32.mrb[0].mxu0
    %v3282 = vadd.f32 0.0, %v3281
    %v3283 = vpop.f32.mrb[0].mxu0
    %3284 = vmatprep.mubr.f32.mxu0 0.0
    %3285 = vmatmul.mubr.f32.gmra.mrb[0].mxu0 %v3123
    %v3286 = vpop.f32.mrb[0].mxu0
    %v3287 = vadd.f32 0.0, %v3286
    %v3288 = vpop.f32.mrb[0].mxu0
    %3289 = vmatprep.mubr.f32.mxu0 0.0
    %3290 = vmatmul.mubr.f32.gmra.mrb[0].mxu0 %v3125
    %v3291 = vpop.f32.mrb[0].mxu0
    %v3292 = vadd.f32 0.0, %v3291
    %v3293 = vpop.f32.mrb[0].mxu0
    %3294 = vmatprep.mubr.f32.mxu0 0.0
    %3295 = vmatmul.mubr.f32.gmra.mrb[0].mxu0 %v3127
    %v3296 = vpop.f32.mrb[0].mxu0
    %v3297 = vadd.f32 0.0, %v3296
    %v3298 = vpop.f32.mrb[0].mxu0
    %3299 = vmatprep.mubr.f32.mxu0 0.0
    %3300 = vmatmul.mubr.f32.gmra.mrb[0].mxu0 %v3129
    %v3301 = vpop.f32.mrb[0].mxu0
    %v3302 = vadd.f32 0.0, %v3301
    %v3303 = vpop.f32.mrb[0].mxu0
    %3304 = vmatprep.mubr.f32.mxu0 0.0
    %3305 = vmatmul.mubr.f32.gmra.mrb[0].mxu0 %v3131
    %v3306 = vpop.f32.mrb[0].mxu0
    %v3307 = vadd.f32 0.0, %v3306
    %v3308 = vpop.f32.mrb[0].mxu0
    %3309 = vmatprep.mubr.f32.mxu0 0.0
    %3310 = vmatmul.mubr.f32.gmra.mrb[0].mxu0 %v3133
    %v3311 = vpop.f32.mrb[0].mxu0
    %v3312 = vadd.f32 0.0, %v3311
    %v3313 = vpop.f32.mrb[0].mxu0
    %3314 = vmatprep.mubr.f32.mxu0 0.0
    %3315 = vmatmul.mubr.f32.gmra.mrb[0].mxu0 %v3135
    %v3316 = vpop.f32.mrb[0].mxu0
    %v3317 = vadd.f32 0.0, %v3316
    %v3318 = vpop.f32.mrb[0].mxu0
    %3319 = vmatprep.mubr.f32.mxu0 0.0
    %3320 = vmatmul.mubr.f32.gmra.mrb[0].mxu0 %v3137
    %v3321 = vpop.f32.mrb[0].mxu0
    %v3322 = vadd.f32 0.0, %v3321
    %v3323 = vpop.f32.mrb[0].mxu0
    %3324 = vmatprep.mubr.f32.mxu0 0.0
    %3325 = vmatmul.mubr.f32.gmra.mrb[0].mxu0 %v3139
    %v3326 = vpop.f32.mrb[0].mxu0
    %v3327 = vadd.f32 0.0, %v3326
    %v3328 = vpop.f32.mrb[0].mxu0
    %3329 = vmatprep.mubr.f32.mxu0 0.0
    %3330 = vmatmul.mubr.f32.gmra.mrb[0].mxu0 %v3141
    %v3331 = vpop.f32.mrb[0].mxu0
    %v3332 = vadd.f32 0.0, %v3331
    %v3333 = vpop.f32.mrb[0].mxu0
    %3334 = vmatprep.mubr.f32.mxu0 0.0
    %3335 = vmatmul.mubr.f32.gmra.mrb[0].mxu0 %v3143
    %v3336 = vpop.f32.mrb[0].mxu0
    %v3337 = vadd.f32 0.0, %v3336
    %v3338 = vpop.f32.mrb[0].mxu0
    %3339 = vmatprep.mubr.f32.mxu0 0.0
    %3340 = vmatmul.mubr.f32.gmra.mrb[0].mxu0 %v3145
    %v3341 = vpop.f32.mrb[0].mxu0
    %v3342 = vadd.f32 0.0, %v3341
    %v3343 = vpop.f32.mrb[0].mxu0
    %3344 = vmatprep.mubr.f32.mxu0 0.0
    %3345 = vmatmul.mubr.f32.gmra.mrb[0].mxu0 %v3147
    %v3346 = vpop.f32.mrb[0].mxu0
    %v3347 = vadd.f32 0.0, %v3346
    %v3348 = vpop.f32.mrb[0].mxu0
    %3349 = vmatprep.mubr.f32.mxu0 0.0
    %3350 = vmatmul.mubr.f32.gmra.mrb[0].mxu0 %v3149
    %v3351 = vpop.f32.mrb[0].mxu0
    %v3352 = vadd.f32 0.0, %v3351
    %v3353 = vpop.f32.mrb[0].mxu0
    %3354 = vmatprep.mubr.f32.mxu0 0.0
    %3355 = vmatmul.mubr.f32.gmra.mrb[0].mxu0 %v3151
    %v3356 = vpop.f32.mrb[0].mxu0
    %v3357 = vadd.f32 0.0, %v3356
    %v3358 = vpop.f32.mrb[0].mxu0
    %3359 = vmatprep.mubr.f32.mxu0 0.0
    %3360 = vmatmul.mubr.f32.gmra.mrb[0].mxu0 %v3153
    %v3361 = vpop.f32.mrb[0].mxu0
    %v3362 = vadd.f32 0.0, %v3361
    %v3363 = vpop.f32.mrb[0].mxu0
    %3364 = vmatprep.mubr.f32.mxu0 0.0
    %3365 = vmatmul.mubr.f32.gmra.mrb[0].mxu0 %v3155
    %v3366 = vpop.f32.mrb[0].mxu0
    %v3367 = vadd.f32 0.0, %v3366
    %v3368 = vpop.f32.mrb[0].mxu0
    %3369 = vmatprep.mubr.f32.mxu0 0.0
    %3370 = vmatmul.mubr.f32.gmra.mrb[0].mxu0 %v3157
    %v3371 = vpop.f32.mrb[0].mxu0
    %v3372 = vadd.f32 0.0, %v3371
    %v3373 = vpop.f32.mrb[0].mxu0
    %3374 = vmatprep.mubr.f32.mxu0 0.0
    %3375 = vmatmul.mubr.f32.gmra.mrb[0].mxu0 %v3159
    %v3376 = vpop.f32.mrb[0].mxu0
    %v3377 = vadd.f32 0.0, %v3376
    %v3378 = vpop.f32.mrb[0].mxu0
    %3379 = vmatprep.mubr.f32.mxu0 0.0
    %3380 = vmatmul.mubr.f32.gmra.mrb[0].mxu0 %v3161
    %v3381 = vpop.f32.mrb[0].mxu0
    %v3382 = vadd.f32 0.0, %v3381
    %v3383 = vpop.f32.mrb[0].mxu0
    %3384 = vmatprep.mubr.f32.mxu0 0.0
    %3385 = vmatmul.mubr.f32.gmra.mrb[0].mxu0 %v3163
    %v3386 = vpop.f32.mrb[0].mxu0
    %v3387 = vadd.f32 0.0, %v3386
    %v3388 = vpop.f32.mrb[0].mxu0
    %3389 = vdwg.mxu0
    %s3390 = scalar_lea.vmem [#allocation2], 8
    %3391 = vst.msk [vmem:[%s3390] sm:$0xff] %vm57, %v3232
    %3392 = vst.msk [vmem:[%s3390 + $0x10] sm:$0xff] %vm57, %v3237
    %3393 = vst.msk [vmem:[%s3390 + $0x20] sm:$0xff] %vm57, %v3242
    %3394 = vst.msk [vmem:[%s3390 + $0x30] sm:$0xff] %vm57, %v3247
    %3395 = vst.msk [vmem:[%s3390 + $0x40] sm:$0xff] %vm57, %v3252
    %3396 = vst.msk [vmem:[%s3390 + $0x50] sm:$0xff] %vm57, %v3257
    %3397 = vst.msk [vmem:[%s3390 + $0x60] sm:$0xff] %vm57, %v3262
    %3398 = vst.msk [vmem:[%s3390 + $0x70] sm:$0xff] %vm57, %v3267
    %3399 = vst.msk [vmem:[%s3390 + $0x80] sm:$0xff] %vm57, %v3272
    %3400 = vst.msk [vmem:[%s3390 + $0x90] sm:$0xff] %vm57, %v3277
    %3401 = vst.msk [vmem:[%s3390 + $0xa0] sm:$0xff] %vm57, %v3282
    %3402 = vst.msk [vmem:[%s3390 + $0xb0] sm:$0xff] %vm57, %v3287
    %3403 = vst.msk [vmem:[%s3390 + $0xc0] sm:$0xff] %vm57, %v3292
    %3404 = vst.msk [vmem:[%s3390 + $0xd0] sm:$0xff] %vm57, %v3297
    %3405 = vst.msk [vmem:[%s3390 + $0xe0] sm:$0xff] %vm57, %v3302
    %3406 = vst.msk [vmem:[%s3390 + $0xf0] sm:$0xff] %vm57, %v3307
    %3407 = vst.msk [vmem:[%s3390 + $0x100] sm:$0xff] %vm57, %v3312
    %3408 = vst.msk [vmem:[%s3390 + $0x110] sm:$0xff] %vm57, %v3317
    %3409 = vst.msk [vmem:[%s3390 + $0x120] sm:$0xff] %vm57, %v3322
    %3410 = vst.msk [vmem:[%s3390 + $0x130] sm:$0xff] %vm57, %v3327
    %3411 = vst.msk [vmem:[%s3390 + $0x140] sm:$0xff] %vm57, %v3332
    %3412 = vst.msk [vmem:[%s3390 + $0x150] sm:$0xff] %vm57, %v3337
    %3413 = vst.msk [vmem:[%s3390 + $0x160] sm:$0xff] %vm57, %v3342
    %3414 = vst.msk [vmem:[%s3390 + $0x170] sm:$0xff] %vm57, %v3347
    %3415 = vst.msk [vmem:[%s3390 + $0x180] sm:$0xff] %vm57, %v3352
    %3416 = vst.msk [vmem:[%s3390 + $0x190] sm:$0xff] %vm57, %v3357
    %3417 = vst.msk [vmem:[%s3390 + $0x1a0] sm:$0xff] %vm57, %v3362
    %3418 = vst.msk [vmem:[%s3390 + $0x1b0] sm:$0xff] %vm57, %v3367
    %3419 = vst.msk [vmem:[%s3390 + $0x1c0] sm:$0xff] %vm57, %v3372
    %3420 = vst.msk [vmem:[%s3390 + $0x1d0] sm:$0xff] %vm57, %v3377
    %3421 = vst.msk [vmem:[%s3390 + $0x1e0] sm:$0xff] %vm57, %v3382
    %3422 = vst.msk [vmem:[%s3390 + $0x1f0] sm:$0xff] %vm57, %v3387
    // Predicated region
    $region22: #{tpu_custom_call.1} parent=1 // pred_check
      _
    $region23: #{tpu_custom_call.1} parent=1 // pred_check_branch
      %3424 = sbr.rel (0) target = $region25
    $region24: #{tpu_custom_call.1} parent=1 // pred_region
      %s3426 = ssub.s32 8192, 8192
      %3427 = vsyncadd [#allocation3], %s3426
      %s3428 = sshll.u32 [#allocation2], 4
      %s3429 = int_to_ptr.vmem [resolvable:$true] %s3428
      %3434 = dma.vmem_to_hbm [thread:$0]  %s3429, 8192, %s5, [#allocation3], 128, 128, 8
    $region25: #{tpu_custom_call.1} parent=1 // pred_fallthru
      _
    // Predicated region
    $region26: #{tpu_custom_call.1} parent=1 // pred_check
      _
    $region27: #{tpu_custom_call.1} parent=1 // pred_check_branch
      %3436 = sbr.rel (0) target = $region29
    $region28: #{tpu_custom_call.1} parent=1 // pred_region
      %3437 = dma.done [#allocation3], 8192
    $region29: #{tpu_custom_call.1} parent=1 // pred_fallthru
      _
    %3438 = vsyncpa [#allocation3], 1

</llo_original>
